<compile_context>
chip_gen: v6e
topology: v6e:2x2x1
jax: 0.10.0
libtpu: 0.0.40
codegen_flags: <defaults>
</compile_context>

<pallas_src>
import jax
import jax.numpy as jnp
from jax.experimental import pallas as pl
from jax.experimental.pallas import tpu as pltpu


def _sigmoid_mul_kernel(gate_ref, x_ref, o_ref):
    # gate_ref: (TC, 1)   per-channel logits
    # x_ref/o_ref: (TC, HW)
    gate = jax.nn.sigmoid(gate_ref[...].astype(jnp.float32))          # EUP, tiny
    # multiply in f32, single cast at the store (1-ulp faithful to reference)
    o_ref[...] = (gate * x_ref[...].astype(jnp.float32)).astype(o_ref.dtype)


def _sublane_divisor(dtype):
    itemsize = jnp.dtype(dtype).itemsize
    return {4: 8, 2: 16, 1: 32}.get(itemsize, 8)


def _tensorcores_per_chip():
    try:
        kind = jax.devices()[0].device_kind.lower()
    except Exception:
        return 1
    # v7x has 2 TensorCores per chip; v5e/v6e have 1.
    return 2 if "7" in kind else 1


def _pick_num_blocks(c, hw, dtype, num_blocks=None):
    """Choose how many channel blocks to split (C, HW) into."""
    itemsize = jnp.dtype(dtype).itemsize
    div = _sublane_divisor(dtype)
    slab_bytes = c * hw * itemsize

    def valid(nb):
        return 1 <= nb <= c and c % nb == 0 and (nb == 1 or (c // nb) % div == 0)

    if num_blocks is not None:
        nb = int(num_blocks)
        return nb if valid(nb) else 1

    dual_tc = _tensorcores_per_chip() >= 2
    SMALL = 2 << 20    # <= 2 MiB per array: single block, no pipelining needed
    TARGET = 2 << 20   # otherwise aim for ~2 MiB feature tiles

    if slab_bytes <= SMALL and not (dual_tc and slab_bytes >= (1 << 20)):
        return 1

    want = max(1, -(-slab_bytes // TARGET))     # ceil(slab / TARGET)
    if dual_tc:
        want = max(want, 2)

    cands = [nb for nb in range(1, max(1, c // div) + 1) if valid(nb)]
    if dual_tc:
        even = [nb for nb in cands if nb % 2 == 0]
        pool = even if even else cands
    else:
        pool = cands
    if not pool:
        return 1
    ge = [nb for nb in pool if nb >= want]
    return ge[0] if ge else pool[-1]


def sigmoid_mul(x520, x516, *, num_blocks=None, donate_features=False):
    """x520: (1, C, 1, 1) gate logits; x516: (1, C, H, W) features.

    num_blocks: override the auto-derived channel split (None = auto).
    donate_features: alias the feature input to the output; only takes effect
      if x516 is actually donated at the jit boundary (perf-only, never wrong).
    """
    n, c, h, w = x516.shape
    assert n == 1, "kernel assumes batch 1 (as in the reference module)"
    assert x520.shape == (1, c, 1, 1)

    hw = h * w
    # NOTE (lane density): with HW=49 only 49/128 lanes of each vreg/store are
    # useful; fixing that requires channel-last data from the model, which we
    # deliberately do not transpose into here (extra HBM pass).
    x2d = x516.reshape(c, hw)
    g2d = x520.reshape(c, 1)

    nb = _pick_num_blocks(c, hw, x516.dtype, num_blocks)
    tc = c // nb

    itemsize = jnp.dtype(x516.dtype).itemsize
    cost = pl.CostEstimate(
        flops=c * hw,
        transcendentals=c,
        bytes_accessed=2 * c * hw * itemsize + c * jnp.dtype(x520.dtype).itemsize,
    )

    kwargs = {}
    if donate_features:
        kwargs["input_output_aliases"] = {1: 0}   # feature input -> output

    def run(single_buffer):
        if single_buffer:
            feat_in = pl.BlockSpec((tc, hw), lambda i: (i, 0),
                                   pipeline_mode=pl.Buffered(1))
            feat_out = pl.BlockSpec((tc, hw), lambda i: (i, 0),
                                    pipeline_mode=pl.Buffered(1))
        else:
            feat_in = pl.BlockSpec((tc, hw), lambda i: (i, 0))
            feat_out = pl.BlockSpec((tc, hw), lambda i: (i, 0))
        return pl.pallas_call(
            _sigmoid_mul_kernel,
            out_shape=jax.ShapeDtypeStruct((c, hw), x516.dtype),
            grid=(nb,),
            in_specs=[
                pl.BlockSpec((tc, 1), lambda i: (i, 0)),   # gate tile
                feat_in,                                   # feature tile
            ],
            out_specs=feat_out,
            compiler_params=pltpu.CompilerParams(
                dimension_semantics=("parallel",)),
            cost_estimate=cost,
            **kwargs,
        )(g2d, x2d)

    if nb == 1:
        # A 1-step grid cannot pipeline: request single buffering (halves the
        # VMEM footprint of the single-block path).  Fall back gracefully if
        # the installed jax does not support Buffered(1).
        try:
            out2d = run(True)
        except Exception:
            out2d = run(False)
    else:
        out2d = run(False)

    return out2d.reshape(1, c, h, w)


if __name__ == "__main__":
    key = jax.random.PRNGKey(0)
    k1, k2 = jax.random.split(key)

    # Shapes from the reference module: x516 (1, 1824, 7, 7), x520 (1, 1824, 1, 1)
    C, H, W = 1824, 7, 7
    x516 = jax.random.normal(k1, (1, C, H, W), dtype=jnp.float32)
    x520 = jax.random.normal(k2, (1, C, 1, 1), dtype=jnp.float32)

    out = sigmoid_mul(x520, x516)
    out = jax.block_until_ready(out)
    ref = jax.nn.sigmoid(x520) * x516
    assert out.shape == (1, C, H, W)
    assert jnp.allclose(out, ref, atol=1e-6, rtol=1e-6)

    # Exercise the auto-tiled (multi-block, pipelined) path on a larger
    # SE-style feature map (~3.1 MiB slab -> nb > 1).
    C2, H2, W2 = 256, 56, 56
    y = jax.random.normal(k1, (1, C2, H2, W2), dtype=jnp.float32)
    g = jax.random.normal(k2, (1, C2, 1, 1), dtype=jnp.float32)
    out2 = jax.block_until_ready(sigmoid_mul(g, y))
    ref2 = jax.nn.sigmoid(g) * y
    assert jnp.allclose(out2, ref2, atol=1e-6, rtol=1e-6)

    print("KERNEL_OK")
</pallas_src>

<mosaic_0001>
module attributes {stable_mosaic.version = 11 : i64} {
  func.func @_sigmoid_mul_kernel(%arg0: i32, %arg1: memref<1824x1xf32, #tpu.memory_space<vmem>>, %arg2: memref<1824x49xf32, #tpu.memory_space<vmem>>, %arg3: memref<1824x49xf32, #tpu.memory_space<vmem>>) attributes {dimension_semantics = [#tpu.dimension_semantics<parallel>], iteration_bounds = array<i64: 1>, scalar_prefetch = 0 : i64, scratch_operands = 0 : i64, tpu.core_type = #tpu.core_type<tc>, window_params = [{transform_indices = @transform_0, window_bounds = array<i64: 1824, 1>}, {pipeline_mode = #tpu.pipeline_mode<synchronous>, transform_indices = @transform_1, window_bounds = array<i64: 1824, 49>}, {pipeline_mode = #tpu.pipeline_mode<synchronous>, transform_indices = @transform_2, window_bounds = array<i64: 1824, 49>}]} {
    %c0 = arith.constant 0 : index
    %c0_0 = arith.constant 0 : index
    %0 = vector.load %arg1[%c0, %c0_0] : memref<1824x1xf32, #tpu.memory_space<vmem>>, vector<1824x1xf32>
    %1 = arith.negf %0 : vector<1824x1xf32>
    %2 = math.exp %1 : vector<1824x1xf32>
    %cst = arith.constant 1.000000e+00 : f32
    %3 = vector.broadcast %cst : f32 to vector<1824x1xf32>
    %4 = arith.addf %3, %2 : vector<1824x1xf32>
    %5 = arith.divf %3, %4 : vector<1824x1xf32>
    %c0_1 = arith.constant 0 : index
    %c0_2 = arith.constant 0 : index
    %6 = vector.load %arg2[%c0_1, %c0_2] : memref<1824x49xf32, #tpu.memory_space<vmem>>, vector<1824x49xf32>
    %7 = vector.broadcast %5 : vector<1824x1xf32> to vector<1824x49xf32>
    %8 = arith.mulf %7, %6 : vector<1824x49xf32>
    %c0_3 = arith.constant 0 : index
    %c0_4 = arith.constant 0 : index
    %9 = vector.load %arg3[%c0_3, %c0_4] : memref<1824x49xf32, #tpu.memory_space<vmem>>, vector<1824x49xf32>
    tpu.vector_store %arg3[%c0_3, %c0_4], %8 {strides = array<i32>} : memref<1824x49xf32, #tpu.memory_space<vmem>>, vector<1824x49xf32>,
    return
  }
  func.func @transform_0(%arg0: i32) -> (i32, i32) {
    %c0_i32 = arith.constant 0 : i32
    %c0_i32_0 = arith.constant 0 : i32
    return %arg0, %c0_i32 : i32, i32
  }
  func.func @transform_1(%arg0: i32) -> (i32, i32) {
    %c0_i32 = arith.constant 0 : i32
    %c0_i32_0 = arith.constant 0 : i32
    return %arg0, %c0_i32 : i32, i32
  }
  func.func @transform_2(%arg0: i32) -> (i32, i32) {
    %c0_i32 = arith.constant 0 : i32
    %c0_i32_0 = arith.constant 0 : i32
    return %arg0, %c0_i32 : i32, i32
  }
}

module attributes {stable_mosaic.version = 11 : i64} {
  func.func @_sigmoid_mul_kernel(%arg0: i32, %arg1: memref<1824x1xf32, #tpu.memory_space<vmem>>, %arg2: memref<1824x49xf32, #tpu.memory_space<vmem>>, %arg3: memref<1824x49xf32, #tpu.memory_space<vmem>>) attributes {dimension_semantics = [#tpu.dimension_semantics<parallel>], iteration_bounds = array<i64: 1>, scalar_prefetch = 0 : i64, scratch_operands = 0 : i64, tpu.core_type = #tpu.core_type<tc>, window_params = [{transform_indices = @transform_0, window_bounds = array<i64: 1824, 1>}, {transform_indices = @transform_1, window_bounds = array<i64: 1824, 49>}, {transform_indices = @transform_2, window_bounds = array<i64: 1824, 49>}]} {
    %c0 = arith.constant 0 : index
    %c0_0 = arith.constant 0 : index
    %0 = vector.load %arg1[%c0, %c0_0] : memref<1824x1xf32, #tpu.memory_space<vmem>>, vector<1824x1xf32>
    %1 = arith.negf %0 : vector<1824x1xf32>
    %2 = math.exp %1 : vector<1824x1xf32>
    %cst = arith.constant 1.000000e+00 : f32
    %3 = vector.broadcast %cst : f32 to vector<1824x1xf32>
    %4 = arith.addf %3, %2 : vector<1824x1xf32>
    %5 = arith.divf %3, %4 : vector<1824x1xf32>
    %c0_1 = arith.constant 0 : index
    %c0_2 = arith.constant 0 : index
    %6 = vector.load %arg2[%c0_1, %c0_2] : memref<1824x49xf32, #tpu.memory_space<vmem>>, vector<1824x49xf32>
    %7 = vector.broadcast %5 : vector<1824x1xf32> to vector<1824x49xf32>
    %8 = arith.mulf %7, %6 : vector<1824x49xf32>
    %c0_3 = arith.constant 0 : index
    %c0_4 = arith.constant 0 : index
    %9 = vector.load %arg3[%c0_3, %c0_4] : memref<1824x49xf32, #tpu.memory_space<vmem>>, vector<1824x49xf32>
    tpu.vector_store %arg3[%c0_3, %c0_4], %8 {strides = array<i32>} : memref<1824x49xf32, #tpu.memory_space<vmem>>, vector<1824x49xf32>,
    return
  }
  func.func @transform_0(%arg0: i32) -> (i32, i32) {
    %c0_i32 = arith.constant 0 : i32
    %c0_i32_0 = arith.constant 0 : i32
    return %arg0, %c0_i32 : i32, i32
  }
  func.func @transform_1(%arg0: i32) -> (i32, i32) {
    %c0_i32 = arith.constant 0 : i32
    %c0_i32_0 = arith.constant 0 : i32
    return %arg0, %c0_i32 : i32, i32
  }
  func.func @transform_2(%arg0: i32) -> (i32, i32) {
    %c0_i32 = arith.constant 0 : i32
    %c0_i32_0 = arith.constant 0 : i32
    return %arg0, %c0_i32 : i32, i32
  }
}

</mosaic_0001>

<llo_original>
// kernel: tpu_custom_call.1
$region0: #{tpu_custom_call.1}
  #allocation0 [shape = 'u32[]', space=smem, size = 0x4, offset = 0x4, fixed_abs, tag = 'smem constant byte address 0x4 - core index']
  #allocation1 [shape = 'u32[144,128]{1,0:T(1,128)}', space=vmem, size = 0x12000, scoped, tag = 'internal scratch']
  %s0 = inlined_call_operand.vmem [shape: f32[1824,1], index: 0, kind: input, shape index: {}]
  %s1 = inlined_call_operand.vmem [shape: f32[1824,49], index: 1, kind: input, shape index: {}]
  %s2 = inlined_call_operand.vmem [shape: f32[1824,49], index: 2, kind: output, shape index: {}]
  %s3 = sld [smem:[#allocation0]]
  $region18: #{tpu_custom_call.1} parent=0
    _
  %s5 = ssub.s32 1, %s3
  %s6 = scalar_select 0, %s5, %s3
  // Predicated region
  $region2: #{tpu_custom_call.1} parent=0 // pred_check
    _
  $region3: #{tpu_custom_call.1} parent=0 // pred_check_branch
    %8 = sbr.rel (0) target = $region5
  $region4: #{tpu_custom_call.1} parent=0 // pred_region
    _
  $region5: #{tpu_custom_call.1} parent=0 // pred_fallthru
    _
  // Predicated region
  $region6: #{tpu_custom_call.1} parent=0 // pred_check
    _
  $region7: #{tpu_custom_call.1} parent=0 // pred_check_branch
    %10 = sbr.rel (0) target = $region9
  $region8: #{tpu_custom_call.1} parent=0 // pred_region
    _
  $region9: #{tpu_custom_call.1} parent=0 // pred_fallthru
    _
  %v11 = vld [vmem:[%s0] sm:$0xff]
  %v12 = vld [vmem:[%s0 + $0x8] sm:$0xff]
  %v13 = vld [vmem:[%s0 + $0x10] sm:$0xff]
  %v14 = vld [vmem:[%s0 + $0x18] sm:$0xff]
  %v15 = vld [vmem:[%s0 + $0x20] sm:$0xff]
  %v16 = vld [vmem:[%s0 + $0x28] sm:$0xff]
  %v17 = vld [vmem:[%s0 + $0x30] sm:$0xff]
  %v18 = vld [vmem:[%s0 + $0x38] sm:$0xff]
  %v19 = vld [vmem:[%s0 + $0x40] sm:$0xff]
  %v20 = vld [vmem:[%s0 + $0x48] sm:$0xff]
  %v21 = vld [vmem:[%s0 + $0x50] sm:$0xff]
  %v22 = vld [vmem:[%s0 + $0x58] sm:$0xff]
  %v23 = vld [vmem:[%s0 + $0x60] sm:$0xff]
  %v24 = vld [vmem:[%s0 + $0x68] sm:$0xff]
  %v25 = vld [vmem:[%s0 + $0x70] sm:$0xff]
  %v26 = vld [vmem:[%s0 + $0x78] sm:$0xff]
  %v27 = vld [vmem:[%s0 + $0x80] sm:$0xff]
  %v28 = vld [vmem:[%s0 + $0x88] sm:$0xff]
  %v29 = vld [vmem:[%s0 + $0x90] sm:$0xff]
  %v30 = vld [vmem:[%s0 + $0x98] sm:$0xff]
  %v31 = vld [vmem:[%s0 + $0xa0] sm:$0xff]
  %v32 = vld [vmem:[%s0 + $0xa8] sm:$0xff]
  %v33 = vld [vmem:[%s0 + $0xb0] sm:$0xff]
  %v34 = vld [vmem:[%s0 + $0xb8] sm:$0xff]
  %v35 = vld [vmem:[%s0 + $0xc0] sm:$0xff]
  %v36 = vld [vmem:[%s0 + $0xc8] sm:$0xff]
  %v37 = vld [vmem:[%s0 + $0xd0] sm:$0xff]
  %v38 = vld [vmem:[%s0 + $0xd8] sm:$0xff]
  %v39 = vld [vmem:[%s0 + $0xe0] sm:$0xff]
  %v40 = vld [vmem:[%s0 + $0xe8] sm:$0xff]
  %v41 = vld [vmem:[%s0 + $0xf0] sm:$0xff]
  %v42 = vld [vmem:[%s0 + $0xf8] sm:$0xff]
  %v43 = vld [vmem:[%s0 + $0x100] sm:$0xff]
  %v44 = vld [vmem:[%s0 + $0x108] sm:$0xff]
  %v45 = vld [vmem:[%s0 + $0x110] sm:$0xff]
  %v46 = vld [vmem:[%s0 + $0x118] sm:$0xff]
  %v47 = vld [vmem:[%s0 + $0x120] sm:$0xff]
  %v48 = vld [vmem:[%s0 + $0x128] sm:$0xff]
  %v49 = vld [vmem:[%s0 + $0x130] sm:$0xff]
  %v50 = vld [vmem:[%s0 + $0x138] sm:$0xff]
  %v51 = vld [vmem:[%s0 + $0x140] sm:$0xff]
  %v52 = vld [vmem:[%s0 + $0x148] sm:$0xff]
  %v53 = vld [vmem:[%s0 + $0x150] sm:$0xff]
  %v54 = vld [vmem:[%s0 + $0x158] sm:$0xff]
  %v55 = vld [vmem:[%s0 + $0x160] sm:$0xff]
  %v56 = vld [vmem:[%s0 + $0x168] sm:$0xff]
  %v57 = vld [vmem:[%s0 + $0x170] sm:$0xff]
  %v58 = vld [vmem:[%s0 + $0x178] sm:$0xff]
  %v59 = vld [vmem:[%s0 + $0x180] sm:$0xff]
  %v60 = vld [vmem:[%s0 + $0x188] sm:$0xff]
  %v61 = vld [vmem:[%s0 + $0x190] sm:$0xff]
  %v62 = vld [vmem:[%s0 + $0x198] sm:$0xff]
  %v63 = vld [vmem:[%s0 + $0x1a0] sm:$0xff]
  %v64 = vld [vmem:[%s0 + $0x1a8] sm:$0xff]
  %v65 = vld [vmem:[%s0 + $0x1b0] sm:$0xff]
  %v66 = vld [vmem:[%s0 + $0x1b8] sm:$0xff]
  %v67 = vld [vmem:[%s0 + $0x1c0] sm:$0xff]
  %v68 = vld [vmem:[%s0 + $0x1c8] sm:$0xff]
  %v69 = vld [vmem:[%s0 + $0x1d0] sm:$0xff]
  %v70 = vld [vmem:[%s0 + $0x1d8] sm:$0xff]
  %v71 = vld [vmem:[%s0 + $0x1e0] sm:$0xff]
  %v72 = vld [vmem:[%s0 + $0x1e8] sm:$0xff]
  %v73 = vld [vmem:[%s0 + $0x1f0] sm:$0xff]
  %v74 = vld [vmem:[%s0 + $0x1f8] sm:$0xff]
  %v75 = vld [vmem:[%s0 + $0x200] sm:$0xff]
  %v76 = vld [vmem:[%s0 + $0x208] sm:$0xff]
  %v77 = vld [vmem:[%s0 + $0x210] sm:$0xff]
  %v78 = vld [vmem:[%s0 + $0x218] sm:$0xff]
  %v79 = vld [vmem:[%s0 + $0x220] sm:$0xff]
  %v80 = vld [vmem:[%s0 + $0x228] sm:$0xff]
  %v81 = vld [vmem:[%s0 + $0x230] sm:$0xff]
  %v82 = vld [vmem:[%s0 + $0x238] sm:$0xff]
  %v83 = vld [vmem:[%s0 + $0x240] sm:$0xff]
  %v84 = vld [vmem:[%s0 + $0x248] sm:$0xff]
  %v85 = vld [vmem:[%s0 + $0x250] sm:$0xff]
  %v86 = vld [vmem:[%s0 + $0x258] sm:$0xff]
  %v87 = vld [vmem:[%s0 + $0x260] sm:$0xff]
  %v88 = vld [vmem:[%s0 + $0x268] sm:$0xff]
  %v89 = vld [vmem:[%s0 + $0x270] sm:$0xff]
  %v90 = vld [vmem:[%s0 + $0x278] sm:$0xff]
  %v91 = vld [vmem:[%s0 + $0x280] sm:$0xff]
  %v92 = vld [vmem:[%s0 + $0x288] sm:$0xff]
  %v93 = vld [vmem:[%s0 + $0x290] sm:$0xff]
  %v94 = vld [vmem:[%s0 + $0x298] sm:$0xff]
  %v95 = vld [vmem:[%s0 + $0x2a0] sm:$0xff]
  %v96 = vld [vmem:[%s0 + $0x2a8] sm:$0xff]
  %v97 = vld [vmem:[%s0 + $0x2b0] sm:$0xff]
  %v98 = vld [vmem:[%s0 + $0x2b8] sm:$0xff]
  %v99 = vld [vmem:[%s0 + $0x2c0] sm:$0xff]
  %v100 = vld [vmem:[%s0 + $0x2c8] sm:$0xff]
  %v101 = vld [vmem:[%s0 + $0x2d0] sm:$0xff]
  %v102 = vld [vmem:[%s0 + $0x2d8] sm:$0xff]
  %v103 = vld [vmem:[%s0 + $0x2e0] sm:$0xff]
  %v104 = vld [vmem:[%s0 + $0x2e8] sm:$0xff]
  %v105 = vld [vmem:[%s0 + $0x2f0] sm:$0xff]
  %v106 = vld [vmem:[%s0 + $0x2f8] sm:$0xff]
  %v107 = vld [vmem:[%s0 + $0x300] sm:$0xff]
  %v108 = vld [vmem:[%s0 + $0x308] sm:$0xff]
  %v109 = vld [vmem:[%s0 + $0x310] sm:$0xff]
  %v110 = vld [vmem:[%s0 + $0x318] sm:$0xff]
  %v111 = vld [vmem:[%s0 + $0x320] sm:$0xff]
  %v112 = vld [vmem:[%s0 + $0x328] sm:$0xff]
  %v113 = vld [vmem:[%s0 + $0x330] sm:$0xff]
  %v114 = vld [vmem:[%s0 + $0x338] sm:$0xff]
  %v115 = vld [vmem:[%s0 + $0x340] sm:$0xff]
  %v116 = vld [vmem:[%s0 + $0x348] sm:$0xff]
  %v117 = vld [vmem:[%s0 + $0x350] sm:$0xff]
  %v118 = vld [vmem:[%s0 + $0x358] sm:$0xff]
  %v119 = vld [vmem:[%s0 + $0x360] sm:$0xff]
  %v120 = vld [vmem:[%s0 + $0x368] sm:$0xff]
  %v121 = vld [vmem:[%s0 + $0x370] sm:$0xff]
  %v122 = vld [vmem:[%s0 + $0x378] sm:$0xff]
  %v123 = vld [vmem:[%s0 + $0x380] sm:$0xff]
  %v124 = vld [vmem:[%s0 + $0x388] sm:$0xff]
  %v125 = vld [vmem:[%s0 + $0x390] sm:$0xff]
  %v126 = vld [vmem:[%s0 + $0x398] sm:$0xff]
  %v127 = vld [vmem:[%s0 + $0x3a0] sm:$0xff]
  %v128 = vld [vmem:[%s0 + $0x3a8] sm:$0xff]
  %v129 = vld [vmem:[%s0 + $0x3b0] sm:$0xff]
  %v130 = vld [vmem:[%s0 + $0x3b8] sm:$0xff]
  %v131 = vld [vmem:[%s0 + $0x3c0] sm:$0xff]
  %v132 = vld [vmem:[%s0 + $0x3c8] sm:$0xff]
  %v133 = vld [vmem:[%s0 + $0x3d0] sm:$0xff]
  %v134 = vld [vmem:[%s0 + $0x3d8] sm:$0xff]
  %v135 = vld [vmem:[%s0 + $0x3e0] sm:$0xff]
  %v136 = vld [vmem:[%s0 + $0x3e8] sm:$0xff]
  %v137 = vld [vmem:[%s0 + $0x3f0] sm:$0xff]
  %v138 = vld [vmem:[%s0 + $0x3f8] sm:$0xff]
  %v139 = vld [vmem:[%s0 + $0x400] sm:$0xff]
  %v140 = vld [vmem:[%s0 + $0x408] sm:$0xff]
  %v141 = vld [vmem:[%s0 + $0x410] sm:$0xff]
  %v142 = vld [vmem:[%s0 + $0x418] sm:$0xff]
  %v143 = vld [vmem:[%s0 + $0x420] sm:$0xff]
  %v144 = vld [vmem:[%s0 + $0x428] sm:$0xff]
  %v145 = vld [vmem:[%s0 + $0x430] sm:$0xff]
  %v146 = vld [vmem:[%s0 + $0x438] sm:$0xff]
  %v147 = vld [vmem:[%s0 + $0x440] sm:$0xff]
  %v148 = vld [vmem:[%s0 + $0x448] sm:$0xff]
  %v149 = vld [vmem:[%s0 + $0x450] sm:$0xff]
  %v150 = vld [vmem:[%s0 + $0x458] sm:$0xff]
  %v151 = vld [vmem:[%s0 + $0x460] sm:$0xff]
  %v152 = vld [vmem:[%s0 + $0x468] sm:$0xff]
  %v153 = vld [vmem:[%s0 + $0x470] sm:$0xff]
  %v154 = vld [vmem:[%s0 + $0x478] sm:$0xff]
  %v155 = vld [vmem:[%s0 + $0x480] sm:$0xff]
  %v156 = vld [vmem:[%s0 + $0x488] sm:$0xff]
  %v157 = vld [vmem:[%s0 + $0x490] sm:$0xff]
  %v158 = vld [vmem:[%s0 + $0x498] sm:$0xff]
  %v159 = vld [vmem:[%s0 + $0x4a0] sm:$0xff]
  %v160 = vld [vmem:[%s0 + $0x4a8] sm:$0xff]
  %v161 = vld [vmem:[%s0 + $0x4b0] sm:$0xff]
  %v162 = vld [vmem:[%s0 + $0x4b8] sm:$0xff]
  %v163 = vld [vmem:[%s0 + $0x4c0] sm:$0xff]
  %v164 = vld [vmem:[%s0 + $0x4c8] sm:$0xff]
  %v165 = vld [vmem:[%s0 + $0x4d0] sm:$0xff]
  %v166 = vld [vmem:[%s0 + $0x4d8] sm:$0xff]
  %v167 = vld [vmem:[%s0 + $0x4e0] sm:$0xff]
  %v168 = vld [vmem:[%s0 + $0x4e8] sm:$0xff]
  %v169 = vld [vmem:[%s0 + $0x4f0] sm:$0xff]
  %v170 = vld [vmem:[%s0 + $0x4f8] sm:$0xff]
  %v171 = vld [vmem:[%s0 + $0x500] sm:$0xff]
  %v172 = vld [vmem:[%s0 + $0x508] sm:$0xff]
  %v173 = vld [vmem:[%s0 + $0x510] sm:$0xff]
  %v174 = vld [vmem:[%s0 + $0x518] sm:$0xff]
  %v175 = vld [vmem:[%s0 + $0x520] sm:$0xff]
  %v176 = vld [vmem:[%s0 + $0x528] sm:$0xff]
  %v177 = vld [vmem:[%s0 + $0x530] sm:$0xff]
  %v178 = vld [vmem:[%s0 + $0x538] sm:$0xff]
  %v179 = vld [vmem:[%s0 + $0x540] sm:$0xff]
  %v180 = vld [vmem:[%s0 + $0x548] sm:$0xff]
  %v181 = vld [vmem:[%s0 + $0x550] sm:$0xff]
  %v182 = vld [vmem:[%s0 + $0x558] sm:$0xff]
  %v183 = vld [vmem:[%s0 + $0x560] sm:$0xff]
  %v184 = vld [vmem:[%s0 + $0x568] sm:$0xff]
  %v185 = vld [vmem:[%s0 + $0x570] sm:$0xff]
  %v186 = vld [vmem:[%s0 + $0x578] sm:$0xff]
  %v187 = vld [vmem:[%s0 + $0x580] sm:$0xff]
  %v188 = vld [vmem:[%s0 + $0x588] sm:$0xff]
  %v189 = vld [vmem:[%s0 + $0x590] sm:$0xff]
  %v190 = vld [vmem:[%s0 + $0x598] sm:$0xff]
  %v191 = vld [vmem:[%s0 + $0x5a0] sm:$0xff]
  %v192 = vld [vmem:[%s0 + $0x5a8] sm:$0xff]
  %v193 = vld [vmem:[%s0 + $0x5b0] sm:$0xff]
  %v194 = vld [vmem:[%s0 + $0x5b8] sm:$0xff]
  %v195 = vld [vmem:[%s0 + $0x5c0] sm:$0xff]
  %v196 = vld [vmem:[%s0 + $0x5c8] sm:$0xff]
  %v197 = vld [vmem:[%s0 + $0x5d0] sm:$0xff]
  %v198 = vld [vmem:[%s0 + $0x5d8] sm:$0xff]
  %v199 = vld [vmem:[%s0 + $0x5e0] sm:$0xff]
  %v200 = vld [vmem:[%s0 + $0x5e8] sm:$0xff]
  %v201 = vld [vmem:[%s0 + $0x5f0] sm:$0xff]
  %v202 = vld [vmem:[%s0 + $0x5f8] sm:$0xff]
  %v203 = vld [vmem:[%s0 + $0x600] sm:$0xff]
  %v204 = vld [vmem:[%s0 + $0x608] sm:$0xff]
  %v205 = vld [vmem:[%s0 + $0x610] sm:$0xff]
  %v206 = vld [vmem:[%s0 + $0x618] sm:$0xff]
  %v207 = vld [vmem:[%s0 + $0x620] sm:$0xff]
  %v208 = vld [vmem:[%s0 + $0x628] sm:$0xff]
  %v209 = vld [vmem:[%s0 + $0x630] sm:$0xff]
  %v210 = vld [vmem:[%s0 + $0x638] sm:$0xff]
  %v211 = vld [vmem:[%s0 + $0x640] sm:$0xff]
  %v212 = vld [vmem:[%s0 + $0x648] sm:$0xff]
  %v213 = vld [vmem:[%s0 + $0x650] sm:$0xff]
  %v214 = vld [vmem:[%s0 + $0x658] sm:$0xff]
  %v215 = vld [vmem:[%s0 + $0x660] sm:$0xff]
  %v216 = vld [vmem:[%s0 + $0x668] sm:$0xff]
  %v217 = vld [vmem:[%s0 + $0x670] sm:$0xff]
  %v218 = vld [vmem:[%s0 + $0x678] sm:$0xff]
  %v219 = vld [vmem:[%s0 + $0x680] sm:$0xff]
  %v220 = vld [vmem:[%s0 + $0x688] sm:$0xff]
  %v221 = vld [vmem:[%s0 + $0x690] sm:$0xff]
  %v222 = vld [vmem:[%s0 + $0x698] sm:$0xff]
  %v223 = vld [vmem:[%s0 + $0x6a0] sm:$0xff]
  %v224 = vld [vmem:[%s0 + $0x6a8] sm:$0xff]
  %v225 = vld [vmem:[%s0 + $0x6b0] sm:$0xff]
  %v226 = vld [vmem:[%s0 + $0x6b8] sm:$0xff]
  %v227 = vld [vmem:[%s0 + $0x6c0] sm:$0xff]
  %v228 = vld [vmem:[%s0 + $0x6c8] sm:$0xff]
  %v229 = vld [vmem:[%s0 + $0x6d0] sm:$0xff]
  %v230 = vld [vmem:[%s0 + $0x6d8] sm:$0xff]
  %v231 = vld [vmem:[%s0 + $0x6e0] sm:$0xff]
  %v232 = vld [vmem:[%s0 + $0x6e8] sm:$0xff]
  %v233 = vld [vmem:[%s0 + $0x6f0] sm:$0xff]
  %v234 = vld [vmem:[%s0 + $0x6f8] sm:$0xff]
  %v235 = vld [vmem:[%s0 + $0x700] sm:$0xff]
  %v236 = vld [vmem:[%s0 + $0x708] sm:$0xff]
  %v237 = vld [vmem:[%s0 + $0x710] sm:$0xff]
  %v238 = vld [vmem:[%s0 + $0x718] sm:$0xff]
  %v239 = vxor.u32 %v11, 2147483648
  %v240 = vxor.u32 %v12, 2147483648
  %v241 = vxor.u32 %v13, 2147483648
  %v242 = vxor.u32 %v14, 2147483648
  %v243 = vxor.u32 %v15, 2147483648
  %v244 = vxor.u32 %v16, 2147483648
  %v245 = vxor.u32 %v17, 2147483648
  %v246 = vxor.u32 %v18, 2147483648
  %v247 = vxor.u32 %v19, 2147483648
  %v248 = vxor.u32 %v20, 2147483648
  %v249 = vxor.u32 %v21, 2147483648
  %v250 = vxor.u32 %v22, 2147483648
  %v251 = vxor.u32 %v23, 2147483648
  %v252 = vxor.u32 %v24, 2147483648
  %v253 = vxor.u32 %v25, 2147483648
  %v254 = vxor.u32 %v26, 2147483648
  %v255 = vxor.u32 %v27, 2147483648
  %v256 = vxor.u32 %v28, 2147483648
  %v257 = vxor.u32 %v29, 2147483648
  %v258 = vxor.u32 %v30, 2147483648
  %v259 = vxor.u32 %v31, 2147483648
  %v260 = vxor.u32 %v32, 2147483648
  %v261 = vxor.u32 %v33, 2147483648
  %v262 = vxor.u32 %v34, 2147483648
  %v263 = vxor.u32 %v35, 2147483648
  %v264 = vxor.u32 %v36, 2147483648
  %v265 = vxor.u32 %v37, 2147483648
  %v266 = vxor.u32 %v38, 2147483648
  %v267 = vxor.u32 %v39, 2147483648
  %v268 = vxor.u32 %v40, 2147483648
  %v269 = vxor.u32 %v41, 2147483648
  %v270 = vxor.u32 %v42, 2147483648
  %v271 = vxor.u32 %v43, 2147483648
  %v272 = vxor.u32 %v44, 2147483648
  %v273 = vxor.u32 %v45, 2147483648
  %v274 = vxor.u32 %v46, 2147483648
  %v275 = vxor.u32 %v47, 2147483648
  %v276 = vxor.u32 %v48, 2147483648
  %v277 = vxor.u32 %v49, 2147483648
  %v278 = vxor.u32 %v50, 2147483648
  %v279 = vxor.u32 %v51, 2147483648
  %v280 = vxor.u32 %v52, 2147483648
  %v281 = vxor.u32 %v53, 2147483648
  %v282 = vxor.u32 %v54, 2147483648
  %v283 = vxor.u32 %v55, 2147483648
  %v284 = vxor.u32 %v56, 2147483648
  %v285 = vxor.u32 %v57, 2147483648
  %v286 = vxor.u32 %v58, 2147483648
  %v287 = vxor.u32 %v59, 2147483648
  %v288 = vxor.u32 %v60, 2147483648
  %v289 = vxor.u32 %v61, 2147483648
  %v290 = vxor.u32 %v62, 2147483648
  %v291 = vxor.u32 %v63, 2147483648
  %v292 = vxor.u32 %v64, 2147483648
  %v293 = vxor.u32 %v65, 2147483648
  %v294 = vxor.u32 %v66, 2147483648
  %v295 = vxor.u32 %v67, 2147483648
  %v296 = vxor.u32 %v68, 2147483648
  %v297 = vxor.u32 %v69, 2147483648
  %v298 = vxor.u32 %v70, 2147483648
  %v299 = vxor.u32 %v71, 2147483648
  %v300 = vxor.u32 %v72, 2147483648
  %v301 = vxor.u32 %v73, 2147483648
  %v302 = vxor.u32 %v74, 2147483648
  %v303 = vxor.u32 %v75, 2147483648
  %v304 = vxor.u32 %v76, 2147483648
  %v305 = vxor.u32 %v77, 2147483648
  %v306 = vxor.u32 %v78, 2147483648
  %v307 = vxor.u32 %v79, 2147483648
  %v308 = vxor.u32 %v80, 2147483648
  %v309 = vxor.u32 %v81, 2147483648
  %v310 = vxor.u32 %v82, 2147483648
  %v311 = vxor.u32 %v83, 2147483648
  %v312 = vxor.u32 %v84, 2147483648
  %v313 = vxor.u32 %v85, 2147483648
  %v314 = vxor.u32 %v86, 2147483648
  %v315 = vxor.u32 %v87, 2147483648
  %v316 = vxor.u32 %v88, 2147483648
  %v317 = vxor.u32 %v89, 2147483648
  %v318 = vxor.u32 %v90, 2147483648
  %v319 = vxor.u32 %v91, 2147483648
  %v320 = vxor.u32 %v92, 2147483648
  %v321 = vxor.u32 %v93, 2147483648
  %v322 = vxor.u32 %v94, 2147483648
  %v323 = vxor.u32 %v95, 2147483648
  %v324 = vxor.u32 %v96, 2147483648
  %v325 = vxor.u32 %v97, 2147483648
  %v326 = vxor.u32 %v98, 2147483648
  %v327 = vxor.u32 %v99, 2147483648
  %v328 = vxor.u32 %v100, 2147483648
  %v329 = vxor.u32 %v101, 2147483648
  %v330 = vxor.u32 %v102, 2147483648
  %v331 = vxor.u32 %v103, 2147483648
  %v332 = vxor.u32 %v104, 2147483648
  %v333 = vxor.u32 %v105, 2147483648
  %v334 = vxor.u32 %v106, 2147483648
  %v335 = vxor.u32 %v107, 2147483648
  %v336 = vxor.u32 %v108, 2147483648
  %v337 = vxor.u32 %v109, 2147483648
  %v338 = vxor.u32 %v110, 2147483648
  %v339 = vxor.u32 %v111, 2147483648
  %v340 = vxor.u32 %v112, 2147483648
  %v341 = vxor.u32 %v113, 2147483648
  %v342 = vxor.u32 %v114, 2147483648
  %v343 = vxor.u32 %v115, 2147483648
  %v344 = vxor.u32 %v116, 2147483648
  %v345 = vxor.u32 %v117, 2147483648
  %v346 = vxor.u32 %v118, 2147483648
  %v347 = vxor.u32 %v119, 2147483648
  %v348 = vxor.u32 %v120, 2147483648
  %v349 = vxor.u32 %v121, 2147483648
  %v350 = vxor.u32 %v122, 2147483648
  %v351 = vxor.u32 %v123, 2147483648
  %v352 = vxor.u32 %v124, 2147483648
  %v353 = vxor.u32 %v125, 2147483648
  %v354 = vxor.u32 %v126, 2147483648
  %v355 = vxor.u32 %v127, 2147483648
  %v356 = vxor.u32 %v128, 2147483648
  %v357 = vxor.u32 %v129, 2147483648
  %v358 = vxor.u32 %v130, 2147483648
  %v359 = vxor.u32 %v131, 2147483648
  %v360 = vxor.u32 %v132, 2147483648
  %v361 = vxor.u32 %v133, 2147483648
  %v362 = vxor.u32 %v134, 2147483648
  %v363 = vxor.u32 %v135, 2147483648
  %v364 = vxor.u32 %v136, 2147483648
  %v365 = vxor.u32 %v137, 2147483648
  %v366 = vxor.u32 %v138, 2147483648
  %v367 = vxor.u32 %v139, 2147483648
  %v368 = vxor.u32 %v140, 2147483648
  %v369 = vxor.u32 %v141, 2147483648
  %v370 = vxor.u32 %v142, 2147483648
  %v371 = vxor.u32 %v143, 2147483648
  %v372 = vxor.u32 %v144, 2147483648
  %v373 = vxor.u32 %v145, 2147483648
  %v374 = vxor.u32 %v146, 2147483648
  %v375 = vxor.u32 %v147, 2147483648
  %v376 = vxor.u32 %v148, 2147483648
  %v377 = vxor.u32 %v149, 2147483648
  %v378 = vxor.u32 %v150, 2147483648
  %v379 = vxor.u32 %v151, 2147483648
  %v380 = vxor.u32 %v152, 2147483648
  %v381 = vxor.u32 %v153, 2147483648
  %v382 = vxor.u32 %v154, 2147483648
  %v383 = vxor.u32 %v155, 2147483648
  %v384 = vxor.u32 %v156, 2147483648
  %v385 = vxor.u32 %v157, 2147483648
  %v386 = vxor.u32 %v158, 2147483648
  %v387 = vxor.u32 %v159, 2147483648
  %v388 = vxor.u32 %v160, 2147483648
  %v389 = vxor.u32 %v161, 2147483648
  %v390 = vxor.u32 %v162, 2147483648
  %v391 = vxor.u32 %v163, 2147483648
  %v392 = vxor.u32 %v164, 2147483648
  %v393 = vxor.u32 %v165, 2147483648
  %v394 = vxor.u32 %v166, 2147483648
  %v395 = vxor.u32 %v167, 2147483648
  %v396 = vxor.u32 %v168, 2147483648
  %v397 = vxor.u32 %v169, 2147483648
  %v398 = vxor.u32 %v170, 2147483648
  %v399 = vxor.u32 %v171, 2147483648
  %v400 = vxor.u32 %v172, 2147483648
  %v401 = vxor.u32 %v173, 2147483648
  %v402 = vxor.u32 %v174, 2147483648
  %v403 = vxor.u32 %v175, 2147483648
  %v404 = vxor.u32 %v176, 2147483648
  %v405 = vxor.u32 %v177, 2147483648
  %v406 = vxor.u32 %v178, 2147483648
  %v407 = vxor.u32 %v179, 2147483648
  %v408 = vxor.u32 %v180, 2147483648
  %v409 = vxor.u32 %v181, 2147483648
  %v410 = vxor.u32 %v182, 2147483648
  %v411 = vxor.u32 %v183, 2147483648
  %v412 = vxor.u32 %v184, 2147483648
  %v413 = vxor.u32 %v185, 2147483648
  %v414 = vxor.u32 %v186, 2147483648
  %v415 = vxor.u32 %v187, 2147483648
  %v416 = vxor.u32 %v188, 2147483648
  %v417 = vxor.u32 %v189, 2147483648
  %v418 = vxor.u32 %v190, 2147483648
  %v419 = vxor.u32 %v191, 2147483648
  %v420 = vxor.u32 %v192, 2147483648
  %v421 = vxor.u32 %v193, 2147483648
  %v422 = vxor.u32 %v194, 2147483648
  %v423 = vxor.u32 %v195, 2147483648
  %v424 = vxor.u32 %v196, 2147483648
  %v425 = vxor.u32 %v197, 2147483648
  %v426 = vxor.u32 %v198, 2147483648
  %v427 = vxor.u32 %v199, 2147483648
  %v428 = vxor.u32 %v200, 2147483648
  %v429 = vxor.u32 %v201, 2147483648
  %v430 = vxor.u32 %v202, 2147483648
  %v431 = vxor.u32 %v203, 2147483648
  %v432 = vxor.u32 %v204, 2147483648
  %v433 = vxor.u32 %v205, 2147483648
  %v434 = vxor.u32 %v206, 2147483648
  %v435 = vxor.u32 %v207, 2147483648
  %v436 = vxor.u32 %v208, 2147483648
  %v437 = vxor.u32 %v209, 2147483648
  %v438 = vxor.u32 %v210, 2147483648
  %v439 = vxor.u32 %v211, 2147483648
  %v440 = vxor.u32 %v212, 2147483648
  %v441 = vxor.u32 %v213, 2147483648
  %v442 = vxor.u32 %v214, 2147483648
  %v443 = vxor.u32 %v215, 2147483648
  %v444 = vxor.u32 %v216, 2147483648
  %v445 = vxor.u32 %v217, 2147483648
  %v446 = vxor.u32 %v218, 2147483648
  %v447 = vxor.u32 %v219, 2147483648
  %v448 = vxor.u32 %v220, 2147483648
  %v449 = vxor.u32 %v221, 2147483648
  %v450 = vxor.u32 %v222, 2147483648
  %v451 = vxor.u32 %v223, 2147483648
  %v452 = vxor.u32 %v224, 2147483648
  %v453 = vxor.u32 %v225, 2147483648
  %v454 = vxor.u32 %v226, 2147483648
  %v455 = vxor.u32 %v227, 2147483648
  %v456 = vxor.u32 %v228, 2147483648
  %v457 = vxor.u32 %v229, 2147483648
  %v458 = vxor.u32 %v230, 2147483648
  %v459 = vxor.u32 %v231, 2147483648
  %v460 = vxor.u32 %v232, 2147483648
  %v461 = vxor.u32 %v233, 2147483648
  %v462 = vxor.u32 %v234, 2147483648
  %v463 = vxor.u32 %v235, 2147483648
  %v464 = vxor.u32 %v236, 2147483648
  %v465 = vxor.u32 %v237, 2147483648
  %v466 = vxor.u32 %v238, 2147483648
  %v467 = vmul.f32 %v239, 1.442695
  %v468 = vpow.pop %v467
  %v469 = vmul.f32 %v240, 1.442695
  %v470 = vpow.pop %v469
  %v471 = vmul.f32 %v241, 1.442695
  %v472 = vpow.pop %v471
  %v473 = vmul.f32 %v242, 1.442695
  %v474 = vpow.pop %v473
  %v475 = vmul.f32 %v243, 1.442695
  %v476 = vpow.pop %v475
  %v477 = vmul.f32 %v244, 1.442695
  %v478 = vpow.pop %v477
  %v479 = vmul.f32 %v245, 1.442695
  %v480 = vpow.pop %v479
  %v481 = vmul.f32 %v246, 1.442695
  %v482 = vpow.pop %v481
  %v483 = vmul.f32 %v247, 1.442695
  %v484 = vpow.pop %v483
  %v485 = vmul.f32 %v248, 1.442695
  %v486 = vpow.pop %v485
  %v487 = vmul.f32 %v249, 1.442695
  %v488 = vpow.pop %v487
  %v489 = vmul.f32 %v250, 1.442695
  %v490 = vpow.pop %v489
  %v491 = vmul.f32 %v251, 1.442695
  %v492 = vpow.pop %v491
  %v493 = vmul.f32 %v252, 1.442695
  %v494 = vpow.pop %v493
  %v495 = vmul.f32 %v253, 1.442695
  %v496 = vpow.pop %v495
  %v497 = vmul.f32 %v254, 1.442695
  %v498 = vpow.pop %v497
  %v499 = vmul.f32 %v255, 1.442695
  %v500 = vpow.pop %v499
  %v501 = vmul.f32 %v256, 1.442695
  %v502 = vpow.pop %v501
  %v503 = vmul.f32 %v257, 1.442695
  %v504 = vpow.pop %v503
  %v505 = vmul.f32 %v258, 1.442695
  %v506 = vpow.pop %v505
  %v507 = vmul.f32 %v259, 1.442695
  %v508 = vpow.pop %v507
  %v509 = vmul.f32 %v260, 1.442695
  %v510 = vpow.pop %v509
  %v511 = vmul.f32 %v261, 1.442695
  %v512 = vpow.pop %v511
  %v513 = vmul.f32 %v262, 1.442695
  %v514 = vpow.pop %v513
  %v515 = vmul.f32 %v263, 1.442695
  %v516 = vpow.pop %v515
  %v517 = vmul.f32 %v264, 1.442695
  %v518 = vpow.pop %v517
  %v519 = vmul.f32 %v265, 1.442695
  %v520 = vpow.pop %v519
  %v521 = vmul.f32 %v266, 1.442695
  %v522 = vpow.pop %v521
  %v523 = vmul.f32 %v267, 1.442695
  %v524 = vpow.pop %v523
  %v525 = vmul.f32 %v268, 1.442695
  %v526 = vpow.pop %v525
  %v527 = vmul.f32 %v269, 1.442695
  %v528 = vpow.pop %v527
  %v529 = vmul.f32 %v270, 1.442695
  %v530 = vpow.pop %v529
  %v531 = vmul.f32 %v271, 1.442695
  %v532 = vpow.pop %v531
  %v533 = vmul.f32 %v272, 1.442695
  %v534 = vpow.pop %v533
  %v535 = vmul.f32 %v273, 1.442695
  %v536 = vpow.pop %v535
  %v537 = vmul.f32 %v274, 1.442695
  %v538 = vpow.pop %v537
  %v539 = vmul.f32 %v275, 1.442695
  %v540 = vpow.pop %v539
  %v541 = vmul.f32 %v276, 1.442695
  %v542 = vpow.pop %v541
  %v543 = vmul.f32 %v277, 1.442695
  %v544 = vpow.pop %v543
  %v545 = vmul.f32 %v278, 1.442695
  %v546 = vpow.pop %v545
  %v547 = vmul.f32 %v279, 1.442695
  %v548 = vpow.pop %v547
  %v549 = vmul.f32 %v280, 1.442695
  %v550 = vpow.pop %v549
  %v551 = vmul.f32 %v281, 1.442695
  %v552 = vpow.pop %v551
  %v553 = vmul.f32 %v282, 1.442695
  %v554 = vpow.pop %v553
  %v555 = vmul.f32 %v283, 1.442695
  %v556 = vpow.pop %v555
  %v557 = vmul.f32 %v284, 1.442695
  %v558 = vpow.pop %v557
  %v559 = vmul.f32 %v285, 1.442695
  %v560 = vpow.pop %v559
  %v561 = vmul.f32 %v286, 1.442695
  %v562 = vpow.pop %v561
  %v563 = vmul.f32 %v287, 1.442695
  %v564 = vpow.pop %v563
  %v565 = vmul.f32 %v288, 1.442695
  %v566 = vpow.pop %v565
  %v567 = vmul.f32 %v289, 1.442695
  %v568 = vpow.pop %v567
  %v569 = vmul.f32 %v290, 1.442695
  %v570 = vpow.pop %v569
  %v571 = vmul.f32 %v291, 1.442695
  %v572 = vpow.pop %v571
  %v573 = vmul.f32 %v292, 1.442695
  %v574 = vpow.pop %v573
  %v575 = vmul.f32 %v293, 1.442695
  %v576 = vpow.pop %v575
  %v577 = vmul.f32 %v294, 1.442695
  %v578 = vpow.pop %v577
  %v579 = vmul.f32 %v295, 1.442695
  %v580 = vpow.pop %v579
  %v581 = vmul.f32 %v296, 1.442695
  %v582 = vpow.pop %v581
  %v583 = vmul.f32 %v297, 1.442695
  %v584 = vpow.pop %v583
  %v585 = vmul.f32 %v298, 1.442695
  %v586 = vpow.pop %v585
  %v587 = vmul.f32 %v299, 1.442695
  %v588 = vpow.pop %v587
  %v589 = vmul.f32 %v300, 1.442695
  %v590 = vpow.pop %v589
  %v591 = vmul.f32 %v301, 1.442695
  %v592 = vpow.pop %v591
  %v593 = vmul.f32 %v302, 1.442695
  %v594 = vpow.pop %v593
  %v595 = vmul.f32 %v303, 1.442695
  %v596 = vpow.pop %v595
  %v597 = vmul.f32 %v304, 1.442695
  %v598 = vpow.pop %v597
  %v599 = vmul.f32 %v305, 1.442695
  %v600 = vpow.pop %v599
  %v601 = vmul.f32 %v306, 1.442695
  %v602 = vpow.pop %v601
  %v603 = vmul.f32 %v307, 1.442695
  %v604 = vpow.pop %v603
  %v605 = vmul.f32 %v308, 1.442695
  %v606 = vpow.pop %v605
  %v607 = vmul.f32 %v309, 1.442695
  %v608 = vpow.pop %v607
  %v609 = vmul.f32 %v310, 1.442695
  %v610 = vpow.pop %v609
  %v611 = vmul.f32 %v311, 1.442695
  %v612 = vpow.pop %v611
  %v613 = vmul.f32 %v312, 1.442695
  %v614 = vpow.pop %v613
  %v615 = vmul.f32 %v313, 1.442695
  %v616 = vpow.pop %v615
  %v617 = vmul.f32 %v314, 1.442695
  %v618 = vpow.pop %v617
  %v619 = vmul.f32 %v315, 1.442695
  %v620 = vpow.pop %v619
  %v621 = vmul.f32 %v316, 1.442695
  %v622 = vpow.pop %v621
  %v623 = vmul.f32 %v317, 1.442695
  %v624 = vpow.pop %v623
  %v625 = vmul.f32 %v318, 1.442695
  %v626 = vpow.pop %v625
  %v627 = vmul.f32 %v319, 1.442695
  %v628 = vpow.pop %v627
  %v629 = vmul.f32 %v320, 1.442695
  %v630 = vpow.pop %v629
  %v631 = vmul.f32 %v321, 1.442695
  %v632 = vpow.pop %v631
  %v633 = vmul.f32 %v322, 1.442695
  %v634 = vpow.pop %v633
  %v635 = vmul.f32 %v323, 1.442695
  %v636 = vpow.pop %v635
  %v637 = vmul.f32 %v324, 1.442695
  %v638 = vpow.pop %v637
  %v639 = vmul.f32 %v325, 1.442695
  %v640 = vpow.pop %v639
  %v641 = vmul.f32 %v326, 1.442695
  %v642 = vpow.pop %v641
  %v643 = vmul.f32 %v327, 1.442695
  %v644 = vpow.pop %v643
  %v645 = vmul.f32 %v328, 1.442695
  %v646 = vpow.pop %v645
  %v647 = vmul.f32 %v329, 1.442695
  %v648 = vpow.pop %v647
  %v649 = vmul.f32 %v330, 1.442695
  %v650 = vpow.pop %v649
  %v651 = vmul.f32 %v331, 1.442695
  %v652 = vpow.pop %v651
  %v653 = vmul.f32 %v332, 1.442695
  %v654 = vpow.pop %v653
  %v655 = vmul.f32 %v333, 1.442695
  %v656 = vpow.pop %v655
  %v657 = vmul.f32 %v334, 1.442695
  %v658 = vpow.pop %v657
  %v659 = vmul.f32 %v335, 1.442695
  %v660 = vpow.pop %v659
  %v661 = vmul.f32 %v336, 1.442695
  %v662 = vpow.pop %v661
  %v663 = vmul.f32 %v337, 1.442695
  %v664 = vpow.pop %v663
  %v665 = vmul.f32 %v338, 1.442695
  %v666 = vpow.pop %v665
  %v667 = vmul.f32 %v339, 1.442695
  %v668 = vpow.pop %v667
  %v669 = vmul.f32 %v340, 1.442695
  %v670 = vpow.pop %v669
  %v671 = vmul.f32 %v341, 1.442695
  %v672 = vpow.pop %v671
  %v673 = vmul.f32 %v342, 1.442695
  %v674 = vpow.pop %v673
  %v675 = vmul.f32 %v343, 1.442695
  %v676 = vpow.pop %v675
  %v677 = vmul.f32 %v344, 1.442695
  %v678 = vpow.pop %v677
  %v679 = vmul.f32 %v345, 1.442695
  %v680 = vpow.pop %v679
  %v681 = vmul.f32 %v346, 1.442695
  %v682 = vpow.pop %v681
  %v683 = vmul.f32 %v347, 1.442695
  %v684 = vpow.pop %v683
  %v685 = vmul.f32 %v348, 1.442695
  %v686 = vpow.pop %v685
  %v687 = vmul.f32 %v349, 1.442695
  %v688 = vpow.pop %v687
  %v689 = vmul.f32 %v350, 1.442695
  %v690 = vpow.pop %v689
  %v691 = vmul.f32 %v351, 1.442695
  %v692 = vpow.pop %v691
  %v693 = vmul.f32 %v352, 1.442695
  %v694 = vpow.pop %v693
  %v695 = vmul.f32 %v353, 1.442695
  %v696 = vpow.pop %v695
  %v697 = vmul.f32 %v354, 1.442695
  %v698 = vpow.pop %v697
  %v699 = vmul.f32 %v355, 1.442695
  %v700 = vpow.pop %v699
  %v701 = vmul.f32 %v356, 1.442695
  %v702 = vpow.pop %v701
  %v703 = vmul.f32 %v357, 1.442695
  %v704 = vpow.pop %v703
  %v705 = vmul.f32 %v358, 1.442695
  %v706 = vpow.pop %v705
  %v707 = vmul.f32 %v359, 1.442695
  %v708 = vpow.pop %v707
  %v709 = vmul.f32 %v360, 1.442695
  %v710 = vpow.pop %v709
  %v711 = vmul.f32 %v361, 1.442695
  %v712 = vpow.pop %v711
  %v713 = vmul.f32 %v362, 1.442695
  %v714 = vpow.pop %v713
  %v715 = vmul.f32 %v363, 1.442695
  %v716 = vpow.pop %v715
  %v717 = vmul.f32 %v364, 1.442695
  %v718 = vpow.pop %v717
  %v719 = vmul.f32 %v365, 1.442695
  %v720 = vpow.pop %v719
  %v721 = vmul.f32 %v366, 1.442695
  %v722 = vpow.pop %v721
  %v723 = vmul.f32 %v367, 1.442695
  %v724 = vpow.pop %v723
  %v725 = vmul.f32 %v368, 1.442695
  %v726 = vpow.pop %v725
  %v727 = vmul.f32 %v369, 1.442695
  %v728 = vpow.pop %v727
  %v729 = vmul.f32 %v370, 1.442695
  %v730 = vpow.pop %v729
  %v731 = vmul.f32 %v371, 1.442695
  %v732 = vpow.pop %v731
  %v733 = vmul.f32 %v372, 1.442695
  %v734 = vpow.pop %v733
  %v735 = vmul.f32 %v373, 1.442695
  %v736 = vpow.pop %v735
  %v737 = vmul.f32 %v374, 1.442695
  %v738 = vpow.pop %v737
  %v739 = vmul.f32 %v375, 1.442695
  %v740 = vpow.pop %v739
  %v741 = vmul.f32 %v376, 1.442695
  %v742 = vpow.pop %v741
  %v743 = vmul.f32 %v377, 1.442695
  %v744 = vpow.pop %v743
  %v745 = vmul.f32 %v378, 1.442695
  %v746 = vpow.pop %v745
  %v747 = vmul.f32 %v379, 1.442695
  %v748 = vpow.pop %v747
  %v749 = vmul.f32 %v380, 1.442695
  %v750 = vpow.pop %v749
  %v751 = vmul.f32 %v381, 1.442695
  %v752 = vpow.pop %v751
  %v753 = vmul.f32 %v382, 1.442695
  %v754 = vpow.pop %v753
  %v755 = vmul.f32 %v383, 1.442695
  %v756 = vpow.pop %v755
  %v757 = vmul.f32 %v384, 1.442695
  %v758 = vpow.pop %v757
  %v759 = vmul.f32 %v385, 1.442695
  %v760 = vpow.pop %v759
  %v761 = vmul.f32 %v386, 1.442695
  %v762 = vpow.pop %v761
  %v763 = vmul.f32 %v387, 1.442695
  %v764 = vpow.pop %v763
  %v765 = vmul.f32 %v388, 1.442695
  %v766 = vpow.pop %v765
  %v767 = vmul.f32 %v389, 1.442695
  %v768 = vpow.pop %v767
  %v769 = vmul.f32 %v390, 1.442695
  %v770 = vpow.pop %v769
  %v771 = vmul.f32 %v391, 1.442695
  %v772 = vpow.pop %v771
  %v773 = vmul.f32 %v392, 1.442695
  %v774 = vpow.pop %v773
  %v775 = vmul.f32 %v393, 1.442695
  %v776 = vpow.pop %v775
  %v777 = vmul.f32 %v394, 1.442695
  %v778 = vpow.pop %v777
  %v779 = vmul.f32 %v395, 1.442695
  %v780 = vpow.pop %v779
  %v781 = vmul.f32 %v396, 1.442695
  %v782 = vpow.pop %v781
  %v783 = vmul.f32 %v397, 1.442695
  %v784 = vpow.pop %v783
  %v785 = vmul.f32 %v398, 1.442695
  %v786 = vpow.pop %v785
  %v787 = vmul.f32 %v399, 1.442695
  %v788 = vpow.pop %v787
  %v789 = vmul.f32 %v400, 1.442695
  %v790 = vpow.pop %v789
  %v791 = vmul.f32 %v401, 1.442695
  %v792 = vpow.pop %v791
  %v793 = vmul.f32 %v402, 1.442695
  %v794 = vpow.pop %v793
  %v795 = vmul.f32 %v403, 1.442695
  %v796 = vpow.pop %v795
  %v797 = vmul.f32 %v404, 1.442695
  %v798 = vpow.pop %v797
  %v799 = vmul.f32 %v405, 1.442695
  %v800 = vpow.pop %v799
  %v801 = vmul.f32 %v406, 1.442695
  %v802 = vpow.pop %v801
  %v803 = vmul.f32 %v407, 1.442695
  %v804 = vpow.pop %v803
  %v805 = vmul.f32 %v408, 1.442695
  %v806 = vpow.pop %v805
  %v807 = vmul.f32 %v409, 1.442695
  %v808 = vpow.pop %v807
  %v809 = vmul.f32 %v410, 1.442695
  %v810 = vpow.pop %v809
  %v811 = vmul.f32 %v411, 1.442695
  %v812 = vpow.pop %v811
  %v813 = vmul.f32 %v412, 1.442695
  %v814 = vpow.pop %v813
  %v815 = vmul.f32 %v413, 1.442695
  %v816 = vpow.pop %v815
  %v817 = vmul.f32 %v414, 1.442695
  %v818 = vpow.pop %v817
  %v819 = vmul.f32 %v415, 1.442695
  %v820 = vpow.pop %v819
  %v821 = vmul.f32 %v416, 1.442695
  %v822 = vpow.pop %v821
  %v823 = vmul.f32 %v417, 1.442695
  %v824 = vpow.pop %v823
  %v825 = vmul.f32 %v418, 1.442695
  %v826 = vpow.pop %v825
  %v827 = vmul.f32 %v419, 1.442695
  %v828 = vpow.pop %v827
  %v829 = vmul.f32 %v420, 1.442695
  %v830 = vpow.pop %v829
  %v831 = vmul.f32 %v421, 1.442695
  %v832 = vpow.pop %v831
  %v833 = vmul.f32 %v422, 1.442695
  %v834 = vpow.pop %v833
  %v835 = vmul.f32 %v423, 1.442695
  %v836 = vpow.pop %v835
  %v837 = vmul.f32 %v424, 1.442695
  %v838 = vpow.pop %v837
  %v839 = vmul.f32 %v425, 1.442695
  %v840 = vpow.pop %v839
  %v841 = vmul.f32 %v426, 1.442695
  %v842 = vpow.pop %v841
  %v843 = vmul.f32 %v427, 1.442695
  %v844 = vpow.pop %v843
  %v845 = vmul.f32 %v428, 1.442695
  %v846 = vpow.pop %v845
  %v847 = vmul.f32 %v429, 1.442695
  %v848 = vpow.pop %v847
  %v849 = vmul.f32 %v430, 1.442695
  %v850 = vpow.pop %v849
  %v851 = vmul.f32 %v431, 1.442695
  %v852 = vpow.pop %v851
  %v853 = vmul.f32 %v432, 1.442695
  %v854 = vpow.pop %v853
  %v855 = vmul.f32 %v433, 1.442695
  %v856 = vpow.pop %v855
  %v857 = vmul.f32 %v434, 1.442695
  %v858 = vpow.pop %v857
  %v859 = vmul.f32 %v435, 1.442695
  %v860 = vpow.pop %v859
  %v861 = vmul.f32 %v436, 1.442695
  %v862 = vpow.pop %v861
  %v863 = vmul.f32 %v437, 1.442695
  %v864 = vpow.pop %v863
  %v865 = vmul.f32 %v438, 1.442695
  %v866 = vpow.pop %v865
  %v867 = vmul.f32 %v439, 1.442695
  %v868 = vpow.pop %v867
  %v869 = vmul.f32 %v440, 1.442695
  %v870 = vpow.pop %v869
  %v871 = vmul.f32 %v441, 1.442695
  %v872 = vpow.pop %v871
  %v873 = vmul.f32 %v442, 1.442695
  %v874 = vpow.pop %v873
  %v875 = vmul.f32 %v443, 1.442695
  %v876 = vpow.pop %v875
  %v877 = vmul.f32 %v444, 1.442695
  %v878 = vpow.pop %v877
  %v879 = vmul.f32 %v445, 1.442695
  %v880 = vpow.pop %v879
  %v881 = vmul.f32 %v446, 1.442695
  %v882 = vpow.pop %v881
  %v883 = vmul.f32 %v447, 1.442695
  %v884 = vpow.pop %v883
  %v885 = vmul.f32 %v448, 1.442695
  %v886 = vpow.pop %v885
  %v887 = vmul.f32 %v449, 1.442695
  %v888 = vpow.pop %v887
  %v889 = vmul.f32 %v450, 1.442695
  %v890 = vpow.pop %v889
  %v891 = vmul.f32 %v451, 1.442695
  %v892 = vpow.pop %v891
  %v893 = vmul.f32 %v452, 1.442695
  %v894 = vpow.pop %v893
  %v895 = vmul.f32 %v453, 1.442695
  %v896 = vpow.pop %v895
  %v897 = vmul.f32 %v454, 1.442695
  %v898 = vpow.pop %v897
  %v899 = vmul.f32 %v455, 1.442695
  %v900 = vpow.pop %v899
  %v901 = vmul.f32 %v456, 1.442695
  %v902 = vpow.pop %v901
  %v903 = vmul.f32 %v457, 1.442695
  %v904 = vpow.pop %v903
  %v905 = vmul.f32 %v458, 1.442695
  %v906 = vpow.pop %v905
  %v907 = vmul.f32 %v459, 1.442695
  %v908 = vpow.pop %v907
  %v909 = vmul.f32 %v460, 1.442695
  %v910 = vpow.pop %v909
  %v911 = vmul.f32 %v461, 1.442695
  %v912 = vpow.pop %v911
  %v913 = vmul.f32 %v462, 1.442695
  %v914 = vpow.pop %v913
  %v915 = vmul.f32 %v463, 1.442695
  %v916 = vpow.pop %v915
  %v917 = vmul.f32 %v464, 1.442695
  %v918 = vpow.pop %v917
  %v919 = vmul.f32 %v465, 1.442695
  %v920 = vpow.pop %v919
  %v921 = vmul.f32 %v466, 1.442695
  %v922 = vpow.pop %v921
  %v923 = vadd.f32 %v468, 1.0
  %v924 = vadd.f32 %v470, 1.0
  %v925 = vadd.f32 %v472, 1.0
  %v926 = vadd.f32 %v474, 1.0
  %v927 = vadd.f32 %v476, 1.0
  %v928 = vadd.f32 %v478, 1.0
  %v929 = vadd.f32 %v480, 1.0
  %v930 = vadd.f32 %v482, 1.0
  %v931 = vadd.f32 %v484, 1.0
  %v932 = vadd.f32 %v486, 1.0
  %v933 = vadd.f32 %v488, 1.0
  %v934 = vadd.f32 %v490, 1.0
  %v935 = vadd.f32 %v492, 1.0
  %v936 = vadd.f32 %v494, 1.0
  %v937 = vadd.f32 %v496, 1.0
  %v938 = vadd.f32 %v498, 1.0
  %v939 = vadd.f32 %v500, 1.0
  %v940 = vadd.f32 %v502, 1.0
  %v941 = vadd.f32 %v504, 1.0
  %v942 = vadd.f32 %v506, 1.0
  %v943 = vadd.f32 %v508, 1.0
  %v944 = vadd.f32 %v510, 1.0
  %v945 = vadd.f32 %v512, 1.0
  %v946 = vadd.f32 %v514, 1.0
  %v947 = vadd.f32 %v516, 1.0
  %v948 = vadd.f32 %v518, 1.0
  %v949 = vadd.f32 %v520, 1.0
  %v950 = vadd.f32 %v522, 1.0
  %v951 = vadd.f32 %v524, 1.0
  %v952 = vadd.f32 %v526, 1.0
  %v953 = vadd.f32 %v528, 1.0
  %v954 = vadd.f32 %v530, 1.0
  %v955 = vadd.f32 %v532, 1.0
  %v956 = vadd.f32 %v534, 1.0
  %v957 = vadd.f32 %v536, 1.0
  %v958 = vadd.f32 %v538, 1.0
  %v959 = vadd.f32 %v540, 1.0
  %v960 = vadd.f32 %v542, 1.0
  %v961 = vadd.f32 %v544, 1.0
  %v962 = vadd.f32 %v546, 1.0
  %v963 = vadd.f32 %v548, 1.0
  %v964 = vadd.f32 %v550, 1.0
  %v965 = vadd.f32 %v552, 1.0
  %v966 = vadd.f32 %v554, 1.0
  %v967 = vadd.f32 %v556, 1.0
  %v968 = vadd.f32 %v558, 1.0
  %v969 = vadd.f32 %v560, 1.0
  %v970 = vadd.f32 %v562, 1.0
  %v971 = vadd.f32 %v564, 1.0
  %v972 = vadd.f32 %v566, 1.0
  %v973 = vadd.f32 %v568, 1.0
  %v974 = vadd.f32 %v570, 1.0
  %v975 = vadd.f32 %v572, 1.0
  %v976 = vadd.f32 %v574, 1.0
  %v977 = vadd.f32 %v576, 1.0
  %v978 = vadd.f32 %v578, 1.0
  %v979 = vadd.f32 %v580, 1.0
  %v980 = vadd.f32 %v582, 1.0
  %v981 = vadd.f32 %v584, 1.0
  %v982 = vadd.f32 %v586, 1.0
  %v983 = vadd.f32 %v588, 1.0
  %v984 = vadd.f32 %v590, 1.0
  %v985 = vadd.f32 %v592, 1.0
  %v986 = vadd.f32 %v594, 1.0
  %v987 = vadd.f32 %v596, 1.0
  %v988 = vadd.f32 %v598, 1.0
  %v989 = vadd.f32 %v600, 1.0
  %v990 = vadd.f32 %v602, 1.0
  %v991 = vadd.f32 %v604, 1.0
  %v992 = vadd.f32 %v606, 1.0
  %v993 = vadd.f32 %v608, 1.0
  %v994 = vadd.f32 %v610, 1.0
  %v995 = vadd.f32 %v612, 1.0
  %v996 = vadd.f32 %v614, 1.0
  %v997 = vadd.f32 %v616, 1.0
  %v998 = vadd.f32 %v618, 1.0
  %v999 = vadd.f32 %v620, 1.0
  %v1000 = vadd.f32 %v622, 1.0
  %v1001 = vadd.f32 %v624, 1.0
  %v1002 = vadd.f32 %v626, 1.0
  %v1003 = vadd.f32 %v628, 1.0
  %v1004 = vadd.f32 %v630, 1.0
  %v1005 = vadd.f32 %v632, 1.0
  %v1006 = vadd.f32 %v634, 1.0
  %v1007 = vadd.f32 %v636, 1.0
  %v1008 = vadd.f32 %v638, 1.0
  %v1009 = vadd.f32 %v640, 1.0
  %v1010 = vadd.f32 %v642, 1.0
  %v1011 = vadd.f32 %v644, 1.0
  %v1012 = vadd.f32 %v646, 1.0
  %v1013 = vadd.f32 %v648, 1.0
  %v1014 = vadd.f32 %v650, 1.0
  %v1015 = vadd.f32 %v652, 1.0
  %v1016 = vadd.f32 %v654, 1.0
  %v1017 = vadd.f32 %v656, 1.0
  %v1018 = vadd.f32 %v658, 1.0
  %v1019 = vadd.f32 %v660, 1.0
  %v1020 = vadd.f32 %v662, 1.0
  %v1021 = vadd.f32 %v664, 1.0
  %v1022 = vadd.f32 %v666, 1.0
  %v1023 = vadd.f32 %v668, 1.0
  %v1024 = vadd.f32 %v670, 1.0
  %v1025 = vadd.f32 %v672, 1.0
  %v1026 = vadd.f32 %v674, 1.0
  %v1027 = vadd.f32 %v676, 1.0
  %v1028 = vadd.f32 %v678, 1.0
  %v1029 = vadd.f32 %v680, 1.0
  %v1030 = vadd.f32 %v682, 1.0
  %v1031 = vadd.f32 %v684, 1.0
  %v1032 = vadd.f32 %v686, 1.0
  %v1033 = vadd.f32 %v688, 1.0
  %v1034 = vadd.f32 %v690, 1.0
  %v1035 = vadd.f32 %v692, 1.0
  %v1036 = vadd.f32 %v694, 1.0
  %v1037 = vadd.f32 %v696, 1.0
  %v1038 = vadd.f32 %v698, 1.0
  %v1039 = vadd.f32 %v700, 1.0
  %v1040 = vadd.f32 %v702, 1.0
  %v1041 = vadd.f32 %v704, 1.0
  %v1042 = vadd.f32 %v706, 1.0
  %v1043 = vadd.f32 %v708, 1.0
  %v1044 = vadd.f32 %v710, 1.0
  %v1045 = vadd.f32 %v712, 1.0
  %v1046 = vadd.f32 %v714, 1.0
  %v1047 = vadd.f32 %v716, 1.0
  %v1048 = vadd.f32 %v718, 1.0
  %v1049 = vadd.f32 %v720, 1.0
  %v1050 = vadd.f32 %v722, 1.0
  %v1051 = vadd.f32 %v724, 1.0
  %v1052 = vadd.f32 %v726, 1.0
  %v1053 = vadd.f32 %v728, 1.0
  %v1054 = vadd.f32 %v730, 1.0
  %v1055 = vadd.f32 %v732, 1.0
  %v1056 = vadd.f32 %v734, 1.0
  %v1057 = vadd.f32 %v736, 1.0
  %v1058 = vadd.f32 %v738, 1.0
  %v1059 = vadd.f32 %v740, 1.0
  %v1060 = vadd.f32 %v742, 1.0
  %v1061 = vadd.f32 %v744, 1.0
  %v1062 = vadd.f32 %v746, 1.0
  %v1063 = vadd.f32 %v748, 1.0
  %v1064 = vadd.f32 %v750, 1.0
  %v1065 = vadd.f32 %v752, 1.0
  %v1066 = vadd.f32 %v754, 1.0
  %v1067 = vadd.f32 %v756, 1.0
  %v1068 = vadd.f32 %v758, 1.0
  %v1069 = vadd.f32 %v760, 1.0
  %v1070 = vadd.f32 %v762, 1.0
  %v1071 = vadd.f32 %v764, 1.0
  %v1072 = vadd.f32 %v766, 1.0
  %v1073 = vadd.f32 %v768, 1.0
  %v1074 = vadd.f32 %v770, 1.0
  %v1075 = vadd.f32 %v772, 1.0
  %v1076 = vadd.f32 %v774, 1.0
  %v1077 = vadd.f32 %v776, 1.0
  %v1078 = vadd.f32 %v778, 1.0
  %v1079 = vadd.f32 %v780, 1.0
  %v1080 = vadd.f32 %v782, 1.0
  %v1081 = vadd.f32 %v784, 1.0
  %v1082 = vadd.f32 %v786, 1.0
  %v1083 = vadd.f32 %v788, 1.0
  %v1084 = vadd.f32 %v790, 1.0
  %v1085 = vadd.f32 %v792, 1.0
  %v1086 = vadd.f32 %v794, 1.0
  %v1087 = vadd.f32 %v796, 1.0
  %v1088 = vadd.f32 %v798, 1.0
  %v1089 = vadd.f32 %v800, 1.0
  %v1090 = vadd.f32 %v802, 1.0
  %v1091 = vadd.f32 %v804, 1.0
  %v1092 = vadd.f32 %v806, 1.0
  %v1093 = vadd.f32 %v808, 1.0
  %v1094 = vadd.f32 %v810, 1.0
  %v1095 = vadd.f32 %v812, 1.0
  %v1096 = vadd.f32 %v814, 1.0
  %v1097 = vadd.f32 %v816, 1.0
  %v1098 = vadd.f32 %v818, 1.0
  %v1099 = vadd.f32 %v820, 1.0
  %v1100 = vadd.f32 %v822, 1.0
  %v1101 = vadd.f32 %v824, 1.0
  %v1102 = vadd.f32 %v826, 1.0
  %v1103 = vadd.f32 %v828, 1.0
  %v1104 = vadd.f32 %v830, 1.0
  %v1105 = vadd.f32 %v832, 1.0
  %v1106 = vadd.f32 %v834, 1.0
  %v1107 = vadd.f32 %v836, 1.0
  %v1108 = vadd.f32 %v838, 1.0
  %v1109 = vadd.f32 %v840, 1.0
  %v1110 = vadd.f32 %v842, 1.0
  %v1111 = vadd.f32 %v844, 1.0
  %v1112 = vadd.f32 %v846, 1.0
  %v1113 = vadd.f32 %v848, 1.0
  %v1114 = vadd.f32 %v850, 1.0
  %v1115 = vadd.f32 %v852, 1.0
  %v1116 = vadd.f32 %v854, 1.0
  %v1117 = vadd.f32 %v856, 1.0
  %v1118 = vadd.f32 %v858, 1.0
  %v1119 = vadd.f32 %v860, 1.0
  %v1120 = vadd.f32 %v862, 1.0
  %v1121 = vadd.f32 %v864, 1.0
  %v1122 = vadd.f32 %v866, 1.0
  %v1123 = vadd.f32 %v868, 1.0
  %v1124 = vadd.f32 %v870, 1.0
  %v1125 = vadd.f32 %v872, 1.0
  %v1126 = vadd.f32 %v874, 1.0
  %v1127 = vadd.f32 %v876, 1.0
  %v1128 = vadd.f32 %v878, 1.0
  %v1129 = vadd.f32 %v880, 1.0
  %v1130 = vadd.f32 %v882, 1.0
  %v1131 = vadd.f32 %v884, 1.0
  %v1132 = vadd.f32 %v886, 1.0
  %v1133 = vadd.f32 %v888, 1.0
  %v1134 = vadd.f32 %v890, 1.0
  %v1135 = vadd.f32 %v892, 1.0
  %v1136 = vadd.f32 %v894, 1.0
  %v1137 = vadd.f32 %v896, 1.0
  %v1138 = vadd.f32 %v898, 1.0
  %v1139 = vadd.f32 %v900, 1.0
  %v1140 = vadd.f32 %v902, 1.0
  %v1141 = vadd.f32 %v904, 1.0
  %v1142 = vadd.f32 %v906, 1.0
  %v1143 = vadd.f32 %v908, 1.0
  %v1144 = vadd.f32 %v910, 1.0
  %v1145 = vadd.f32 %v912, 1.0
  %v1146 = vadd.f32 %v914, 1.0
  %v1147 = vadd.f32 %v916, 1.0
  %v1148 = vadd.f32 %v918, 1.0
  %v1149 = vadd.f32 %v920, 1.0
  %v1150 = vadd.f32 %v922, 1.0
  %v1151 = vrcp.pop %v923
  %v1152 = vmul.f32 1.0, %v1151
  %v1153 = vrcp.pop %v924
  %v1154 = vmul.f32 1.0, %v1153
  %v1155 = vrcp.pop %v925
  %v1156 = vmul.f32 1.0, %v1155
  %v1157 = vrcp.pop %v926
  %v1158 = vmul.f32 1.0, %v1157
  %v1159 = vrcp.pop %v927
  %v1160 = vmul.f32 1.0, %v1159
  %v1161 = vrcp.pop %v928
  %v1162 = vmul.f32 1.0, %v1161
  %v1163 = vrcp.pop %v929
  %v1164 = vmul.f32 1.0, %v1163
  %v1165 = vrcp.pop %v930
  %v1166 = vmul.f32 1.0, %v1165
  %v1167 = vrcp.pop %v931
  %v1168 = vmul.f32 1.0, %v1167
  %v1169 = vrcp.pop %v932
  %v1170 = vmul.f32 1.0, %v1169
  %v1171 = vrcp.pop %v933
  %v1172 = vmul.f32 1.0, %v1171
  %v1173 = vrcp.pop %v934
  %v1174 = vmul.f32 1.0, %v1173
  %v1175 = vrcp.pop %v935
  %v1176 = vmul.f32 1.0, %v1175
  %v1177 = vrcp.pop %v936
  %v1178 = vmul.f32 1.0, %v1177
  %v1179 = vrcp.pop %v937
  %v1180 = vmul.f32 1.0, %v1179
  %v1181 = vrcp.pop %v938
  %v1182 = vmul.f32 1.0, %v1181
  %v1183 = vrcp.pop %v939
  %v1184 = vmul.f32 1.0, %v1183
  %v1185 = vrcp.pop %v940
  %v1186 = vmul.f32 1.0, %v1185
  %v1187 = vrcp.pop %v941
  %v1188 = vmul.f32 1.0, %v1187
  %v1189 = vrcp.pop %v942
  %v1190 = vmul.f32 1.0, %v1189
  %v1191 = vrcp.pop %v943
  %v1192 = vmul.f32 1.0, %v1191
  %v1193 = vrcp.pop %v944
  %v1194 = vmul.f32 1.0, %v1193
  %v1195 = vrcp.pop %v945
  %v1196 = vmul.f32 1.0, %v1195
  %v1197 = vrcp.pop %v946
  %v1198 = vmul.f32 1.0, %v1197
  %v1199 = vrcp.pop %v947
  %v1200 = vmul.f32 1.0, %v1199
  %v1201 = vrcp.pop %v948
  %v1202 = vmul.f32 1.0, %v1201
  %v1203 = vrcp.pop %v949
  %v1204 = vmul.f32 1.0, %v1203
  %v1205 = vrcp.pop %v950
  %v1206 = vmul.f32 1.0, %v1205
  %v1207 = vrcp.pop %v951
  %v1208 = vmul.f32 1.0, %v1207
  %v1209 = vrcp.pop %v952
  %v1210 = vmul.f32 1.0, %v1209
  %v1211 = vrcp.pop %v953
  %v1212 = vmul.f32 1.0, %v1211
  %v1213 = vrcp.pop %v954
  %v1214 = vmul.f32 1.0, %v1213
  %v1215 = vrcp.pop %v955
  %v1216 = vmul.f32 1.0, %v1215
  %v1217 = vrcp.pop %v956
  %v1218 = vmul.f32 1.0, %v1217
  %v1219 = vrcp.pop %v957
  %v1220 = vmul.f32 1.0, %v1219
  %v1221 = vrcp.pop %v958
  %v1222 = vmul.f32 1.0, %v1221
  %v1223 = vrcp.pop %v959
  %v1224 = vmul.f32 1.0, %v1223
  %v1225 = vrcp.pop %v960
  %v1226 = vmul.f32 1.0, %v1225
  %v1227 = vrcp.pop %v961
  %v1228 = vmul.f32 1.0, %v1227
  %v1229 = vrcp.pop %v962
  %v1230 = vmul.f32 1.0, %v1229
  %v1231 = vrcp.pop %v963
  %v1232 = vmul.f32 1.0, %v1231
  %v1233 = vrcp.pop %v964
  %v1234 = vmul.f32 1.0, %v1233
  %v1235 = vrcp.pop %v965
  %v1236 = vmul.f32 1.0, %v1235
  %v1237 = vrcp.pop %v966
  %v1238 = vmul.f32 1.0, %v1237
  %v1239 = vrcp.pop %v967
  %v1240 = vmul.f32 1.0, %v1239
  %v1241 = vrcp.pop %v968
  %v1242 = vmul.f32 1.0, %v1241
  %v1243 = vrcp.pop %v969
  %v1244 = vmul.f32 1.0, %v1243
  %v1245 = vrcp.pop %v970
  %v1246 = vmul.f32 1.0, %v1245
  %v1247 = vrcp.pop %v971
  %v1248 = vmul.f32 1.0, %v1247
  %v1249 = vrcp.pop %v972
  %v1250 = vmul.f32 1.0, %v1249
  %v1251 = vrcp.pop %v973
  %v1252 = vmul.f32 1.0, %v1251
  %v1253 = vrcp.pop %v974
  %v1254 = vmul.f32 1.0, %v1253
  %v1255 = vrcp.pop %v975
  %v1256 = vmul.f32 1.0, %v1255
  %v1257 = vrcp.pop %v976
  %v1258 = vmul.f32 1.0, %v1257
  %v1259 = vrcp.pop %v977
  %v1260 = vmul.f32 1.0, %v1259
  %v1261 = vrcp.pop %v978
  %v1262 = vmul.f32 1.0, %v1261
  %v1263 = vrcp.pop %v979
  %v1264 = vmul.f32 1.0, %v1263
  %v1265 = vrcp.pop %v980
  %v1266 = vmul.f32 1.0, %v1265
  %v1267 = vrcp.pop %v981
  %v1268 = vmul.f32 1.0, %v1267
  %v1269 = vrcp.pop %v982
  %v1270 = vmul.f32 1.0, %v1269
  %v1271 = vrcp.pop %v983
  %v1272 = vmul.f32 1.0, %v1271
  %v1273 = vrcp.pop %v984
  %v1274 = vmul.f32 1.0, %v1273
  %v1275 = vrcp.pop %v985
  %v1276 = vmul.f32 1.0, %v1275
  %v1277 = vrcp.pop %v986
  %v1278 = vmul.f32 1.0, %v1277
  %v1279 = vrcp.pop %v987
  %v1280 = vmul.f32 1.0, %v1279
  %v1281 = vrcp.pop %v988
  %v1282 = vmul.f32 1.0, %v1281
  %v1283 = vrcp.pop %v989
  %v1284 = vmul.f32 1.0, %v1283
  %v1285 = vrcp.pop %v990
  %v1286 = vmul.f32 1.0, %v1285
  %v1287 = vrcp.pop %v991
  %v1288 = vmul.f32 1.0, %v1287
  %v1289 = vrcp.pop %v992
  %v1290 = vmul.f32 1.0, %v1289
  %v1291 = vrcp.pop %v993
  %v1292 = vmul.f32 1.0, %v1291
  %v1293 = vrcp.pop %v994
  %v1294 = vmul.f32 1.0, %v1293
  %v1295 = vrcp.pop %v995
  %v1296 = vmul.f32 1.0, %v1295
  %v1297 = vrcp.pop %v996
  %v1298 = vmul.f32 1.0, %v1297
  %v1299 = vrcp.pop %v997
  %v1300 = vmul.f32 1.0, %v1299
  %v1301 = vrcp.pop %v998
  %v1302 = vmul.f32 1.0, %v1301
  %v1303 = vrcp.pop %v999
  %v1304 = vmul.f32 1.0, %v1303
  %v1305 = vrcp.pop %v1000
  %v1306 = vmul.f32 1.0, %v1305
  %v1307 = vrcp.pop %v1001
  %v1308 = vmul.f32 1.0, %v1307
  %v1309 = vrcp.pop %v1002
  %v1310 = vmul.f32 1.0, %v1309
  %v1311 = vrcp.pop %v1003
  %v1312 = vmul.f32 1.0, %v1311
  %v1313 = vrcp.pop %v1004
  %v1314 = vmul.f32 1.0, %v1313
  %v1315 = vrcp.pop %v1005
  %v1316 = vmul.f32 1.0, %v1315
  %v1317 = vrcp.pop %v1006
  %v1318 = vmul.f32 1.0, %v1317
  %v1319 = vrcp.pop %v1007
  %v1320 = vmul.f32 1.0, %v1319
  %v1321 = vrcp.pop %v1008
  %v1322 = vmul.f32 1.0, %v1321
  %v1323 = vrcp.pop %v1009
  %v1324 = vmul.f32 1.0, %v1323
  %v1325 = vrcp.pop %v1010
  %v1326 = vmul.f32 1.0, %v1325
  %v1327 = vrcp.pop %v1011
  %v1328 = vmul.f32 1.0, %v1327
  %v1329 = vrcp.pop %v1012
  %v1330 = vmul.f32 1.0, %v1329
  %v1331 = vrcp.pop %v1013
  %v1332 = vmul.f32 1.0, %v1331
  %v1333 = vrcp.pop %v1014
  %v1334 = vmul.f32 1.0, %v1333
  %v1335 = vrcp.pop %v1015
  %v1336 = vmul.f32 1.0, %v1335
  %v1337 = vrcp.pop %v1016
  %v1338 = vmul.f32 1.0, %v1337
  %v1339 = vrcp.pop %v1017
  %v1340 = vmul.f32 1.0, %v1339
  %v1341 = vrcp.pop %v1018
  %v1342 = vmul.f32 1.0, %v1341
  %v1343 = vrcp.pop %v1019
  %v1344 = vmul.f32 1.0, %v1343
  %v1345 = vrcp.pop %v1020
  %v1346 = vmul.f32 1.0, %v1345
  %v1347 = vrcp.pop %v1021
  %v1348 = vmul.f32 1.0, %v1347
  %v1349 = vrcp.pop %v1022
  %v1350 = vmul.f32 1.0, %v1349
  %v1351 = vrcp.pop %v1023
  %v1352 = vmul.f32 1.0, %v1351
  %v1353 = vrcp.pop %v1024
  %v1354 = vmul.f32 1.0, %v1353
  %v1355 = vrcp.pop %v1025
  %v1356 = vmul.f32 1.0, %v1355
  %v1357 = vrcp.pop %v1026
  %v1358 = vmul.f32 1.0, %v1357
  %v1359 = vrcp.pop %v1027
  %v1360 = vmul.f32 1.0, %v1359
  %v1361 = vrcp.pop %v1028
  %v1362 = vmul.f32 1.0, %v1361
  %v1363 = vrcp.pop %v1029
  %v1364 = vmul.f32 1.0, %v1363
  %v1365 = vrcp.pop %v1030
  %v1366 = vmul.f32 1.0, %v1365
  %v1367 = vrcp.pop %v1031
  %v1368 = vmul.f32 1.0, %v1367
  %v1369 = vrcp.pop %v1032
  %v1370 = vmul.f32 1.0, %v1369
  %v1371 = vrcp.pop %v1033
  %v1372 = vmul.f32 1.0, %v1371
  %v1373 = vrcp.pop %v1034
  %v1374 = vmul.f32 1.0, %v1373
  %v1375 = vrcp.pop %v1035
  %v1376 = vmul.f32 1.0, %v1375
  %v1377 = vrcp.pop %v1036
  %v1378 = vmul.f32 1.0, %v1377
  %v1379 = vrcp.pop %v1037
  %v1380 = vmul.f32 1.0, %v1379
  %v1381 = vrcp.pop %v1038
  %v1382 = vmul.f32 1.0, %v1381
  %v1383 = vrcp.pop %v1039
  %v1384 = vmul.f32 1.0, %v1383
  %v1385 = vrcp.pop %v1040
  %v1386 = vmul.f32 1.0, %v1385
  %v1387 = vrcp.pop %v1041
  %v1388 = vmul.f32 1.0, %v1387
  %v1389 = vrcp.pop %v1042
  %v1390 = vmul.f32 1.0, %v1389
  %v1391 = vrcp.pop %v1043
  %v1392 = vmul.f32 1.0, %v1391
  %v1393 = vrcp.pop %v1044
  %v1394 = vmul.f32 1.0, %v1393
  %v1395 = vrcp.pop %v1045
  %v1396 = vmul.f32 1.0, %v1395
  %v1397 = vrcp.pop %v1046
  %v1398 = vmul.f32 1.0, %v1397
  %v1399 = vrcp.pop %v1047
  %v1400 = vmul.f32 1.0, %v1399
  %v1401 = vrcp.pop %v1048
  %v1402 = vmul.f32 1.0, %v1401
  %v1403 = vrcp.pop %v1049
  %v1404 = vmul.f32 1.0, %v1403
  %v1405 = vrcp.pop %v1050
  %v1406 = vmul.f32 1.0, %v1405
  %v1407 = vrcp.pop %v1051
  %v1408 = vmul.f32 1.0, %v1407
  %v1409 = vrcp.pop %v1052
  %v1410 = vmul.f32 1.0, %v1409
  %v1411 = vrcp.pop %v1053
  %v1412 = vmul.f32 1.0, %v1411
  %v1413 = vrcp.pop %v1054
  %v1414 = vmul.f32 1.0, %v1413
  %v1415 = vrcp.pop %v1055
  %v1416 = vmul.f32 1.0, %v1415
  %v1417 = vrcp.pop %v1056
  %v1418 = vmul.f32 1.0, %v1417
  %v1419 = vrcp.pop %v1057
  %v1420 = vmul.f32 1.0, %v1419
  %v1421 = vrcp.pop %v1058
  %v1422 = vmul.f32 1.0, %v1421
  %v1423 = vrcp.pop %v1059
  %v1424 = vmul.f32 1.0, %v1423
  %v1425 = vrcp.pop %v1060
  %v1426 = vmul.f32 1.0, %v1425
  %v1427 = vrcp.pop %v1061
  %v1428 = vmul.f32 1.0, %v1427
  %v1429 = vrcp.pop %v1062
  %v1430 = vmul.f32 1.0, %v1429
  %v1431 = vrcp.pop %v1063
  %v1432 = vmul.f32 1.0, %v1431
  %v1433 = vrcp.pop %v1064
  %v1434 = vmul.f32 1.0, %v1433
  %v1435 = vrcp.pop %v1065
  %v1436 = vmul.f32 1.0, %v1435
  %v1437 = vrcp.pop %v1066
  %v1438 = vmul.f32 1.0, %v1437
  %v1439 = vrcp.pop %v1067
  %v1440 = vmul.f32 1.0, %v1439
  %v1441 = vrcp.pop %v1068
  %v1442 = vmul.f32 1.0, %v1441
  %v1443 = vrcp.pop %v1069
  %v1444 = vmul.f32 1.0, %v1443
  %v1445 = vrcp.pop %v1070
  %v1446 = vmul.f32 1.0, %v1445
  %v1447 = vrcp.pop %v1071
  %v1448 = vmul.f32 1.0, %v1447
  %v1449 = vrcp.pop %v1072
  %v1450 = vmul.f32 1.0, %v1449
  %v1451 = vrcp.pop %v1073
  %v1452 = vmul.f32 1.0, %v1451
  %v1453 = vrcp.pop %v1074
  %v1454 = vmul.f32 1.0, %v1453
  %v1455 = vrcp.pop %v1075
  %v1456 = vmul.f32 1.0, %v1455
  %v1457 = vrcp.pop %v1076
  %v1458 = vmul.f32 1.0, %v1457
  %v1459 = vrcp.pop %v1077
  %v1460 = vmul.f32 1.0, %v1459
  %v1461 = vrcp.pop %v1078
  %v1462 = vmul.f32 1.0, %v1461
  %v1463 = vrcp.pop %v1079
  %v1464 = vmul.f32 1.0, %v1463
  %v1465 = vrcp.pop %v1080
  %v1466 = vmul.f32 1.0, %v1465
  %v1467 = vrcp.pop %v1081
  %v1468 = vmul.f32 1.0, %v1467
  %v1469 = vrcp.pop %v1082
  %v1470 = vmul.f32 1.0, %v1469
  %v1471 = vrcp.pop %v1083
  %v1472 = vmul.f32 1.0, %v1471
  %v1473 = vrcp.pop %v1084
  %v1474 = vmul.f32 1.0, %v1473
  %v1475 = vrcp.pop %v1085
  %v1476 = vmul.f32 1.0, %v1475
  %v1477 = vrcp.pop %v1086
  %v1478 = vmul.f32 1.0, %v1477
  %v1479 = vrcp.pop %v1087
  %v1480 = vmul.f32 1.0, %v1479
  %v1481 = vrcp.pop %v1088
  %v1482 = vmul.f32 1.0, %v1481
  %v1483 = vrcp.pop %v1089
  %v1484 = vmul.f32 1.0, %v1483
  %v1485 = vrcp.pop %v1090
  %v1486 = vmul.f32 1.0, %v1485
  %v1487 = vrcp.pop %v1091
  %v1488 = vmul.f32 1.0, %v1487
  %v1489 = vrcp.pop %v1092
  %v1490 = vmul.f32 1.0, %v1489
  %v1491 = vrcp.pop %v1093
  %v1492 = vmul.f32 1.0, %v1491
  %v1493 = vrcp.pop %v1094
  %v1494 = vmul.f32 1.0, %v1493
  %v1495 = vrcp.pop %v1095
  %v1496 = vmul.f32 1.0, %v1495
  %v1497 = vrcp.pop %v1096
  %v1498 = vmul.f32 1.0, %v1497
  %v1499 = vrcp.pop %v1097
  %v1500 = vmul.f32 1.0, %v1499
  %v1501 = vrcp.pop %v1098
  %v1502 = vmul.f32 1.0, %v1501
  %v1503 = vrcp.pop %v1099
  %v1504 = vmul.f32 1.0, %v1503
  %v1505 = vrcp.pop %v1100
  %v1506 = vmul.f32 1.0, %v1505
  %v1507 = vrcp.pop %v1101
  %v1508 = vmul.f32 1.0, %v1507
  %v1509 = vrcp.pop %v1102
  %v1510 = vmul.f32 1.0, %v1509
  %v1511 = vrcp.pop %v1103
  %v1512 = vmul.f32 1.0, %v1511
  %v1513 = vrcp.pop %v1104
  %v1514 = vmul.f32 1.0, %v1513
  %v1515 = vrcp.pop %v1105
  %v1516 = vmul.f32 1.0, %v1515
  %v1517 = vrcp.pop %v1106
  %v1518 = vmul.f32 1.0, %v1517
  %v1519 = vrcp.pop %v1107
  %v1520 = vmul.f32 1.0, %v1519
  %v1521 = vrcp.pop %v1108
  %v1522 = vmul.f32 1.0, %v1521
  %v1523 = vrcp.pop %v1109
  %v1524 = vmul.f32 1.0, %v1523
  %v1525 = vrcp.pop %v1110
  %v1526 = vmul.f32 1.0, %v1525
  %v1527 = vrcp.pop %v1111
  %v1528 = vmul.f32 1.0, %v1527
  %v1529 = vrcp.pop %v1112
  %v1530 = vmul.f32 1.0, %v1529
  %v1531 = vrcp.pop %v1113
  %v1532 = vmul.f32 1.0, %v1531
  %v1533 = vrcp.pop %v1114
  %v1534 = vmul.f32 1.0, %v1533
  %v1535 = vrcp.pop %v1115
  %v1536 = vmul.f32 1.0, %v1535
  %v1537 = vrcp.pop %v1116
  %v1538 = vmul.f32 1.0, %v1537
  %v1539 = vrcp.pop %v1117
  %v1540 = vmul.f32 1.0, %v1539
  %v1541 = vrcp.pop %v1118
  %v1542 = vmul.f32 1.0, %v1541
  %v1543 = vrcp.pop %v1119
  %v1544 = vmul.f32 1.0, %v1543
  %v1545 = vrcp.pop %v1120
  %v1546 = vmul.f32 1.0, %v1545
  %v1547 = vrcp.pop %v1121
  %v1548 = vmul.f32 1.0, %v1547
  %v1549 = vrcp.pop %v1122
  %v1550 = vmul.f32 1.0, %v1549
  %v1551 = vrcp.pop %v1123
  %v1552 = vmul.f32 1.0, %v1551
  %v1553 = vrcp.pop %v1124
  %v1554 = vmul.f32 1.0, %v1553
  %v1555 = vrcp.pop %v1125
  %v1556 = vmul.f32 1.0, %v1555
  %v1557 = vrcp.pop %v1126
  %v1558 = vmul.f32 1.0, %v1557
  %v1559 = vrcp.pop %v1127
  %v1560 = vmul.f32 1.0, %v1559
  %v1561 = vrcp.pop %v1128
  %v1562 = vmul.f32 1.0, %v1561
  %v1563 = vrcp.pop %v1129
  %v1564 = vmul.f32 1.0, %v1563
  %v1565 = vrcp.pop %v1130
  %v1566 = vmul.f32 1.0, %v1565
  %v1567 = vrcp.pop %v1131
  %v1568 = vmul.f32 1.0, %v1567
  %v1569 = vrcp.pop %v1132
  %v1570 = vmul.f32 1.0, %v1569
  %v1571 = vrcp.pop %v1133
  %v1572 = vmul.f32 1.0, %v1571
  %v1573 = vrcp.pop %v1134
  %v1574 = vmul.f32 1.0, %v1573
  %v1575 = vrcp.pop %v1135
  %v1576 = vmul.f32 1.0, %v1575
  %v1577 = vrcp.pop %v1136
  %v1578 = vmul.f32 1.0, %v1577
  %v1579 = vrcp.pop %v1137
  %v1580 = vmul.f32 1.0, %v1579
  %v1581 = vrcp.pop %v1138
  %v1582 = vmul.f32 1.0, %v1581
  %v1583 = vrcp.pop %v1139
  %v1584 = vmul.f32 1.0, %v1583
  %v1585 = vrcp.pop %v1140
  %v1586 = vmul.f32 1.0, %v1585
  %v1587 = vrcp.pop %v1141
  %v1588 = vmul.f32 1.0, %v1587
  %v1589 = vrcp.pop %v1142
  %v1590 = vmul.f32 1.0, %v1589
  %v1591 = vrcp.pop %v1143
  %v1592 = vmul.f32 1.0, %v1591
  %v1593 = vrcp.pop %v1144
  %v1594 = vmul.f32 1.0, %v1593
  %v1595 = vrcp.pop %v1145
  %v1596 = vmul.f32 1.0, %v1595
  %v1597 = vrcp.pop %v1146
  %v1598 = vmul.f32 1.0, %v1597
  %v1599 = vrcp.pop %v1147
  %v1600 = vmul.f32 1.0, %v1599
  %v1601 = vrcp.pop %v1148
  %v1602 = vmul.f32 1.0, %v1601
  %v1603 = vrcp.pop %v1149
  %v1604 = vmul.f32 1.0, %v1603
  %v1605 = vrcp.pop %v1150
  %v1606 = vmul.f32 1.0, %v1605
  %v1607 = vld [vmem:[%s1] sm:$0xff]
  %v1608 = vld [vmem:[%s1 + $0x8] sm:$0xff]
  %v1609 = vld [vmem:[%s1 + $0x10] sm:$0xff]
  %v1610 = vld [vmem:[%s1 + $0x18] sm:$0xff]
  %v1611 = vld [vmem:[%s1 + $0x20] sm:$0xff]
  %v1612 = vld [vmem:[%s1 + $0x28] sm:$0xff]
  %v1613 = vld [vmem:[%s1 + $0x30] sm:$0xff]
  %v1614 = vld [vmem:[%s1 + $0x38] sm:$0xff]
  %v1615 = vld [vmem:[%s1 + $0x40] sm:$0xff]
  %v1616 = vld [vmem:[%s1 + $0x48] sm:$0xff]
  %v1617 = vld [vmem:[%s1 + $0x50] sm:$0xff]
  %v1618 = vld [vmem:[%s1 + $0x58] sm:$0xff]
  %v1619 = vld [vmem:[%s1 + $0x60] sm:$0xff]
  %v1620 = vld [vmem:[%s1 + $0x68] sm:$0xff]
  %v1621 = vld [vmem:[%s1 + $0x70] sm:$0xff]
  %v1622 = vld [vmem:[%s1 + $0x78] sm:$0xff]
  %v1623 = vld [vmem:[%s1 + $0x80] sm:$0xff]
  %v1624 = vld [vmem:[%s1 + $0x88] sm:$0xff]
  %v1625 = vld [vmem:[%s1 + $0x90] sm:$0xff]
  %v1626 = vld [vmem:[%s1 + $0x98] sm:$0xff]
  %v1627 = vld [vmem:[%s1 + $0xa0] sm:$0xff]
  %v1628 = vld [vmem:[%s1 + $0xa8] sm:$0xff]
  %v1629 = vld [vmem:[%s1 + $0xb0] sm:$0xff]
  %v1630 = vld [vmem:[%s1 + $0xb8] sm:$0xff]
  %v1631 = vld [vmem:[%s1 + $0xc0] sm:$0xff]
  %v1632 = vld [vmem:[%s1 + $0xc8] sm:$0xff]
  %v1633 = vld [vmem:[%s1 + $0xd0] sm:$0xff]
  %v1634 = vld [vmem:[%s1 + $0xd8] sm:$0xff]
  %v1635 = vld [vmem:[%s1 + $0xe0] sm:$0xff]
  %v1636 = vld [vmem:[%s1 + $0xe8] sm:$0xff]
  %v1637 = vld [vmem:[%s1 + $0xf0] sm:$0xff]
  %v1638 = vld [vmem:[%s1 + $0xf8] sm:$0xff]
  %v1639 = vld [vmem:[%s1 + $0x100] sm:$0xff]
  %v1640 = vld [vmem:[%s1 + $0x108] sm:$0xff]
  %v1641 = vld [vmem:[%s1 + $0x110] sm:$0xff]
  %v1642 = vld [vmem:[%s1 + $0x118] sm:$0xff]
  %v1643 = vld [vmem:[%s1 + $0x120] sm:$0xff]
  %v1644 = vld [vmem:[%s1 + $0x128] sm:$0xff]
  %v1645 = vld [vmem:[%s1 + $0x130] sm:$0xff]
  %v1646 = vld [vmem:[%s1 + $0x138] sm:$0xff]
  %v1647 = vld [vmem:[%s1 + $0x140] sm:$0xff]
  %v1648 = vld [vmem:[%s1 + $0x148] sm:$0xff]
  %v1649 = vld [vmem:[%s1 + $0x150] sm:$0xff]
  %v1650 = vld [vmem:[%s1 + $0x158] sm:$0xff]
  %v1651 = vld [vmem:[%s1 + $0x160] sm:$0xff]
  %v1652 = vld [vmem:[%s1 + $0x168] sm:$0xff]
  %v1653 = vld [vmem:[%s1 + $0x170] sm:$0xff]
  %v1654 = vld [vmem:[%s1 + $0x178] sm:$0xff]
  %v1655 = vld [vmem:[%s1 + $0x180] sm:$0xff]
  %v1656 = vld [vmem:[%s1 + $0x188] sm:$0xff]
  %v1657 = vld [vmem:[%s1 + $0x190] sm:$0xff]
  %v1658 = vld [vmem:[%s1 + $0x198] sm:$0xff]
  %v1659 = vld [vmem:[%s1 + $0x1a0] sm:$0xff]
  %v1660 = vld [vmem:[%s1 + $0x1a8] sm:$0xff]
  %v1661 = vld [vmem:[%s1 + $0x1b0] sm:$0xff]
  %v1662 = vld [vmem:[%s1 + $0x1b8] sm:$0xff]
  %v1663 = vld [vmem:[%s1 + $0x1c0] sm:$0xff]
  %v1664 = vld [vmem:[%s1 + $0x1c8] sm:$0xff]
  %v1665 = vld [vmem:[%s1 + $0x1d0] sm:$0xff]
  %v1666 = vld [vmem:[%s1 + $0x1d8] sm:$0xff]
  %v1667 = vld [vmem:[%s1 + $0x1e0] sm:$0xff]
  %v1668 = vld [vmem:[%s1 + $0x1e8] sm:$0xff]
  %v1669 = vld [vmem:[%s1 + $0x1f0] sm:$0xff]
  %v1670 = vld [vmem:[%s1 + $0x1f8] sm:$0xff]
  %v1671 = vld [vmem:[%s1 + $0x200] sm:$0xff]
  %v1672 = vld [vmem:[%s1 + $0x208] sm:$0xff]
  %v1673 = vld [vmem:[%s1 + $0x210] sm:$0xff]
  %v1674 = vld [vmem:[%s1 + $0x218] sm:$0xff]
  %v1675 = vld [vmem:[%s1 + $0x220] sm:$0xff]
  %v1676 = vld [vmem:[%s1 + $0x228] sm:$0xff]
  %v1677 = vld [vmem:[%s1 + $0x230] sm:$0xff]
  %v1678 = vld [vmem:[%s1 + $0x238] sm:$0xff]
  %v1679 = vld [vmem:[%s1 + $0x240] sm:$0xff]
  %v1680 = vld [vmem:[%s1 + $0x248] sm:$0xff]
  %v1681 = vld [vmem:[%s1 + $0x250] sm:$0xff]
  %v1682 = vld [vmem:[%s1 + $0x258] sm:$0xff]
  %v1683 = vld [vmem:[%s1 + $0x260] sm:$0xff]
  %v1684 = vld [vmem:[%s1 + $0x268] sm:$0xff]
  %v1685 = vld [vmem:[%s1 + $0x270] sm:$0xff]
  %v1686 = vld [vmem:[%s1 + $0x278] sm:$0xff]
  %v1687 = vld [vmem:[%s1 + $0x280] sm:$0xff]
  %v1688 = vld [vmem:[%s1 + $0x288] sm:$0xff]
  %v1689 = vld [vmem:[%s1 + $0x290] sm:$0xff]
  %v1690 = vld [vmem:[%s1 + $0x298] sm:$0xff]
  %v1691 = vld [vmem:[%s1 + $0x2a0] sm:$0xff]
  %v1692 = vld [vmem:[%s1 + $0x2a8] sm:$0xff]
  %v1693 = vld [vmem:[%s1 + $0x2b0] sm:$0xff]
  %v1694 = vld [vmem:[%s1 + $0x2b8] sm:$0xff]
  %v1695 = vld [vmem:[%s1 + $0x2c0] sm:$0xff]
  %v1696 = vld [vmem:[%s1 + $0x2c8] sm:$0xff]
  %v1697 = vld [vmem:[%s1 + $0x2d0] sm:$0xff]
  %v1698 = vld [vmem:[%s1 + $0x2d8] sm:$0xff]
  %v1699 = vld [vmem:[%s1 + $0x2e0] sm:$0xff]
  %v1700 = vld [vmem:[%s1 + $0x2e8] sm:$0xff]
  %v1701 = vld [vmem:[%s1 + $0x2f0] sm:$0xff]
  %v1702 = vld [vmem:[%s1 + $0x2f8] sm:$0xff]
  %v1703 = vld [vmem:[%s1 + $0x300] sm:$0xff]
  %v1704 = vld [vmem:[%s1 + $0x308] sm:$0xff]
  %v1705 = vld [vmem:[%s1 + $0x310] sm:$0xff]
  %v1706 = vld [vmem:[%s1 + $0x318] sm:$0xff]
  %v1707 = vld [vmem:[%s1 + $0x320] sm:$0xff]
  %v1708 = vld [vmem:[%s1 + $0x328] sm:$0xff]
  %v1709 = vld [vmem:[%s1 + $0x330] sm:$0xff]
  %v1710 = vld [vmem:[%s1 + $0x338] sm:$0xff]
  %v1711 = vld [vmem:[%s1 + $0x340] sm:$0xff]
  %v1712 = vld [vmem:[%s1 + $0x348] sm:$0xff]
  %v1713 = vld [vmem:[%s1 + $0x350] sm:$0xff]
  %v1714 = vld [vmem:[%s1 + $0x358] sm:$0xff]
  %v1715 = vld [vmem:[%s1 + $0x360] sm:$0xff]
  %v1716 = vld [vmem:[%s1 + $0x368] sm:$0xff]
  %v1717 = vld [vmem:[%s1 + $0x370] sm:$0xff]
  %v1718 = vld [vmem:[%s1 + $0x378] sm:$0xff]
  %v1719 = vld [vmem:[%s1 + $0x380] sm:$0xff]
  %v1720 = vld [vmem:[%s1 + $0x388] sm:$0xff]
  %v1721 = vld [vmem:[%s1 + $0x390] sm:$0xff]
  %v1722 = vld [vmem:[%s1 + $0x398] sm:$0xff]
  %v1723 = vld [vmem:[%s1 + $0x3a0] sm:$0xff]
  %v1724 = vld [vmem:[%s1 + $0x3a8] sm:$0xff]
  %v1725 = vld [vmem:[%s1 + $0x3b0] sm:$0xff]
  %v1726 = vld [vmem:[%s1 + $0x3b8] sm:$0xff]
  %v1727 = vld [vmem:[%s1 + $0x3c0] sm:$0xff]
  %v1728 = vld [vmem:[%s1 + $0x3c8] sm:$0xff]
  %v1729 = vld [vmem:[%s1 + $0x3d0] sm:$0xff]
  %v1730 = vld [vmem:[%s1 + $0x3d8] sm:$0xff]
  %v1731 = vld [vmem:[%s1 + $0x3e0] sm:$0xff]
  %v1732 = vld [vmem:[%s1 + $0x3e8] sm:$0xff]
  %v1733 = vld [vmem:[%s1 + $0x3f0] sm:$0xff]
  %v1734 = vld [vmem:[%s1 + $0x3f8] sm:$0xff]
  %v1735 = vld [vmem:[%s1 + $0x400] sm:$0xff]
  %v1736 = vld [vmem:[%s1 + $0x408] sm:$0xff]
  %v1737 = vld [vmem:[%s1 + $0x410] sm:$0xff]
  %v1738 = vld [vmem:[%s1 + $0x418] sm:$0xff]
  %v1739 = vld [vmem:[%s1 + $0x420] sm:$0xff]
  %v1740 = vld [vmem:[%s1 + $0x428] sm:$0xff]
  %v1741 = vld [vmem:[%s1 + $0x430] sm:$0xff]
  %v1742 = vld [vmem:[%s1 + $0x438] sm:$0xff]
  %v1743 = vld [vmem:[%s1 + $0x440] sm:$0xff]
  %v1744 = vld [vmem:[%s1 + $0x448] sm:$0xff]
  %v1745 = vld [vmem:[%s1 + $0x450] sm:$0xff]
  %v1746 = vld [vmem:[%s1 + $0x458] sm:$0xff]
  %v1747 = vld [vmem:[%s1 + $0x460] sm:$0xff]
  %v1748 = vld [vmem:[%s1 + $0x468] sm:$0xff]
  %v1749 = vld [vmem:[%s1 + $0x470] sm:$0xff]
  %v1750 = vld [vmem:[%s1 + $0x478] sm:$0xff]
  %v1751 = vld [vmem:[%s1 + $0x480] sm:$0xff]
  %v1752 = vld [vmem:[%s1 + $0x488] sm:$0xff]
  %v1753 = vld [vmem:[%s1 + $0x490] sm:$0xff]
  %v1754 = vld [vmem:[%s1 + $0x498] sm:$0xff]
  %v1755 = vld [vmem:[%s1 + $0x4a0] sm:$0xff]
  %v1756 = vld [vmem:[%s1 + $0x4a8] sm:$0xff]
  %v1757 = vld [vmem:[%s1 + $0x4b0] sm:$0xff]
  %v1758 = vld [vmem:[%s1 + $0x4b8] sm:$0xff]
  %v1759 = vld [vmem:[%s1 + $0x4c0] sm:$0xff]
  %v1760 = vld [vmem:[%s1 + $0x4c8] sm:$0xff]
  %v1761 = vld [vmem:[%s1 + $0x4d0] sm:$0xff]
  %v1762 = vld [vmem:[%s1 + $0x4d8] sm:$0xff]
  %v1763 = vld [vmem:[%s1 + $0x4e0] sm:$0xff]
  %v1764 = vld [vmem:[%s1 + $0x4e8] sm:$0xff]
  %v1765 = vld [vmem:[%s1 + $0x4f0] sm:$0xff]
  %v1766 = vld [vmem:[%s1 + $0x4f8] sm:$0xff]
  %v1767 = vld [vmem:[%s1 + $0x500] sm:$0xff]
  %v1768 = vld [vmem:[%s1 + $0x508] sm:$0xff]
  %v1769 = vld [vmem:[%s1 + $0x510] sm:$0xff]
  %v1770 = vld [vmem:[%s1 + $0x518] sm:$0xff]
  %v1771 = vld [vmem:[%s1 + $0x520] sm:$0xff]
  %v1772 = vld [vmem:[%s1 + $0x528] sm:$0xff]
  %v1773 = vld [vmem:[%s1 + $0x530] sm:$0xff]
  %v1774 = vld [vmem:[%s1 + $0x538] sm:$0xff]
  %v1775 = vld [vmem:[%s1 + $0x540] sm:$0xff]
  %v1776 = vld [vmem:[%s1 + $0x548] sm:$0xff]
  %v1777 = vld [vmem:[%s1 + $0x550] sm:$0xff]
  %v1778 = vld [vmem:[%s1 + $0x558] sm:$0xff]
  %v1779 = vld [vmem:[%s1 + $0x560] sm:$0xff]
  %v1780 = vld [vmem:[%s1 + $0x568] sm:$0xff]
  %v1781 = vld [vmem:[%s1 + $0x570] sm:$0xff]
  %v1782 = vld [vmem:[%s1 + $0x578] sm:$0xff]
  %v1783 = vld [vmem:[%s1 + $0x580] sm:$0xff]
  %v1784 = vld [vmem:[%s1 + $0x588] sm:$0xff]
  %v1785 = vld [vmem:[%s1 + $0x590] sm:$0xff]
  %v1786 = vld [vmem:[%s1 + $0x598] sm:$0xff]
  %v1787 = vld [vmem:[%s1 + $0x5a0] sm:$0xff]
  %v1788 = vld [vmem:[%s1 + $0x5a8] sm:$0xff]
  %v1789 = vld [vmem:[%s1 + $0x5b0] sm:$0xff]
  %v1790 = vld [vmem:[%s1 + $0x5b8] sm:$0xff]
  %v1791 = vld [vmem:[%s1 + $0x5c0] sm:$0xff]
  %v1792 = vld [vmem:[%s1 + $0x5c8] sm:$0xff]
  %v1793 = vld [vmem:[%s1 + $0x5d0] sm:$0xff]
  %v1794 = vld [vmem:[%s1 + $0x5d8] sm:$0xff]
  %v1795 = vld [vmem:[%s1 + $0x5e0] sm:$0xff]
  %v1796 = vld [vmem:[%s1 + $0x5e8] sm:$0xff]
  %v1797 = vld [vmem:[%s1 + $0x5f0] sm:$0xff]
  %v1798 = vld [vmem:[%s1 + $0x5f8] sm:$0xff]
  %v1799 = vld [vmem:[%s1 + $0x600] sm:$0xff]
  %v1800 = vld [vmem:[%s1 + $0x608] sm:$0xff]
  %v1801 = vld [vmem:[%s1 + $0x610] sm:$0xff]
  %v1802 = vld [vmem:[%s1 + $0x618] sm:$0xff]
  %v1803 = vld [vmem:[%s1 + $0x620] sm:$0xff]
  %v1804 = vld [vmem:[%s1 + $0x628] sm:$0xff]
  %v1805 = vld [vmem:[%s1 + $0x630] sm:$0xff]
  %v1806 = vld [vmem:[%s1 + $0x638] sm:$0xff]
  %v1807 = vld [vmem:[%s1 + $0x640] sm:$0xff]
  %v1808 = vld [vmem:[%s1 + $0x648] sm:$0xff]
  %v1809 = vld [vmem:[%s1 + $0x650] sm:$0xff]
  %v1810 = vld [vmem:[%s1 + $0x658] sm:$0xff]
  %v1811 = vld [vmem:[%s1 + $0x660] sm:$0xff]
  %v1812 = vld [vmem:[%s1 + $0x668] sm:$0xff]
  %v1813 = vld [vmem:[%s1 + $0x670] sm:$0xff]
  %v1814 = vld [vmem:[%s1 + $0x678] sm:$0xff]
  %v1815 = vld [vmem:[%s1 + $0x680] sm:$0xff]
  %v1816 = vld [vmem:[%s1 + $0x688] sm:$0xff]
  %v1817 = vld [vmem:[%s1 + $0x690] sm:$0xff]
  %v1818 = vld [vmem:[%s1 + $0x698] sm:$0xff]
  %v1819 = vld [vmem:[%s1 + $0x6a0] sm:$0xff]
  %v1820 = vld [vmem:[%s1 + $0x6a8] sm:$0xff]
  %v1821 = vld [vmem:[%s1 + $0x6b0] sm:$0xff]
  %v1822 = vld [vmem:[%s1 + $0x6b8] sm:$0xff]
  %v1823 = vld [vmem:[%s1 + $0x6c0] sm:$0xff]
  %v1824 = vld [vmem:[%s1 + $0x6c8] sm:$0xff]
  %v1825 = vld [vmem:[%s1 + $0x6d0] sm:$0xff]
  %v1826 = vld [vmem:[%s1 + $0x6d8] sm:$0xff]
  %v1827 = vld [vmem:[%s1 + $0x6e0] sm:$0xff]
  %v1828 = vld [vmem:[%s1 + $0x6e8] sm:$0xff]
  %v1829 = vld [vmem:[%s1 + $0x6f0] sm:$0xff]
  %v1830 = vld [vmem:[%s1 + $0x6f8] sm:$0xff]
  %v1831 = vld [vmem:[%s1 + $0x700] sm:$0xff]
  %v1832 = vld [vmem:[%s1 + $0x708] sm:$0xff]
  %v1833 = vld [vmem:[%s1 + $0x710] sm:$0xff]
  %v1834 = vld [vmem:[%s1 + $0x718] sm:$0xff]
  %1836 = vset.pattern.permute.xlu0 0
  %1837 = vperm.xlu0 %1836, %v1152
  %v1838 = vpop.permute.xlu0 %1837
  %1841 = vset.pattern.permute.xlu0 0
  %1842 = vperm.xlu0 %1841, %v1154
  %v1843 = vpop.permute.xlu0 %1842
  %1846 = vset.pattern.permute.xlu0 0
  %1847 = vperm.xlu0 %1846, %v1156
  %v1848 = vpop.permute.xlu0 %1847
  %1851 = vset.pattern.permute.xlu0 0
  %1852 = vperm.xlu0 %1851, %v1158
  %v1853 = vpop.permute.xlu0 %1852
  %1856 = vset.pattern.permute.xlu0 0
  %1857 = vperm.xlu0 %1856, %v1160
  %v1858 = vpop.permute.xlu0 %1857
  %1861 = vset.pattern.permute.xlu0 0
  %1862 = vperm.xlu0 %1861, %v1162
  %v1863 = vpop.permute.xlu0 %1862
  %1866 = vset.pattern.permute.xlu0 0
  %1867 = vperm.xlu0 %1866, %v1164
  %v1868 = vpop.permute.xlu0 %1867
  %1871 = vset.pattern.permute.xlu0 0
  %1872 = vperm.xlu0 %1871, %v1166
  %v1873 = vpop.permute.xlu0 %1872
  %1876 = vset.pattern.permute.xlu0 0
  %1877 = vperm.xlu0 %1876, %v1168
  %v1878 = vpop.permute.xlu0 %1877
  %1881 = vset.pattern.permute.xlu0 0
  %1882 = vperm.xlu0 %1881, %v1170
  %v1883 = vpop.permute.xlu0 %1882
  %1886 = vset.pattern.permute.xlu0 0
  %1887 = vperm.xlu0 %1886, %v1172
  %v1888 = vpop.permute.xlu0 %1887
  %1891 = vset.pattern.permute.xlu0 0
  %1892 = vperm.xlu0 %1891, %v1174
  %v1893 = vpop.permute.xlu0 %1892
  %1896 = vset.pattern.permute.xlu0 0
  %1897 = vperm.xlu0 %1896, %v1176
  %v1898 = vpop.permute.xlu0 %1897
  %1901 = vset.pattern.permute.xlu0 0
  %1902 = vperm.xlu0 %1901, %v1178
  %v1903 = vpop.permute.xlu0 %1902
  %1906 = vset.pattern.permute.xlu0 0
  %1907 = vperm.xlu0 %1906, %v1180
  %v1908 = vpop.permute.xlu0 %1907
  %1911 = vset.pattern.permute.xlu0 0
  %1912 = vperm.xlu0 %1911, %v1182
  %v1913 = vpop.permute.xlu0 %1912
  %1916 = vset.pattern.permute.xlu0 0
  %1917 = vperm.xlu0 %1916, %v1184
  %v1918 = vpop.permute.xlu0 %1917
  %1921 = vset.pattern.permute.xlu0 0
  %1922 = vperm.xlu0 %1921, %v1186
  %v1923 = vpop.permute.xlu0 %1922
  %1926 = vset.pattern.permute.xlu0 0
  %1927 = vperm.xlu0 %1926, %v1188
  %v1928 = vpop.permute.xlu0 %1927
  %1931 = vset.pattern.permute.xlu0 0
  %1932 = vperm.xlu0 %1931, %v1190
  %v1933 = vpop.permute.xlu0 %1932
  %1936 = vset.pattern.permute.xlu0 0
  %1937 = vperm.xlu0 %1936, %v1192
  %v1938 = vpop.permute.xlu0 %1937
  %1941 = vset.pattern.permute.xlu0 0
  %1942 = vperm.xlu0 %1941, %v1194
  %v1943 = vpop.permute.xlu0 %1942
  %1946 = vset.pattern.permute.xlu0 0
  %1947 = vperm.xlu0 %1946, %v1196
  %v1948 = vpop.permute.xlu0 %1947
  %1951 = vset.pattern.permute.xlu0 0
  %1952 = vperm.xlu0 %1951, %v1198
  %v1953 = vpop.permute.xlu0 %1952
  %1956 = vset.pattern.permute.xlu0 0
  %1957 = vperm.xlu0 %1956, %v1200
  %v1958 = vpop.permute.xlu0 %1957
  %1961 = vset.pattern.permute.xlu0 0
  %1962 = vperm.xlu0 %1961, %v1202
  %v1963 = vpop.permute.xlu0 %1962
  %1966 = vset.pattern.permute.xlu0 0
  %1967 = vperm.xlu0 %1966, %v1204
  %v1968 = vpop.permute.xlu0 %1967
  %1971 = vset.pattern.permute.xlu0 0
  %1972 = vperm.xlu0 %1971, %v1206
  %v1973 = vpop.permute.xlu0 %1972
  %1976 = vset.pattern.permute.xlu0 0
  %1977 = vperm.xlu0 %1976, %v1208
  %v1978 = vpop.permute.xlu0 %1977
  %1981 = vset.pattern.permute.xlu0 0
  %1982 = vperm.xlu0 %1981, %v1210
  %v1983 = vpop.permute.xlu0 %1982
  %1986 = vset.pattern.permute.xlu0 0
  %1987 = vperm.xlu0 %1986, %v1212
  %v1988 = vpop.permute.xlu0 %1987
  %1991 = vset.pattern.permute.xlu0 0
  %1992 = vperm.xlu0 %1991, %v1214
  %v1993 = vpop.permute.xlu0 %1992
  %1996 = vset.pattern.permute.xlu0 0
  %1997 = vperm.xlu0 %1996, %v1216
  %v1998 = vpop.permute.xlu0 %1997
  %2001 = vset.pattern.permute.xlu0 0
  %2002 = vperm.xlu0 %2001, %v1218
  %v2003 = vpop.permute.xlu0 %2002
  %2006 = vset.pattern.permute.xlu0 0
  %2007 = vperm.xlu0 %2006, %v1220
  %v2008 = vpop.permute.xlu0 %2007
  %2011 = vset.pattern.permute.xlu0 0
  %2012 = vperm.xlu0 %2011, %v1222
  %v2013 = vpop.permute.xlu0 %2012
  %2016 = vset.pattern.permute.xlu0 0
  %2017 = vperm.xlu0 %2016, %v1224
  %v2018 = vpop.permute.xlu0 %2017
  %2021 = vset.pattern.permute.xlu0 0
  %2022 = vperm.xlu0 %2021, %v1226
  %v2023 = vpop.permute.xlu0 %2022
  %2026 = vset.pattern.permute.xlu0 0
  %2027 = vperm.xlu0 %2026, %v1228
  %v2028 = vpop.permute.xlu0 %2027
  %2031 = vset.pattern.permute.xlu0 0
  %2032 = vperm.xlu0 %2031, %v1230
  %v2033 = vpop.permute.xlu0 %2032
  %2036 = vset.pattern.permute.xlu0 0
  %2037 = vperm.xlu0 %2036, %v1232
  %v2038 = vpop.permute.xlu0 %2037
  %2041 = vset.pattern.permute.xlu0 0
  %2042 = vperm.xlu0 %2041, %v1234
  %v2043 = vpop.permute.xlu0 %2042
  %2046 = vset.pattern.permute.xlu0 0
  %2047 = vperm.xlu0 %2046, %v1236
  %v2048 = vpop.permute.xlu0 %2047
  %2051 = vset.pattern.permute.xlu0 0
  %2052 = vperm.xlu0 %2051, %v1238
  %v2053 = vpop.permute.xlu0 %2052
  %2056 = vset.pattern.permute.xlu0 0
  %2057 = vperm.xlu0 %2056, %v1240
  %v2058 = vpop.permute.xlu0 %2057
  %2061 = vset.pattern.permute.xlu0 0
  %2062 = vperm.xlu0 %2061, %v1242
  %v2063 = vpop.permute.xlu0 %2062
  %2066 = vset.pattern.permute.xlu0 0
  %2067 = vperm.xlu0 %2066, %v1244
  %v2068 = vpop.permute.xlu0 %2067
  %2071 = vset.pattern.permute.xlu0 0
  %2072 = vperm.xlu0 %2071, %v1246
  %v2073 = vpop.permute.xlu0 %2072
  %2076 = vset.pattern.permute.xlu0 0
  %2077 = vperm.xlu0 %2076, %v1248
  %v2078 = vpop.permute.xlu0 %2077
  %2081 = vset.pattern.permute.xlu0 0
  %2082 = vperm.xlu0 %2081, %v1250
  %v2083 = vpop.permute.xlu0 %2082
  %2086 = vset.pattern.permute.xlu0 0
  %2087 = vperm.xlu0 %2086, %v1252
  %v2088 = vpop.permute.xlu0 %2087
  %2091 = vset.pattern.permute.xlu0 0
  %2092 = vperm.xlu0 %2091, %v1254
  %v2093 = vpop.permute.xlu0 %2092
  %2096 = vset.pattern.permute.xlu0 0
  %2097 = vperm.xlu0 %2096, %v1256
  %v2098 = vpop.permute.xlu0 %2097
  %2101 = vset.pattern.permute.xlu0 0
  %2102 = vperm.xlu0 %2101, %v1258
  %v2103 = vpop.permute.xlu0 %2102
  %2106 = vset.pattern.permute.xlu0 0
  %2107 = vperm.xlu0 %2106, %v1260
  %v2108 = vpop.permute.xlu0 %2107
  %2111 = vset.pattern.permute.xlu0 0
  %2112 = vperm.xlu0 %2111, %v1262
  %v2113 = vpop.permute.xlu0 %2112
  %2116 = vset.pattern.permute.xlu0 0
  %2117 = vperm.xlu0 %2116, %v1264
  %v2118 = vpop.permute.xlu0 %2117
  %2121 = vset.pattern.permute.xlu0 0
  %2122 = vperm.xlu0 %2121, %v1266
  %v2123 = vpop.permute.xlu0 %2122
  %2126 = vset.pattern.permute.xlu0 0
  %2127 = vperm.xlu0 %2126, %v1268
  %v2128 = vpop.permute.xlu0 %2127
  %2131 = vset.pattern.permute.xlu0 0
  %2132 = vperm.xlu0 %2131, %v1270
  %v2133 = vpop.permute.xlu0 %2132
  %2136 = vset.pattern.permute.xlu0 0
  %2137 = vperm.xlu0 %2136, %v1272
  %v2138 = vpop.permute.xlu0 %2137
  %2141 = vset.pattern.permute.xlu0 0
  %2142 = vperm.xlu0 %2141, %v1274
  %v2143 = vpop.permute.xlu0 %2142
  %2146 = vset.pattern.permute.xlu0 0
  %2147 = vperm.xlu0 %2146, %v1276
  %v2148 = vpop.permute.xlu0 %2147
  %2151 = vset.pattern.permute.xlu0 0
  %2152 = vperm.xlu0 %2151, %v1278
  %v2153 = vpop.permute.xlu0 %2152
  %2156 = vset.pattern.permute.xlu0 0
  %2157 = vperm.xlu0 %2156, %v1280
  %v2158 = vpop.permute.xlu0 %2157
  %2161 = vset.pattern.permute.xlu0 0
  %2162 = vperm.xlu0 %2161, %v1282
  %v2163 = vpop.permute.xlu0 %2162
  %2166 = vset.pattern.permute.xlu0 0
  %2167 = vperm.xlu0 %2166, %v1284
  %v2168 = vpop.permute.xlu0 %2167
  %2171 = vset.pattern.permute.xlu0 0
  %2172 = vperm.xlu0 %2171, %v1286
  %v2173 = vpop.permute.xlu0 %2172
  %2176 = vset.pattern.permute.xlu0 0
  %2177 = vperm.xlu0 %2176, %v1288
  %v2178 = vpop.permute.xlu0 %2177
  %2181 = vset.pattern.permute.xlu0 0
  %2182 = vperm.xlu0 %2181, %v1290
  %v2183 = vpop.permute.xlu0 %2182
  %2186 = vset.pattern.permute.xlu0 0
  %2187 = vperm.xlu0 %2186, %v1292
  %v2188 = vpop.permute.xlu0 %2187
  %2191 = vset.pattern.permute.xlu0 0
  %2192 = vperm.xlu0 %2191, %v1294
  %v2193 = vpop.permute.xlu0 %2192
  %2196 = vset.pattern.permute.xlu0 0
  %2197 = vperm.xlu0 %2196, %v1296
  %v2198 = vpop.permute.xlu0 %2197
  %2201 = vset.pattern.permute.xlu0 0
  %2202 = vperm.xlu0 %2201, %v1298
  %v2203 = vpop.permute.xlu0 %2202
  %2206 = vset.pattern.permute.xlu0 0
  %2207 = vperm.xlu0 %2206, %v1300
  %v2208 = vpop.permute.xlu0 %2207
  %2211 = vset.pattern.permute.xlu0 0
  %2212 = vperm.xlu0 %2211, %v1302
  %v2213 = vpop.permute.xlu0 %2212
  %2216 = vset.pattern.permute.xlu0 0
  %2217 = vperm.xlu0 %2216, %v1304
  %v2218 = vpop.permute.xlu0 %2217
  %2221 = vset.pattern.permute.xlu0 0
  %2222 = vperm.xlu0 %2221, %v1306
  %v2223 = vpop.permute.xlu0 %2222
  %2226 = vset.pattern.permute.xlu0 0
  %2227 = vperm.xlu0 %2226, %v1308
  %v2228 = vpop.permute.xlu0 %2227
  %2231 = vset.pattern.permute.xlu0 0
  %2232 = vperm.xlu0 %2231, %v1310
  %v2233 = vpop.permute.xlu0 %2232
  %2236 = vset.pattern.permute.xlu0 0
  %2237 = vperm.xlu0 %2236, %v1312
  %v2238 = vpop.permute.xlu0 %2237
  %2241 = vset.pattern.permute.xlu0 0
  %2242 = vperm.xlu0 %2241, %v1314
  %v2243 = vpop.permute.xlu0 %2242
  %2246 = vset.pattern.permute.xlu0 0
  %2247 = vperm.xlu0 %2246, %v1316
  %v2248 = vpop.permute.xlu0 %2247
  %2251 = vset.pattern.permute.xlu0 0
  %2252 = vperm.xlu0 %2251, %v1318
  %v2253 = vpop.permute.xlu0 %2252
  %2256 = vset.pattern.permute.xlu0 0
  %2257 = vperm.xlu0 %2256, %v1320
  %v2258 = vpop.permute.xlu0 %2257
  %2261 = vset.pattern.permute.xlu0 0
  %2262 = vperm.xlu0 %2261, %v1322
  %v2263 = vpop.permute.xlu0 %2262
  %2266 = vset.pattern.permute.xlu0 0
  %2267 = vperm.xlu0 %2266, %v1324
  %v2268 = vpop.permute.xlu0 %2267
  %2271 = vset.pattern.permute.xlu0 0
  %2272 = vperm.xlu0 %2271, %v1326
  %v2273 = vpop.permute.xlu0 %2272
  %2276 = vset.pattern.permute.xlu0 0
  %2277 = vperm.xlu0 %2276, %v1328
  %v2278 = vpop.permute.xlu0 %2277
  %2281 = vset.pattern.permute.xlu0 0
  %2282 = vperm.xlu0 %2281, %v1330
  %v2283 = vpop.permute.xlu0 %2282
  %2286 = vset.pattern.permute.xlu0 0
  %2287 = vperm.xlu0 %2286, %v1332
  %v2288 = vpop.permute.xlu0 %2287
  %2291 = vset.pattern.permute.xlu0 0
  %2292 = vperm.xlu0 %2291, %v1334
  %v2293 = vpop.permute.xlu0 %2292
  %2296 = vset.pattern.permute.xlu0 0
  %2297 = vperm.xlu0 %2296, %v1336
  %v2298 = vpop.permute.xlu0 %2297
  %2301 = vset.pattern.permute.xlu0 0
  %2302 = vperm.xlu0 %2301, %v1338
  %v2303 = vpop.permute.xlu0 %2302
  %2306 = vset.pattern.permute.xlu0 0
  %2307 = vperm.xlu0 %2306, %v1340
  %v2308 = vpop.permute.xlu0 %2307
  %2311 = vset.pattern.permute.xlu0 0
  %2312 = vperm.xlu0 %2311, %v1342
  %v2313 = vpop.permute.xlu0 %2312
  %2316 = vset.pattern.permute.xlu0 0
  %2317 = vperm.xlu0 %2316, %v1344
  %v2318 = vpop.permute.xlu0 %2317
  %2321 = vset.pattern.permute.xlu0 0
  %2322 = vperm.xlu0 %2321, %v1346
  %v2323 = vpop.permute.xlu0 %2322
  %2326 = vset.pattern.permute.xlu0 0
  %2327 = vperm.xlu0 %2326, %v1348
  %v2328 = vpop.permute.xlu0 %2327
  %2331 = vset.pattern.permute.xlu0 0
  %2332 = vperm.xlu0 %2331, %v1350
  %v2333 = vpop.permute.xlu0 %2332
  %2336 = vset.pattern.permute.xlu0 0
  %2337 = vperm.xlu0 %2336, %v1352
  %v2338 = vpop.permute.xlu0 %2337
  %2341 = vset.pattern.permute.xlu0 0
  %2342 = vperm.xlu0 %2341, %v1354
  %v2343 = vpop.permute.xlu0 %2342
  %2346 = vset.pattern.permute.xlu0 0
  %2347 = vperm.xlu0 %2346, %v1356
  %v2348 = vpop.permute.xlu0 %2347
  %2351 = vset.pattern.permute.xlu0 0
  %2352 = vperm.xlu0 %2351, %v1358
  %v2353 = vpop.permute.xlu0 %2352
  %2356 = vset.pattern.permute.xlu0 0
  %2357 = vperm.xlu0 %2356, %v1360
  %v2358 = vpop.permute.xlu0 %2357
  %2361 = vset.pattern.permute.xlu0 0
  %2362 = vperm.xlu0 %2361, %v1362
  %v2363 = vpop.permute.xlu0 %2362
  %2366 = vset.pattern.permute.xlu0 0
  %2367 = vperm.xlu0 %2366, %v1364
  %v2368 = vpop.permute.xlu0 %2367
  %2371 = vset.pattern.permute.xlu0 0
  %2372 = vperm.xlu0 %2371, %v1366
  %v2373 = vpop.permute.xlu0 %2372
  %2376 = vset.pattern.permute.xlu0 0
  %2377 = vperm.xlu0 %2376, %v1368
  %v2378 = vpop.permute.xlu0 %2377
  %2381 = vset.pattern.permute.xlu0 0
  %2382 = vperm.xlu0 %2381, %v1370
  %v2383 = vpop.permute.xlu0 %2382
  %2386 = vset.pattern.permute.xlu0 0
  %2387 = vperm.xlu0 %2386, %v1372
  %v2388 = vpop.permute.xlu0 %2387
  %2391 = vset.pattern.permute.xlu0 0
  %2392 = vperm.xlu0 %2391, %v1374
  %v2393 = vpop.permute.xlu0 %2392
  %2396 = vset.pattern.permute.xlu0 0
  %2397 = vperm.xlu0 %2396, %v1376
  %v2398 = vpop.permute.xlu0 %2397
  %2401 = vset.pattern.permute.xlu0 0
  %2402 = vperm.xlu0 %2401, %v1378
  %v2403 = vpop.permute.xlu0 %2402
  %2406 = vset.pattern.permute.xlu0 0
  %2407 = vperm.xlu0 %2406, %v1380
  %v2408 = vpop.permute.xlu0 %2407
  %2411 = vset.pattern.permute.xlu0 0
  %2412 = vperm.xlu0 %2411, %v1382
  %v2413 = vpop.permute.xlu0 %2412
  %2416 = vset.pattern.permute.xlu0 0
  %2417 = vperm.xlu0 %2416, %v1384
  %v2418 = vpop.permute.xlu0 %2417
  %2421 = vset.pattern.permute.xlu0 0
  %2422 = vperm.xlu0 %2421, %v1386
  %v2423 = vpop.permute.xlu0 %2422
  %2426 = vset.pattern.permute.xlu0 0
  %2427 = vperm.xlu0 %2426, %v1388
  %v2428 = vpop.permute.xlu0 %2427
  %2431 = vset.pattern.permute.xlu0 0
  %2432 = vperm.xlu0 %2431, %v1390
  %v2433 = vpop.permute.xlu0 %2432
  %2436 = vset.pattern.permute.xlu0 0
  %2437 = vperm.xlu0 %2436, %v1392
  %v2438 = vpop.permute.xlu0 %2437
  %2441 = vset.pattern.permute.xlu0 0
  %2442 = vperm.xlu0 %2441, %v1394
  %v2443 = vpop.permute.xlu0 %2442
  %2446 = vset.pattern.permute.xlu0 0
  %2447 = vperm.xlu0 %2446, %v1396
  %v2448 = vpop.permute.xlu0 %2447
  %2451 = vset.pattern.permute.xlu0 0
  %2452 = vperm.xlu0 %2451, %v1398
  %v2453 = vpop.permute.xlu0 %2452
  %2456 = vset.pattern.permute.xlu0 0
  %2457 = vperm.xlu0 %2456, %v1400
  %v2458 = vpop.permute.xlu0 %2457
  %2461 = vset.pattern.permute.xlu0 0
  %2462 = vperm.xlu0 %2461, %v1402
  %v2463 = vpop.permute.xlu0 %2462
  %2466 = vset.pattern.permute.xlu0 0
  %2467 = vperm.xlu0 %2466, %v1404
  %v2468 = vpop.permute.xlu0 %2467
  %2471 = vset.pattern.permute.xlu0 0
  %2472 = vperm.xlu0 %2471, %v1406
  %v2473 = vpop.permute.xlu0 %2472
  %2476 = vset.pattern.permute.xlu0 0
  %2477 = vperm.xlu0 %2476, %v1408
  %v2478 = vpop.permute.xlu0 %2477
  %2481 = vset.pattern.permute.xlu0 0
  %2482 = vperm.xlu0 %2481, %v1410
  %v2483 = vpop.permute.xlu0 %2482
  %2486 = vset.pattern.permute.xlu0 0
  %2487 = vperm.xlu0 %2486, %v1412
  %v2488 = vpop.permute.xlu0 %2487
  %2491 = vset.pattern.permute.xlu0 0
  %2492 = vperm.xlu0 %2491, %v1414
  %v2493 = vpop.permute.xlu0 %2492
  %2496 = vset.pattern.permute.xlu0 0
  %2497 = vperm.xlu0 %2496, %v1416
  %v2498 = vpop.permute.xlu0 %2497
  %2501 = vset.pattern.permute.xlu0 0
  %2502 = vperm.xlu0 %2501, %v1418
  %v2503 = vpop.permute.xlu0 %2502
  %2506 = vset.pattern.permute.xlu0 0
  %2507 = vperm.xlu0 %2506, %v1420
  %v2508 = vpop.permute.xlu0 %2507
  %2511 = vset.pattern.permute.xlu0 0
  %2512 = vperm.xlu0 %2511, %v1422
  %v2513 = vpop.permute.xlu0 %2512
  %2516 = vset.pattern.permute.xlu0 0
  %2517 = vperm.xlu0 %2516, %v1424
  %v2518 = vpop.permute.xlu0 %2517
  %2521 = vset.pattern.permute.xlu0 0
  %2522 = vperm.xlu0 %2521, %v1426
  %v2523 = vpop.permute.xlu0 %2522
  %2526 = vset.pattern.permute.xlu0 0
  %2527 = vperm.xlu0 %2526, %v1428
  %v2528 = vpop.permute.xlu0 %2527
  %2531 = vset.pattern.permute.xlu0 0
  %2532 = vperm.xlu0 %2531, %v1430
  %v2533 = vpop.permute.xlu0 %2532
  %2536 = vset.pattern.permute.xlu0 0
  %2537 = vperm.xlu0 %2536, %v1432
  %v2538 = vpop.permute.xlu0 %2537
  %2541 = vset.pattern.permute.xlu0 0
  %2542 = vperm.xlu0 %2541, %v1434
  %v2543 = vpop.permute.xlu0 %2542
  %2546 = vset.pattern.permute.xlu0 0
  %2547 = vperm.xlu0 %2546, %v1436
  %v2548 = vpop.permute.xlu0 %2547
  %2551 = vset.pattern.permute.xlu0 0
  %2552 = vperm.xlu0 %2551, %v1438
  %v2553 = vpop.permute.xlu0 %2552
  %2556 = vset.pattern.permute.xlu0 0
  %2557 = vperm.xlu0 %2556, %v1440
  %v2558 = vpop.permute.xlu0 %2557
  %2561 = vset.pattern.permute.xlu0 0
  %2562 = vperm.xlu0 %2561, %v1442
  %v2563 = vpop.permute.xlu0 %2562
  %2566 = vset.pattern.permute.xlu0 0
  %2567 = vperm.xlu0 %2566, %v1444
  %v2568 = vpop.permute.xlu0 %2567
  %2571 = vset.pattern.permute.xlu0 0
  %2572 = vperm.xlu0 %2571, %v1446
  %v2573 = vpop.permute.xlu0 %2572
  %2576 = vset.pattern.permute.xlu0 0
  %2577 = vperm.xlu0 %2576, %v1448
  %v2578 = vpop.permute.xlu0 %2577
  %2581 = vset.pattern.permute.xlu0 0
  %2582 = vperm.xlu0 %2581, %v1450
  %v2583 = vpop.permute.xlu0 %2582
  %2586 = vset.pattern.permute.xlu0 0
  %2587 = vperm.xlu0 %2586, %v1452
  %v2588 = vpop.permute.xlu0 %2587
  %2591 = vset.pattern.permute.xlu0 0
  %2592 = vperm.xlu0 %2591, %v1454
  %v2593 = vpop.permute.xlu0 %2592
  %2596 = vset.pattern.permute.xlu0 0
  %2597 = vperm.xlu0 %2596, %v1456
  %v2598 = vpop.permute.xlu0 %2597
  %2601 = vset.pattern.permute.xlu0 0
  %2602 = vperm.xlu0 %2601, %v1458
  %v2603 = vpop.permute.xlu0 %2602
  %2606 = vset.pattern.permute.xlu0 0
  %2607 = vperm.xlu0 %2606, %v1460
  %v2608 = vpop.permute.xlu0 %2607
  %2611 = vset.pattern.permute.xlu0 0
  %2612 = vperm.xlu0 %2611, %v1462
  %v2613 = vpop.permute.xlu0 %2612
  %2616 = vset.pattern.permute.xlu0 0
  %2617 = vperm.xlu0 %2616, %v1464
  %v2618 = vpop.permute.xlu0 %2617
  %2621 = vset.pattern.permute.xlu0 0
  %2622 = vperm.xlu0 %2621, %v1466
  %v2623 = vpop.permute.xlu0 %2622
  %2626 = vset.pattern.permute.xlu0 0
  %2627 = vperm.xlu0 %2626, %v1468
  %v2628 = vpop.permute.xlu0 %2627
  %2631 = vset.pattern.permute.xlu0 0
  %2632 = vperm.xlu0 %2631, %v1470
  %v2633 = vpop.permute.xlu0 %2632
  %2636 = vset.pattern.permute.xlu0 0
  %2637 = vperm.xlu0 %2636, %v1472
  %v2638 = vpop.permute.xlu0 %2637
  %2641 = vset.pattern.permute.xlu0 0
  %2642 = vperm.xlu0 %2641, %v1474
  %v2643 = vpop.permute.xlu0 %2642
  %2646 = vset.pattern.permute.xlu0 0
  %2647 = vperm.xlu0 %2646, %v1476
  %v2648 = vpop.permute.xlu0 %2647
  %2651 = vset.pattern.permute.xlu0 0
  %2652 = vperm.xlu0 %2651, %v1478
  %v2653 = vpop.permute.xlu0 %2652
  %2656 = vset.pattern.permute.xlu0 0
  %2657 = vperm.xlu0 %2656, %v1480
  %v2658 = vpop.permute.xlu0 %2657
  %2661 = vset.pattern.permute.xlu0 0
  %2662 = vperm.xlu0 %2661, %v1482
  %v2663 = vpop.permute.xlu0 %2662
  %2666 = vset.pattern.permute.xlu0 0
  %2667 = vperm.xlu0 %2666, %v1484
  %v2668 = vpop.permute.xlu0 %2667
  %2671 = vset.pattern.permute.xlu0 0
  %2672 = vperm.xlu0 %2671, %v1486
  %v2673 = vpop.permute.xlu0 %2672
  %2676 = vset.pattern.permute.xlu0 0
  %2677 = vperm.xlu0 %2676, %v1488
  %v2678 = vpop.permute.xlu0 %2677
  %2681 = vset.pattern.permute.xlu0 0
  %2682 = vperm.xlu0 %2681, %v1490
  %v2683 = vpop.permute.xlu0 %2682
  %2686 = vset.pattern.permute.xlu0 0
  %2687 = vperm.xlu0 %2686, %v1492
  %v2688 = vpop.permute.xlu0 %2687
  %2691 = vset.pattern.permute.xlu0 0
  %2692 = vperm.xlu0 %2691, %v1494
  %v2693 = vpop.permute.xlu0 %2692
  %2696 = vset.pattern.permute.xlu0 0
  %2697 = vperm.xlu0 %2696, %v1496
  %v2698 = vpop.permute.xlu0 %2697
  %2701 = vset.pattern.permute.xlu0 0
  %2702 = vperm.xlu0 %2701, %v1498
  %v2703 = vpop.permute.xlu0 %2702
  %2706 = vset.pattern.permute.xlu0 0
  %2707 = vperm.xlu0 %2706, %v1500
  %v2708 = vpop.permute.xlu0 %2707
  %2711 = vset.pattern.permute.xlu0 0
  %2712 = vperm.xlu0 %2711, %v1502
  %v2713 = vpop.permute.xlu0 %2712
  %2716 = vset.pattern.permute.xlu0 0
  %2717 = vperm.xlu0 %2716, %v1504
  %v2718 = vpop.permute.xlu0 %2717
  %2721 = vset.pattern.permute.xlu0 0
  %2722 = vperm.xlu0 %2721, %v1506
  %v2723 = vpop.permute.xlu0 %2722
  %2726 = vset.pattern.permute.xlu0 0
  %2727 = vperm.xlu0 %2726, %v1508
  %v2728 = vpop.permute.xlu0 %2727
  %2731 = vset.pattern.permute.xlu0 0
  %2732 = vperm.xlu0 %2731, %v1510
  %v2733 = vpop.permute.xlu0 %2732
  %2736 = vset.pattern.permute.xlu0 0
  %2737 = vperm.xlu0 %2736, %v1512
  %v2738 = vpop.permute.xlu0 %2737
  %2741 = vset.pattern.permute.xlu0 0
  %2742 = vperm.xlu0 %2741, %v1514
  %v2743 = vpop.permute.xlu0 %2742
  %2746 = vset.pattern.permute.xlu0 0
  %2747 = vperm.xlu0 %2746, %v1516
  %v2748 = vpop.permute.xlu0 %2747
  %2751 = vset.pattern.permute.xlu0 0
  %2752 = vperm.xlu0 %2751, %v1518
  %v2753 = vpop.permute.xlu0 %2752
  %2756 = vset.pattern.permute.xlu0 0
  %2757 = vperm.xlu0 %2756, %v1520
  %v2758 = vpop.permute.xlu0 %2757
  %2761 = vset.pattern.permute.xlu0 0
  %2762 = vperm.xlu0 %2761, %v1522
  %v2763 = vpop.permute.xlu0 %2762
  %2766 = vset.pattern.permute.xlu0 0
  %2767 = vperm.xlu0 %2766, %v1524
  %v2768 = vpop.permute.xlu0 %2767
  %2771 = vset.pattern.permute.xlu0 0
  %2772 = vperm.xlu0 %2771, %v1526
  %v2773 = vpop.permute.xlu0 %2772
  %2776 = vset.pattern.permute.xlu0 0
  %2777 = vperm.xlu0 %2776, %v1528
  %v2778 = vpop.permute.xlu0 %2777
  %2781 = vset.pattern.permute.xlu0 0
  %2782 = vperm.xlu0 %2781, %v1530
  %v2783 = vpop.permute.xlu0 %2782
  %2786 = vset.pattern.permute.xlu0 0
  %2787 = vperm.xlu0 %2786, %v1532
  %v2788 = vpop.permute.xlu0 %2787
  %2791 = vset.pattern.permute.xlu0 0
  %2792 = vperm.xlu0 %2791, %v1534
  %v2793 = vpop.permute.xlu0 %2792
  %2796 = vset.pattern.permute.xlu0 0
  %2797 = vperm.xlu0 %2796, %v1536
  %v2798 = vpop.permute.xlu0 %2797
  %2801 = vset.pattern.permute.xlu0 0
  %2802 = vperm.xlu0 %2801, %v1538
  %v2803 = vpop.permute.xlu0 %2802
  %2806 = vset.pattern.permute.xlu0 0
  %2807 = vperm.xlu0 %2806, %v1540
  %v2808 = vpop.permute.xlu0 %2807
  %2811 = vset.pattern.permute.xlu0 0
  %2812 = vperm.xlu0 %2811, %v1542
  %v2813 = vpop.permute.xlu0 %2812
  %2816 = vset.pattern.permute.xlu0 0
  %2817 = vperm.xlu0 %2816, %v1544
  %v2818 = vpop.permute.xlu0 %2817
  %2821 = vset.pattern.permute.xlu0 0
  %2822 = vperm.xlu0 %2821, %v1546
  %v2823 = vpop.permute.xlu0 %2822
  %2826 = vset.pattern.permute.xlu0 0
  %2827 = vperm.xlu0 %2826, %v1548
  %v2828 = vpop.permute.xlu0 %2827
  %2831 = vset.pattern.permute.xlu0 0
  %2832 = vperm.xlu0 %2831, %v1550
  %v2833 = vpop.permute.xlu0 %2832
  %2836 = vset.pattern.permute.xlu0 0
  %2837 = vperm.xlu0 %2836, %v1552
  %v2838 = vpop.permute.xlu0 %2837
  %2841 = vset.pattern.permute.xlu0 0
  %2842 = vperm.xlu0 %2841, %v1554
  %v2843 = vpop.permute.xlu0 %2842
  %2846 = vset.pattern.permute.xlu0 0
  %2847 = vperm.xlu0 %2846, %v1556
  %v2848 = vpop.permute.xlu0 %2847
  %2851 = vset.pattern.permute.xlu0 0
  %2852 = vperm.xlu0 %2851, %v1558
  %v2853 = vpop.permute.xlu0 %2852
  %2856 = vset.pattern.permute.xlu0 0
  %2857 = vperm.xlu0 %2856, %v1560
  %v2858 = vpop.permute.xlu0 %2857
  %2861 = vset.pattern.permute.xlu0 0
  %2862 = vperm.xlu0 %2861, %v1562
  %v2863 = vpop.permute.xlu0 %2862
  %2866 = vset.pattern.permute.xlu0 0
  %2867 = vperm.xlu0 %2866, %v1564
  %v2868 = vpop.permute.xlu0 %2867
  %2871 = vset.pattern.permute.xlu0 0
  %2872 = vperm.xlu0 %2871, %v1566
  %v2873 = vpop.permute.xlu0 %2872
  %2876 = vset.pattern.permute.xlu0 0
  %2877 = vperm.xlu0 %2876, %v1568
  %v2878 = vpop.permute.xlu0 %2877
  %2881 = vset.pattern.permute.xlu0 0
  %2882 = vperm.xlu0 %2881, %v1570
  %v2883 = vpop.permute.xlu0 %2882
  %2886 = vset.pattern.permute.xlu0 0
  %2887 = vperm.xlu0 %2886, %v1572
  %v2888 = vpop.permute.xlu0 %2887
  %2891 = vset.pattern.permute.xlu0 0
  %2892 = vperm.xlu0 %2891, %v1574
  %v2893 = vpop.permute.xlu0 %2892
  %2896 = vset.pattern.permute.xlu0 0
  %2897 = vperm.xlu0 %2896, %v1576
  %v2898 = vpop.permute.xlu0 %2897
  %2901 = vset.pattern.permute.xlu0 0
  %2902 = vperm.xlu0 %2901, %v1578
  %v2903 = vpop.permute.xlu0 %2902
  %2906 = vset.pattern.permute.xlu0 0
  %2907 = vperm.xlu0 %2906, %v1580
  %v2908 = vpop.permute.xlu0 %2907
  %2911 = vset.pattern.permute.xlu0 0
  %2912 = vperm.xlu0 %2911, %v1582
  %v2913 = vpop.permute.xlu0 %2912
  %2916 = vset.pattern.permute.xlu0 0
  %2917 = vperm.xlu0 %2916, %v1584
  %v2918 = vpop.permute.xlu0 %2917
  %2921 = vset.pattern.permute.xlu0 0
  %2922 = vperm.xlu0 %2921, %v1586
  %v2923 = vpop.permute.xlu0 %2922
  %2926 = vset.pattern.permute.xlu0 0
  %2927 = vperm.xlu0 %2926, %v1588
  %v2928 = vpop.permute.xlu0 %2927
  %2931 = vset.pattern.permute.xlu0 0
  %2932 = vperm.xlu0 %2931, %v1590
  %v2933 = vpop.permute.xlu0 %2932
  %2936 = vset.pattern.permute.xlu0 0
  %2937 = vperm.xlu0 %2936, %v1592
  %v2938 = vpop.permute.xlu0 %2937
  %2941 = vset.pattern.permute.xlu0 0
  %2942 = vperm.xlu0 %2941, %v1594
  %v2943 = vpop.permute.xlu0 %2942
  %2946 = vset.pattern.permute.xlu0 0
  %2947 = vperm.xlu0 %2946, %v1596
  %v2948 = vpop.permute.xlu0 %2947
  %2951 = vset.pattern.permute.xlu0 0
  %2952 = vperm.xlu0 %2951, %v1598
  %v2953 = vpop.permute.xlu0 %2952
  %2956 = vset.pattern.permute.xlu0 0
  %2957 = vperm.xlu0 %2956, %v1600
  %v2958 = vpop.permute.xlu0 %2957
  %2961 = vset.pattern.permute.xlu0 0
  %2962 = vperm.xlu0 %2961, %v1602
  %v2963 = vpop.permute.xlu0 %2962
  %2966 = vset.pattern.permute.xlu0 0
  %2967 = vperm.xlu0 %2966, %v1604
  %v2968 = vpop.permute.xlu0 %2967
  %2971 = vset.pattern.permute.xlu0 0
  %2972 = vperm.xlu0 %2971, %v1606
  %v2973 = vpop.permute.xlu0 %2972
  %v2975 = vmul.f32 %v1838, %v1607
  %v2976 = vmul.f32 %v1843, %v1608
  %v2977 = vmul.f32 %v1848, %v1609
  %v2978 = vmul.f32 %v1853, %v1610
  %v2979 = vmul.f32 %v1858, %v1611
  %v2980 = vmul.f32 %v1863, %v1612
  %v2981 = vmul.f32 %v1868, %v1613
  %v2982 = vmul.f32 %v1873, %v1614
  %v2983 = vmul.f32 %v1878, %v1615
  %v2984 = vmul.f32 %v1883, %v1616
  %v2985 = vmul.f32 %v1888, %v1617
  %v2986 = vmul.f32 %v1893, %v1618
  %v2987 = vmul.f32 %v1898, %v1619
  %v2988 = vmul.f32 %v1903, %v1620
  %v2989 = vmul.f32 %v1908, %v1621
  %v2990 = vmul.f32 %v1913, %v1622
  %v2991 = vmul.f32 %v1918, %v1623
  %v2992 = vmul.f32 %v1923, %v1624
  %v2993 = vmul.f32 %v1928, %v1625
  %v2994 = vmul.f32 %v1933, %v1626
  %v2995 = vmul.f32 %v1938, %v1627
  %v2996 = vmul.f32 %v1943, %v1628
  %v2997 = vmul.f32 %v1948, %v1629
  %v2998 = vmul.f32 %v1953, %v1630
  %v2999 = vmul.f32 %v1958, %v1631
  %v3000 = vmul.f32 %v1963, %v1632
  %v3001 = vmul.f32 %v1968, %v1633
  %v3002 = vmul.f32 %v1973, %v1634
  %v3003 = vmul.f32 %v1978, %v1635
  %v3004 = vmul.f32 %v1983, %v1636
  %v3005 = vmul.f32 %v1988, %v1637
  %v3006 = vmul.f32 %v1993, %v1638
  %v3007 = vmul.f32 %v1998, %v1639
  %v3008 = vmul.f32 %v2003, %v1640
  %v3009 = vmul.f32 %v2008, %v1641
  %v3010 = vmul.f32 %v2013, %v1642
  %v3011 = vmul.f32 %v2018, %v1643
  %v3012 = vmul.f32 %v2023, %v1644
  %v3013 = vmul.f32 %v2028, %v1645
  %v3014 = vmul.f32 %v2033, %v1646
  %v3015 = vmul.f32 %v2038, %v1647
  %v3016 = vmul.f32 %v2043, %v1648
  %v3017 = vmul.f32 %v2048, %v1649
  %v3018 = vmul.f32 %v2053, %v1650
  %v3019 = vmul.f32 %v2058, %v1651
  %v3020 = vmul.f32 %v2063, %v1652
  %v3021 = vmul.f32 %v2068, %v1653
  %v3022 = vmul.f32 %v2073, %v1654
  %v3023 = vmul.f32 %v2078, %v1655
  %v3024 = vmul.f32 %v2083, %v1656
  %v3025 = vmul.f32 %v2088, %v1657
  %v3026 = vmul.f32 %v2093, %v1658
  %v3027 = vmul.f32 %v2098, %v1659
  %v3028 = vmul.f32 %v2103, %v1660
  %v3029 = vmul.f32 %v2108, %v1661
  %v3030 = vmul.f32 %v2113, %v1662
  %v3031 = vmul.f32 %v2118, %v1663
  %v3032 = vmul.f32 %v2123, %v1664
  %v3033 = vmul.f32 %v2128, %v1665
  %v3034 = vmul.f32 %v2133, %v1666
  %v3035 = vmul.f32 %v2138, %v1667
  %v3036 = vmul.f32 %v2143, %v1668
  %v3037 = vmul.f32 %v2148, %v1669
  %v3038 = vmul.f32 %v2153, %v1670
  %v3039 = vmul.f32 %v2158, %v1671
  %v3040 = vmul.f32 %v2163, %v1672
  %v3041 = vmul.f32 %v2168, %v1673
  %v3042 = vmul.f32 %v2173, %v1674
  %v3043 = vmul.f32 %v2178, %v1675
  %v3044 = vmul.f32 %v2183, %v1676
  %v3045 = vmul.f32 %v2188, %v1677
  %v3046 = vmul.f32 %v2193, %v1678
  %v3047 = vmul.f32 %v2198, %v1679
  %v3048 = vmul.f32 %v2203, %v1680
  %v3049 = vmul.f32 %v2208, %v1681
  %v3050 = vmul.f32 %v2213, %v1682
  %v3051 = vmul.f32 %v2218, %v1683
  %v3052 = vmul.f32 %v2223, %v1684
  %v3053 = vmul.f32 %v2228, %v1685
  %v3054 = vmul.f32 %v2233, %v1686
  %v3055 = vmul.f32 %v2238, %v1687
  %v3056 = vmul.f32 %v2243, %v1688
  %v3057 = vmul.f32 %v2248, %v1689
  %v3058 = vmul.f32 %v2253, %v1690
  %v3059 = vmul.f32 %v2258, %v1691
  %v3060 = vmul.f32 %v2263, %v1692
  %v3061 = vmul.f32 %v2268, %v1693
  %v3062 = vmul.f32 %v2273, %v1694
  %v3063 = vmul.f32 %v2278, %v1695
  %v3064 = vmul.f32 %v2283, %v1696
  %v3065 = vmul.f32 %v2288, %v1697
  %v3066 = vmul.f32 %v2293, %v1698
  %v3067 = vmul.f32 %v2298, %v1699
  %v3068 = vmul.f32 %v2303, %v1700
  %v3069 = vmul.f32 %v2308, %v1701
  %v3070 = vmul.f32 %v2313, %v1702
  %v3071 = vmul.f32 %v2318, %v1703
  %v3072 = vmul.f32 %v2323, %v1704
  %v3073 = vmul.f32 %v2328, %v1705
  %v3074 = vmul.f32 %v2333, %v1706
  %v3075 = vmul.f32 %v2338, %v1707
  %v3076 = vmul.f32 %v2343, %v1708
  %v3077 = vmul.f32 %v2348, %v1709
  %v3078 = vmul.f32 %v2353, %v1710
  %v3079 = vmul.f32 %v2358, %v1711
  %v3080 = vmul.f32 %v2363, %v1712
  %v3081 = vmul.f32 %v2368, %v1713
  %v3082 = vmul.f32 %v2373, %v1714
  %v3083 = vmul.f32 %v2378, %v1715
  %v3084 = vmul.f32 %v2383, %v1716
  %v3085 = vmul.f32 %v2388, %v1717
  %v3086 = vmul.f32 %v2393, %v1718
  %v3087 = vmul.f32 %v2398, %v1719
  %v3088 = vmul.f32 %v2403, %v1720
  %v3089 = vmul.f32 %v2408, %v1721
  %v3090 = vmul.f32 %v2413, %v1722
  %v3091 = vmul.f32 %v2418, %v1723
  %v3092 = vmul.f32 %v2423, %v1724
  %v3093 = vmul.f32 %v2428, %v1725
  %v3094 = vmul.f32 %v2433, %v1726
  %v3095 = vmul.f32 %v2438, %v1727
  %v3096 = vmul.f32 %v2443, %v1728
  %v3097 = vmul.f32 %v2448, %v1729
  %v3098 = vmul.f32 %v2453, %v1730
  %v3099 = vmul.f32 %v2458, %v1731
  %v3100 = vmul.f32 %v2463, %v1732
  %v3101 = vmul.f32 %v2468, %v1733
  %v3102 = vmul.f32 %v2473, %v1734
  %v3103 = vmul.f32 %v2478, %v1735
  %v3104 = vmul.f32 %v2483, %v1736
  %v3105 = vmul.f32 %v2488, %v1737
  %v3106 = vmul.f32 %v2493, %v1738
  %v3107 = vmul.f32 %v2498, %v1739
  %v3108 = vmul.f32 %v2503, %v1740
  %v3109 = vmul.f32 %v2508, %v1741
  %v3110 = vmul.f32 %v2513, %v1742
  %v3111 = vmul.f32 %v2518, %v1743
  %v3112 = vmul.f32 %v2523, %v1744
  %v3113 = vmul.f32 %v2528, %v1745
  %v3114 = vmul.f32 %v2533, %v1746
  %v3115 = vmul.f32 %v2538, %v1747
  %v3116 = vmul.f32 %v2543, %v1748
  %v3117 = vmul.f32 %v2548, %v1749
  %v3118 = vmul.f32 %v2553, %v1750
  %v3119 = vmul.f32 %v2558, %v1751
  %v3120 = vmul.f32 %v2563, %v1752
  %v3121 = vmul.f32 %v2568, %v1753
  %v3122 = vmul.f32 %v2573, %v1754
  %v3123 = vmul.f32 %v2578, %v1755
  %v3124 = vmul.f32 %v2583, %v1756
  %v3125 = vmul.f32 %v2588, %v1757
  %v3126 = vmul.f32 %v2593, %v1758
  %v3127 = vmul.f32 %v2598, %v1759
  %v3128 = vmul.f32 %v2603, %v1760
  %v3129 = vmul.f32 %v2608, %v1761
  %v3130 = vmul.f32 %v2613, %v1762
  %v3131 = vmul.f32 %v2618, %v1763
  %v3132 = vmul.f32 %v2623, %v1764
  %v3133 = vmul.f32 %v2628, %v1765
  %v3134 = vmul.f32 %v2633, %v1766
  %v3135 = vmul.f32 %v2638, %v1767
  %v3136 = vmul.f32 %v2643, %v1768
  %v3137 = vmul.f32 %v2648, %v1769
  %v3138 = vmul.f32 %v2653, %v1770
  %v3139 = vmul.f32 %v2658, %v1771
  %v3140 = vmul.f32 %v2663, %v1772
  %v3141 = vmul.f32 %v2668, %v1773
  %v3142 = vmul.f32 %v2673, %v1774
  %v3143 = vmul.f32 %v2678, %v1775
  %v3144 = vmul.f32 %v2683, %v1776
  %v3145 = vmul.f32 %v2688, %v1777
  %v3146 = vmul.f32 %v2693, %v1778
  %v3147 = vmul.f32 %v2698, %v1779
  %v3148 = vmul.f32 %v2703, %v1780
  %v3149 = vmul.f32 %v2708, %v1781
  %v3150 = vmul.f32 %v2713, %v1782
  %v3151 = vmul.f32 %v2718, %v1783
  %v3152 = vmul.f32 %v2723, %v1784
  %v3153 = vmul.f32 %v2728, %v1785
  %v3154 = vmul.f32 %v2733, %v1786
  %v3155 = vmul.f32 %v2738, %v1787
  %v3156 = vmul.f32 %v2743, %v1788
  %v3157 = vmul.f32 %v2748, %v1789
  %v3158 = vmul.f32 %v2753, %v1790
  %v3159 = vmul.f32 %v2758, %v1791
  %v3160 = vmul.f32 %v2763, %v1792
  %v3161 = vmul.f32 %v2768, %v1793
  %v3162 = vmul.f32 %v2773, %v1794
  %v3163 = vmul.f32 %v2778, %v1795
  %v3164 = vmul.f32 %v2783, %v1796
  %v3165 = vmul.f32 %v2788, %v1797
  %v3166 = vmul.f32 %v2793, %v1798
  %v3167 = vmul.f32 %v2798, %v1799
  %v3168 = vmul.f32 %v2803, %v1800
  %v3169 = vmul.f32 %v2808, %v1801
  %v3170 = vmul.f32 %v2813, %v1802
  %v3171 = vmul.f32 %v2818, %v1803
  %v3172 = vmul.f32 %v2823, %v1804
  %v3173 = vmul.f32 %v2828, %v1805
  %v3174 = vmul.f32 %v2833, %v1806
  %v3175 = vmul.f32 %v2838, %v1807
  %v3176 = vmul.f32 %v2843, %v1808
  %v3177 = vmul.f32 %v2848, %v1809
  %v3178 = vmul.f32 %v2853, %v1810
  %v3179 = vmul.f32 %v2858, %v1811
  %v3180 = vmul.f32 %v2863, %v1812
  %v3181 = vmul.f32 %v2868, %v1813
  %v3182 = vmul.f32 %v2873, %v1814
  %v3183 = vmul.f32 %v2878, %v1815
  %v3184 = vmul.f32 %v2883, %v1816
  %v3185 = vmul.f32 %v2888, %v1817
  %v3186 = vmul.f32 %v2893, %v1818
  %v3187 = vmul.f32 %v2898, %v1819
  %v3188 = vmul.f32 %v2903, %v1820
  %v3189 = vmul.f32 %v2908, %v1821
  %v3190 = vmul.f32 %v2913, %v1822
  %v3191 = vmul.f32 %v2918, %v1823
  %v3192 = vmul.f32 %v2923, %v1824
  %v3193 = vmul.f32 %v2928, %v1825
  %v3194 = vmul.f32 %v2933, %v1826
  %v3195 = vmul.f32 %v2938, %v1827
  %v3196 = vmul.f32 %v2943, %v1828
  %v3197 = vmul.f32 %v2948, %v1829
  %v3198 = vmul.f32 %v2953, %v1830
  %v3199 = vmul.f32 %v2958, %v1831
  %v3200 = vmul.f32 %v2963, %v1832
  %v3201 = vmul.f32 %v2968, %v1833
  %v3202 = vmul.f32 %v2973, %v1834
  %vm3203 = vcmask 400384
  %3204 = vst.msk [vmem:[%s2] sm:$0xff] %vm3203, %v2975
  %3205 = vst.msk [vmem:[%s2 + $0x8] sm:$0xff] %vm3203, %v2976
  %3206 = vst.msk [vmem:[%s2 + $0x10] sm:$0xff] %vm3203, %v2977
  %3207 = vst.msk [vmem:[%s2 + $0x18] sm:$0xff] %vm3203, %v2978
  %3208 = vst.msk [vmem:[%s2 + $0x20] sm:$0xff] %vm3203, %v2979
  %3209 = vst.msk [vmem:[%s2 + $0x28] sm:$0xff] %vm3203, %v2980
  %3210 = vst.msk [vmem:[%s2 + $0x30] sm:$0xff] %vm3203, %v2981
  %3211 = vst.msk [vmem:[%s2 + $0x38] sm:$0xff] %vm3203, %v2982
  %3212 = vst.msk [vmem:[%s2 + $0x40] sm:$0xff] %vm3203, %v2983
  %3213 = vst.msk [vmem:[%s2 + $0x48] sm:$0xff] %vm3203, %v2984
  %3214 = vst.msk [vmem:[%s2 + $0x50] sm:$0xff] %vm3203, %v2985
  %3215 = vst.msk [vmem:[%s2 + $0x58] sm:$0xff] %vm3203, %v2986
  %3216 = vst.msk [vmem:[%s2 + $0x60] sm:$0xff] %vm3203, %v2987
  %3217 = vst.msk [vmem:[%s2 + $0x68] sm:$0xff] %vm3203, %v2988
  %3218 = vst.msk [vmem:[%s2 + $0x70] sm:$0xff] %vm3203, %v2989
  %3219 = vst.msk [vmem:[%s2 + $0x78] sm:$0xff] %vm3203, %v2990
  %3220 = vst.msk [vmem:[%s2 + $0x80] sm:$0xff] %vm3203, %v2991
  %3221 = vst.msk [vmem:[%s2 + $0x88] sm:$0xff] %vm3203, %v2992
  %3222 = vst.msk [vmem:[%s2 + $0x90] sm:$0xff] %vm3203, %v2993
  %3223 = vst.msk [vmem:[%s2 + $0x98] sm:$0xff] %vm3203, %v2994
  %3224 = vst.msk [vmem:[%s2 + $0xa0] sm:$0xff] %vm3203, %v2995
  %3225 = vst.msk [vmem:[%s2 + $0xa8] sm:$0xff] %vm3203, %v2996
  %3226 = vst.msk [vmem:[%s2 + $0xb0] sm:$0xff] %vm3203, %v2997
  %3227 = vst.msk [vmem:[%s2 + $0xb8] sm:$0xff] %vm3203, %v2998
  %3228 = vst.msk [vmem:[%s2 + $0xc0] sm:$0xff] %vm3203, %v2999
  %3229 = vst.msk [vmem:[%s2 + $0xc8] sm:$0xff] %vm3203, %v3000
  %3230 = vst.msk [vmem:[%s2 + $0xd0] sm:$0xff] %vm3203, %v3001
  %3231 = vst.msk [vmem:[%s2 + $0xd8] sm:$0xff] %vm3203, %v3002
  %3232 = vst.msk [vmem:[%s2 + $0xe0] sm:$0xff] %vm3203, %v3003
  %3233 = vst.msk [vmem:[%s2 + $0xe8] sm:$0xff] %vm3203, %v3004
  %3234 = vst.msk [vmem:[%s2 + $0xf0] sm:$0xff] %vm3203, %v3005
  %3235 = vst.msk [vmem:[%s2 + $0xf8] sm:$0xff] %vm3203, %v3006
  %3236 = vst.msk [vmem:[%s2 + $0x100] sm:$0xff] %vm3203, %v3007
  %3237 = vst.msk [vmem:[%s2 + $0x108] sm:$0xff] %vm3203, %v3008
  %3238 = vst.msk [vmem:[%s2 + $0x110] sm:$0xff] %vm3203, %v3009
  %3239 = vst.msk [vmem:[%s2 + $0x118] sm:$0xff] %vm3203, %v3010
  %3240 = vst.msk [vmem:[%s2 + $0x120] sm:$0xff] %vm3203, %v3011
  %3241 = vst.msk [vmem:[%s2 + $0x128] sm:$0xff] %vm3203, %v3012
  %3242 = vst.msk [vmem:[%s2 + $0x130] sm:$0xff] %vm3203, %v3013
  %3243 = vst.msk [vmem:[%s2 + $0x138] sm:$0xff] %vm3203, %v3014
  %3244 = vst.msk [vmem:[%s2 + $0x140] sm:$0xff] %vm3203, %v3015
  %3245 = vst.msk [vmem:[%s2 + $0x148] sm:$0xff] %vm3203, %v3016
  %3246 = vst.msk [vmem:[%s2 + $0x150] sm:$0xff] %vm3203, %v3017
  %3247 = vst.msk [vmem:[%s2 + $0x158] sm:$0xff] %vm3203, %v3018
  %3248 = vst.msk [vmem:[%s2 + $0x160] sm:$0xff] %vm3203, %v3019
  %3249 = vst.msk [vmem:[%s2 + $0x168] sm:$0xff] %vm3203, %v3020
  %3250 = vst.msk [vmem:[%s2 + $0x170] sm:$0xff] %vm3203, %v3021
  %3251 = vst.msk [vmem:[%s2 + $0x178] sm:$0xff] %vm3203, %v3022
  %3252 = vst.msk [vmem:[%s2 + $0x180] sm:$0xff] %vm3203, %v3023
  %3253 = vst.msk [vmem:[%s2 + $0x188] sm:$0xff] %vm3203, %v3024
  %3254 = vst.msk [vmem:[%s2 + $0x190] sm:$0xff] %vm3203, %v3025
  %3255 = vst.msk [vmem:[%s2 + $0x198] sm:$0xff] %vm3203, %v3026
  %3256 = vst.msk [vmem:[%s2 + $0x1a0] sm:$0xff] %vm3203, %v3027
  %3257 = vst.msk [vmem:[%s2 + $0x1a8] sm:$0xff] %vm3203, %v3028
  %3258 = vst.msk [vmem:[%s2 + $0x1b0] sm:$0xff] %vm3203, %v3029
  %3259 = vst.msk [vmem:[%s2 + $0x1b8] sm:$0xff] %vm3203, %v3030
  %3260 = vst.msk [vmem:[%s2 + $0x1c0] sm:$0xff] %vm3203, %v3031
  %3261 = vst.msk [vmem:[%s2 + $0x1c8] sm:$0xff] %vm3203, %v3032
  %3262 = vst.msk [vmem:[%s2 + $0x1d0] sm:$0xff] %vm3203, %v3033
  %3263 = vst.msk [vmem:[%s2 + $0x1d8] sm:$0xff] %vm3203, %v3034
  %3264 = vst.msk [vmem:[%s2 + $0x1e0] sm:$0xff] %vm3203, %v3035
  %3265 = vst.msk [vmem:[%s2 + $0x1e8] sm:$0xff] %vm3203, %v3036
  %3266 = vst.msk [vmem:[%s2 + $0x1f0] sm:$0xff] %vm3203, %v3037
  %3267 = vst.msk [vmem:[%s2 + $0x1f8] sm:$0xff] %vm3203, %v3038
  %3268 = vst.msk [vmem:[%s2 + $0x200] sm:$0xff] %vm3203, %v3039
  %3269 = vst.msk [vmem:[%s2 + $0x208] sm:$0xff] %vm3203, %v3040
  %3270 = vst.msk [vmem:[%s2 + $0x210] sm:$0xff] %vm3203, %v3041
  %3271 = vst.msk [vmem:[%s2 + $0x218] sm:$0xff] %vm3203, %v3042
  %3272 = vst.msk [vmem:[%s2 + $0x220] sm:$0xff] %vm3203, %v3043
  %3273 = vst.msk [vmem:[%s2 + $0x228] sm:$0xff] %vm3203, %v3044
  %3274 = vst.msk [vmem:[%s2 + $0x230] sm:$0xff] %vm3203, %v3045
  %3275 = vst.msk [vmem:[%s2 + $0x238] sm:$0xff] %vm3203, %v3046
  %3276 = vst.msk [vmem:[%s2 + $0x240] sm:$0xff] %vm3203, %v3047
  %3277 = vst.msk [vmem:[%s2 + $0x248] sm:$0xff] %vm3203, %v3048
  %3278 = vst.msk [vmem:[%s2 + $0x250] sm:$0xff] %vm3203, %v3049
  %3279 = vst.msk [vmem:[%s2 + $0x258] sm:$0xff] %vm3203, %v3050
  %3280 = vst.msk [vmem:[%s2 + $0x260] sm:$0xff] %vm3203, %v3051
  %3281 = vst.msk [vmem:[%s2 + $0x268] sm:$0xff] %vm3203, %v3052
  %3282 = vst.msk [vmem:[%s2 + $0x270] sm:$0xff] %vm3203, %v3053
  %3283 = vst.msk [vmem:[%s2 + $0x278] sm:$0xff] %vm3203, %v3054
  %3284 = vst.msk [vmem:[%s2 + $0x280] sm:$0xff] %vm3203, %v3055
  %3285 = vst.msk [vmem:[%s2 + $0x288] sm:$0xff] %vm3203, %v3056
  %3286 = vst.msk [vmem:[%s2 + $0x290] sm:$0xff] %vm3203, %v3057
  %3287 = vst.msk [vmem:[%s2 + $0x298] sm:$0xff] %vm3203, %v3058
  %3288 = vst.msk [vmem:[%s2 + $0x2a0] sm:$0xff] %vm3203, %v3059
  %3289 = vst.msk [vmem:[%s2 + $0x2a8] sm:$0xff] %vm3203, %v3060
  %3290 = vst.msk [vmem:[%s2 + $0x2b0] sm:$0xff] %vm3203, %v3061
  %3291 = vst.msk [vmem:[%s2 + $0x2b8] sm:$0xff] %vm3203, %v3062
  %3292 = vst.msk [vmem:[%s2 + $0x2c0] sm:$0xff] %vm3203, %v3063
  %3293 = vst.msk [vmem:[%s2 + $0x2c8] sm:$0xff] %vm3203, %v3064
  %3294 = vst.msk [vmem:[%s2 + $0x2d0] sm:$0xff] %vm3203, %v3065
  %3295 = vst.msk [vmem:[%s2 + $0x2d8] sm:$0xff] %vm3203, %v3066
  %3296 = vst.msk [vmem:[%s2 + $0x2e0] sm:$0xff] %vm3203, %v3067
  %3297 = vst.msk [vmem:[%s2 + $0x2e8] sm:$0xff] %vm3203, %v3068
  %3298 = vst.msk [vmem:[%s2 + $0x2f0] sm:$0xff] %vm3203, %v3069
  %3299 = vst.msk [vmem:[%s2 + $0x2f8] sm:$0xff] %vm3203, %v3070
  %3300 = vst.msk [vmem:[%s2 + $0x300] sm:$0xff] %vm3203, %v3071
  %3301 = vst.msk [vmem:[%s2 + $0x308] sm:$0xff] %vm3203, %v3072
  %3302 = vst.msk [vmem:[%s2 + $0x310] sm:$0xff] %vm3203, %v3073
  %3303 = vst.msk [vmem:[%s2 + $0x318] sm:$0xff] %vm3203, %v3074
  %3304 = vst.msk [vmem:[%s2 + $0x320] sm:$0xff] %vm3203, %v3075
  %3305 = vst.msk [vmem:[%s2 + $0x328] sm:$0xff] %vm3203, %v3076
  %3306 = vst.msk [vmem:[%s2 + $0x330] sm:$0xff] %vm3203, %v3077
  %3307 = vst.msk [vmem:[%s2 + $0x338] sm:$0xff] %vm3203, %v3078
  %3308 = vst.msk [vmem:[%s2 + $0x340] sm:$0xff] %vm3203, %v3079
  %3309 = vst.msk [vmem:[%s2 + $0x348] sm:$0xff] %vm3203, %v3080
  %3310 = vst.msk [vmem:[%s2 + $0x350] sm:$0xff] %vm3203, %v3081
  %3311 = vst.msk [vmem:[%s2 + $0x358] sm:$0xff] %vm3203, %v3082
  %3312 = vst.msk [vmem:[%s2 + $0x360] sm:$0xff] %vm3203, %v3083
  %3313 = vst.msk [vmem:[%s2 + $0x368] sm:$0xff] %vm3203, %v3084
  %3314 = vst.msk [vmem:[%s2 + $0x370] sm:$0xff] %vm3203, %v3085
  %3315 = vst.msk [vmem:[%s2 + $0x378] sm:$0xff] %vm3203, %v3086
  %3316 = vst.msk [vmem:[%s2 + $0x380] sm:$0xff] %vm3203, %v3087
  %3317 = vst.msk [vmem:[%s2 + $0x388] sm:$0xff] %vm3203, %v3088
  %3318 = vst.msk [vmem:[%s2 + $0x390] sm:$0xff] %vm3203, %v3089
  %3319 = vst.msk [vmem:[%s2 + $0x398] sm:$0xff] %vm3203, %v3090
  %3320 = vst.msk [vmem:[%s2 + $0x3a0] sm:$0xff] %vm3203, %v3091
  %3321 = vst.msk [vmem:[%s2 + $0x3a8] sm:$0xff] %vm3203, %v3092
  %3322 = vst.msk [vmem:[%s2 + $0x3b0] sm:$0xff] %vm3203, %v3093
  %3323 = vst.msk [vmem:[%s2 + $0x3b8] sm:$0xff] %vm3203, %v3094
  %3324 = vst.msk [vmem:[%s2 + $0x3c0] sm:$0xff] %vm3203, %v3095
  %3325 = vst.msk [vmem:[%s2 + $0x3c8] sm:$0xff] %vm3203, %v3096
  %3326 = vst.msk [vmem:[%s2 + $0x3d0] sm:$0xff] %vm3203, %v3097
  %3327 = vst.msk [vmem:[%s2 + $0x3d8] sm:$0xff] %vm3203, %v3098
  %3328 = vst.msk [vmem:[%s2 + $0x3e0] sm:$0xff] %vm3203, %v3099
  %3329 = vst.msk [vmem:[%s2 + $0x3e8] sm:$0xff] %vm3203, %v3100
  %3330 = vst.msk [vmem:[%s2 + $0x3f0] sm:$0xff] %vm3203, %v3101
  %3331 = vst.msk [vmem:[%s2 + $0x3f8] sm:$0xff] %vm3203, %v3102
  %3332 = vst.msk [vmem:[%s2 + $0x400] sm:$0xff] %vm3203, %v3103
  %3333 = vst.msk [vmem:[%s2 + $0x408] sm:$0xff] %vm3203, %v3104
  %3334 = vst.msk [vmem:[%s2 + $0x410] sm:$0xff] %vm3203, %v3105
  %3335 = vst.msk [vmem:[%s2 + $0x418] sm:$0xff] %vm3203, %v3106
  %3336 = vst.msk [vmem:[%s2 + $0x420] sm:$0xff] %vm3203, %v3107
  %3337 = vst.msk [vmem:[%s2 + $0x428] sm:$0xff] %vm3203, %v3108
  %3338 = vst.msk [vmem:[%s2 + $0x430] sm:$0xff] %vm3203, %v3109
  %3339 = vst.msk [vmem:[%s2 + $0x438] sm:$0xff] %vm3203, %v3110
  %3340 = vst.msk [vmem:[%s2 + $0x440] sm:$0xff] %vm3203, %v3111
  %3341 = vst.msk [vmem:[%s2 + $0x448] sm:$0xff] %vm3203, %v3112
  %3342 = vst.msk [vmem:[%s2 + $0x450] sm:$0xff] %vm3203, %v3113
  %3343 = vst.msk [vmem:[%s2 + $0x458] sm:$0xff] %vm3203, %v3114
  %3344 = vst.msk [vmem:[%s2 + $0x460] sm:$0xff] %vm3203, %v3115
  %3345 = vst.msk [vmem:[%s2 + $0x468] sm:$0xff] %vm3203, %v3116
  %3346 = vst.msk [vmem:[%s2 + $0x470] sm:$0xff] %vm3203, %v3117
  %3347 = vst.msk [vmem:[%s2 + $0x478] sm:$0xff] %vm3203, %v3118
  %3348 = vst.msk [vmem:[%s2 + $0x480] sm:$0xff] %vm3203, %v3119
  %3349 = vst.msk [vmem:[%s2 + $0x488] sm:$0xff] %vm3203, %v3120
  %3350 = vst.msk [vmem:[%s2 + $0x490] sm:$0xff] %vm3203, %v3121
  %3351 = vst.msk [vmem:[%s2 + $0x498] sm:$0xff] %vm3203, %v3122
  %3352 = vst.msk [vmem:[%s2 + $0x4a0] sm:$0xff] %vm3203, %v3123
  %3353 = vst.msk [vmem:[%s2 + $0x4a8] sm:$0xff] %vm3203, %v3124
  %3354 = vst.msk [vmem:[%s2 + $0x4b0] sm:$0xff] %vm3203, %v3125
  %3355 = vst.msk [vmem:[%s2 + $0x4b8] sm:$0xff] %vm3203, %v3126
  %3356 = vst.msk [vmem:[%s2 + $0x4c0] sm:$0xff] %vm3203, %v3127
  %3357 = vst.msk [vmem:[%s2 + $0x4c8] sm:$0xff] %vm3203, %v3128
  %3358 = vst.msk [vmem:[%s2 + $0x4d0] sm:$0xff] %vm3203, %v3129
  %3359 = vst.msk [vmem:[%s2 + $0x4d8] sm:$0xff] %vm3203, %v3130
  %3360 = vst.msk [vmem:[%s2 + $0x4e0] sm:$0xff] %vm3203, %v3131
  %3361 = vst.msk [vmem:[%s2 + $0x4e8] sm:$0xff] %vm3203, %v3132
  %3362 = vst.msk [vmem:[%s2 + $0x4f0] sm:$0xff] %vm3203, %v3133
  %3363 = vst.msk [vmem:[%s2 + $0x4f8] sm:$0xff] %vm3203, %v3134
  %3364 = vst.msk [vmem:[%s2 + $0x500] sm:$0xff] %vm3203, %v3135
  %3365 = vst.msk [vmem:[%s2 + $0x508] sm:$0xff] %vm3203, %v3136
  %3366 = vst.msk [vmem:[%s2 + $0x510] sm:$0xff] %vm3203, %v3137
  %3367 = vst.msk [vmem:[%s2 + $0x518] sm:$0xff] %vm3203, %v3138
  %3368 = vst.msk [vmem:[%s2 + $0x520] sm:$0xff] %vm3203, %v3139
  %3369 = vst.msk [vmem:[%s2 + $0x528] sm:$0xff] %vm3203, %v3140
  %3370 = vst.msk [vmem:[%s2 + $0x530] sm:$0xff] %vm3203, %v3141
  %3371 = vst.msk [vmem:[%s2 + $0x538] sm:$0xff] %vm3203, %v3142
  %3372 = vst.msk [vmem:[%s2 + $0x540] sm:$0xff] %vm3203, %v3143
  %3373 = vst.msk [vmem:[%s2 + $0x548] sm:$0xff] %vm3203, %v3144
  %3374 = vst.msk [vmem:[%s2 + $0x550] sm:$0xff] %vm3203, %v3145
  %3375 = vst.msk [vmem:[%s2 + $0x558] sm:$0xff] %vm3203, %v3146
  %3376 = vst.msk [vmem:[%s2 + $0x560] sm:$0xff] %vm3203, %v3147
  %3377 = vst.msk [vmem:[%s2 + $0x568] sm:$0xff] %vm3203, %v3148
  %3378 = vst.msk [vmem:[%s2 + $0x570] sm:$0xff] %vm3203, %v3149
  %3379 = vst.msk [vmem:[%s2 + $0x578] sm:$0xff] %vm3203, %v3150
  %3380 = vst.msk [vmem:[%s2 + $0x580] sm:$0xff] %vm3203, %v3151
  %3381 = vst.msk [vmem:[%s2 + $0x588] sm:$0xff] %vm3203, %v3152
  %3382 = vst.msk [vmem:[%s2 + $0x590] sm:$0xff] %vm3203, %v3153
  %3383 = vst.msk [vmem:[%s2 + $0x598] sm:$0xff] %vm3203, %v3154
  %3384 = vst.msk [vmem:[%s2 + $0x5a0] sm:$0xff] %vm3203, %v3155
  %3385 = vst.msk [vmem:[%s2 + $0x5a8] sm:$0xff] %vm3203, %v3156
  %3386 = vst.msk [vmem:[%s2 + $0x5b0] sm:$0xff] %vm3203, %v3157
  %3387 = vst.msk [vmem:[%s2 + $0x5b8] sm:$0xff] %vm3203, %v3158
  %3388 = vst.msk [vmem:[%s2 + $0x5c0] sm:$0xff] %vm3203, %v3159
  %3389 = vst.msk [vmem:[%s2 + $0x5c8] sm:$0xff] %vm3203, %v3160
  %3390 = vst.msk [vmem:[%s2 + $0x5d0] sm:$0xff] %vm3203, %v3161
  %3391 = vst.msk [vmem:[%s2 + $0x5d8] sm:$0xff] %vm3203, %v3162
  %3392 = vst.msk [vmem:[%s2 + $0x5e0] sm:$0xff] %vm3203, %v3163
  %3393 = vst.msk [vmem:[%s2 + $0x5e8] sm:$0xff] %vm3203, %v3164
  %3394 = vst.msk [vmem:[%s2 + $0x5f0] sm:$0xff] %vm3203, %v3165
  %3395 = vst.msk [vmem:[%s2 + $0x5f8] sm:$0xff] %vm3203, %v3166
  %3396 = vst.msk [vmem:[%s2 + $0x600] sm:$0xff] %vm3203, %v3167
  %3397 = vst.msk [vmem:[%s2 + $0x608] sm:$0xff] %vm3203, %v3168
  %3398 = vst.msk [vmem:[%s2 + $0x610] sm:$0xff] %vm3203, %v3169
  %3399 = vst.msk [vmem:[%s2 + $0x618] sm:$0xff] %vm3203, %v3170
  %3400 = vst.msk [vmem:[%s2 + $0x620] sm:$0xff] %vm3203, %v3171
  %3401 = vst.msk [vmem:[%s2 + $0x628] sm:$0xff] %vm3203, %v3172
  %3402 = vst.msk [vmem:[%s2 + $0x630] sm:$0xff] %vm3203, %v3173
  %3403 = vst.msk [vmem:[%s2 + $0x638] sm:$0xff] %vm3203, %v3174
  %3404 = vst.msk [vmem:[%s2 + $0x640] sm:$0xff] %vm3203, %v3175
  %3405 = vst.msk [vmem:[%s2 + $0x648] sm:$0xff] %vm3203, %v3176
  %3406 = vst.msk [vmem:[%s2 + $0x650] sm:$0xff] %vm3203, %v3177
  %3407 = vst.msk [vmem:[%s2 + $0x658] sm:$0xff] %vm3203, %v3178
  %3408 = vst.msk [vmem:[%s2 + $0x660] sm:$0xff] %vm3203, %v3179
  %3409 = vst.msk [vmem:[%s2 + $0x668] sm:$0xff] %vm3203, %v3180
  %3410 = vst.msk [vmem:[%s2 + $0x670] sm:$0xff] %vm3203, %v3181
  %3411 = vst.msk [vmem:[%s2 + $0x678] sm:$0xff] %vm3203, %v3182
  %3412 = vst.msk [vmem:[%s2 + $0x680] sm:$0xff] %vm3203, %v3183
  %3413 = vst.msk [vmem:[%s2 + $0x688] sm:$0xff] %vm3203, %v3184
  %3414 = vst.msk [vmem:[%s2 + $0x690] sm:$0xff] %vm3203, %v3185
  %3415 = vst.msk [vmem:[%s2 + $0x698] sm:$0xff] %vm3203, %v3186
  %3416 = vst.msk [vmem:[%s2 + $0x6a0] sm:$0xff] %vm3203, %v3187
  %3417 = vst.msk [vmem:[%s2 + $0x6a8] sm:$0xff] %vm3203, %v3188
  %3418 = vst.msk [vmem:[%s2 + $0x6b0] sm:$0xff] %vm3203, %v3189
  %3419 = vst.msk [vmem:[%s2 + $0x6b8] sm:$0xff] %vm3203, %v3190
  %3420 = vst.msk [vmem:[%s2 + $0x6c0] sm:$0xff] %vm3203, %v3191
  %3421 = vst.msk [vmem:[%s2 + $0x6c8] sm:$0xff] %vm3203, %v3192
  %3422 = vst.msk [vmem:[%s2 + $0x6d0] sm:$0xff] %vm3203, %v3193
  %3423 = vst.msk [vmem:[%s2 + $0x6d8] sm:$0xff] %vm3203, %v3194
  %3424 = vst.msk [vmem:[%s2 + $0x6e0] sm:$0xff] %vm3203, %v3195
  %3425 = vst.msk [vmem:[%s2 + $0x6e8] sm:$0xff] %vm3203, %v3196
  %3426 = vst.msk [vmem:[%s2 + $0x6f0] sm:$0xff] %vm3203, %v3197
  %3427 = vst.msk [vmem:[%s2 + $0x6f8] sm:$0xff] %vm3203, %v3198
  %3428 = vst.msk [vmem:[%s2 + $0x700] sm:$0xff] %vm3203, %v3199
  %3429 = vst.msk [vmem:[%s2 + $0x708] sm:$0xff] %vm3203, %v3200
  %3430 = vst.msk [vmem:[%s2 + $0x710] sm:$0xff] %vm3203, %v3201
  %3431 = vst.msk [vmem:[%s2 + $0x718] sm:$0xff] %vm3203, %v3202
  // Predicated region
  $region10: #{tpu_custom_call.1} parent=0 // pred_check
    _
  $region11: #{tpu_custom_call.1} parent=0 // pred_check_branch
    %3433 = sbr.rel (0) target = $region13
  $region12: #{tpu_custom_call.1} parent=0 // pred_region
    _
  $region13: #{tpu_custom_call.1} parent=0 // pred_fallthru
    _
  // Predicated region
  $region14: #{tpu_custom_call.1} parent=0 // pred_check
    _
  $region15: #{tpu_custom_call.1} parent=0 // pred_check_branch
    %3435 = sbr.rel (0) target = $region17
  $region16: #{tpu_custom_call.1} parent=0 // pred_region
    _
  $region17: #{tpu_custom_call.1} parent=0 // pred_fallthru
    _

// kernel: tpu_custom_call.1
$region0: #{tpu_custom_call.1}
  #allocation0 [shape = 'u32[]', space=smem, size = 0x4, offset = 0x4, fixed_abs, tag = 'smem constant byte address 0x4 - core index']
  #allocation1 [shape = 'u32[144,128]{1,0:T(1,128)}', space=vmem, size = 0x12000, scoped, tag = 'internal scratch']
  %s0 = inlined_call_operand.vmem [shape: f32[1824,1], index: 0, kind: input, shape index: {}]
  %s1 = inlined_call_operand.vmem [shape: f32[1824,49], index: 1, kind: input, shape index: {}]
  %s2 = inlined_call_operand.vmem [shape: f32[1824,49], index: 2, kind: output, shape index: {}]
  %s3 = sld [smem:[#allocation0]]
  $region18: #{tpu_custom_call.1} parent=0
    _
  %s5 = ssub.s32 1, %s3
  %s6 = scalar_select 0, %s5, %s3
  // Predicated region
  $region2: #{tpu_custom_call.1} parent=0 // pred_check
    _
  $region3: #{tpu_custom_call.1} parent=0 // pred_check_branch
    %8 = sbr.rel (0) target = $region5
  $region4: #{tpu_custom_call.1} parent=0 // pred_region
    _
  $region5: #{tpu_custom_call.1} parent=0 // pred_fallthru
    _
  // Predicated region
  $region6: #{tpu_custom_call.1} parent=0 // pred_check
    _
  $region7: #{tpu_custom_call.1} parent=0 // pred_check_branch
    %10 = sbr.rel (0) target = $region9
  $region8: #{tpu_custom_call.1} parent=0 // pred_region
    _
  $region9: #{tpu_custom_call.1} parent=0 // pred_fallthru
    _
  %v11 = vld [vmem:[%s0] sm:$0xff]
  %v12 = vld [vmem:[%s0 + $0x8] sm:$0xff]
  %v13 = vld [vmem:[%s0 + $0x10] sm:$0xff]
  %v14 = vld [vmem:[%s0 + $0x18] sm:$0xff]
  %v15 = vld [vmem:[%s0 + $0x20] sm:$0xff]
  %v16 = vld [vmem:[%s0 + $0x28] sm:$0xff]
  %v17 = vld [vmem:[%s0 + $0x30] sm:$0xff]
  %v18 = vld [vmem:[%s0 + $0x38] sm:$0xff]
  %v19 = vld [vmem:[%s0 + $0x40] sm:$0xff]
  %v20 = vld [vmem:[%s0 + $0x48] sm:$0xff]
  %v21 = vld [vmem:[%s0 + $0x50] sm:$0xff]
  %v22 = vld [vmem:[%s0 + $0x58] sm:$0xff]
  %v23 = vld [vmem:[%s0 + $0x60] sm:$0xff]
  %v24 = vld [vmem:[%s0 + $0x68] sm:$0xff]
  %v25 = vld [vmem:[%s0 + $0x70] sm:$0xff]
  %v26 = vld [vmem:[%s0 + $0x78] sm:$0xff]
  %v27 = vld [vmem:[%s0 + $0x80] sm:$0xff]
  %v28 = vld [vmem:[%s0 + $0x88] sm:$0xff]
  %v29 = vld [vmem:[%s0 + $0x90] sm:$0xff]
  %v30 = vld [vmem:[%s0 + $0x98] sm:$0xff]
  %v31 = vld [vmem:[%s0 + $0xa0] sm:$0xff]
  %v32 = vld [vmem:[%s0 + $0xa8] sm:$0xff]
  %v33 = vld [vmem:[%s0 + $0xb0] sm:$0xff]
  %v34 = vld [vmem:[%s0 + $0xb8] sm:$0xff]
  %v35 = vld [vmem:[%s0 + $0xc0] sm:$0xff]
  %v36 = vld [vmem:[%s0 + $0xc8] sm:$0xff]
  %v37 = vld [vmem:[%s0 + $0xd0] sm:$0xff]
  %v38 = vld [vmem:[%s0 + $0xd8] sm:$0xff]
  %v39 = vld [vmem:[%s0 + $0xe0] sm:$0xff]
  %v40 = vld [vmem:[%s0 + $0xe8] sm:$0xff]
  %v41 = vld [vmem:[%s0 + $0xf0] sm:$0xff]
  %v42 = vld [vmem:[%s0 + $0xf8] sm:$0xff]
  %v43 = vld [vmem:[%s0 + $0x100] sm:$0xff]
  %v44 = vld [vmem:[%s0 + $0x108] sm:$0xff]
  %v45 = vld [vmem:[%s0 + $0x110] sm:$0xff]
  %v46 = vld [vmem:[%s0 + $0x118] sm:$0xff]
  %v47 = vld [vmem:[%s0 + $0x120] sm:$0xff]
  %v48 = vld [vmem:[%s0 + $0x128] sm:$0xff]
  %v49 = vld [vmem:[%s0 + $0x130] sm:$0xff]
  %v50 = vld [vmem:[%s0 + $0x138] sm:$0xff]
  %v51 = vld [vmem:[%s0 + $0x140] sm:$0xff]
  %v52 = vld [vmem:[%s0 + $0x148] sm:$0xff]
  %v53 = vld [vmem:[%s0 + $0x150] sm:$0xff]
  %v54 = vld [vmem:[%s0 + $0x158] sm:$0xff]
  %v55 = vld [vmem:[%s0 + $0x160] sm:$0xff]
  %v56 = vld [vmem:[%s0 + $0x168] sm:$0xff]
  %v57 = vld [vmem:[%s0 + $0x170] sm:$0xff]
  %v58 = vld [vmem:[%s0 + $0x178] sm:$0xff]
  %v59 = vld [vmem:[%s0 + $0x180] sm:$0xff]
  %v60 = vld [vmem:[%s0 + $0x188] sm:$0xff]
  %v61 = vld [vmem:[%s0 + $0x190] sm:$0xff]
  %v62 = vld [vmem:[%s0 + $0x198] sm:$0xff]
  %v63 = vld [vmem:[%s0 + $0x1a0] sm:$0xff]
  %v64 = vld [vmem:[%s0 + $0x1a8] sm:$0xff]
  %v65 = vld [vmem:[%s0 + $0x1b0] sm:$0xff]
  %v66 = vld [vmem:[%s0 + $0x1b8] sm:$0xff]
  %v67 = vld [vmem:[%s0 + $0x1c0] sm:$0xff]
  %v68 = vld [vmem:[%s0 + $0x1c8] sm:$0xff]
  %v69 = vld [vmem:[%s0 + $0x1d0] sm:$0xff]
  %v70 = vld [vmem:[%s0 + $0x1d8] sm:$0xff]
  %v71 = vld [vmem:[%s0 + $0x1e0] sm:$0xff]
  %v72 = vld [vmem:[%s0 + $0x1e8] sm:$0xff]
  %v73 = vld [vmem:[%s0 + $0x1f0] sm:$0xff]
  %v74 = vld [vmem:[%s0 + $0x1f8] sm:$0xff]
  %v75 = vld [vmem:[%s0 + $0x200] sm:$0xff]
  %v76 = vld [vmem:[%s0 + $0x208] sm:$0xff]
  %v77 = vld [vmem:[%s0 + $0x210] sm:$0xff]
  %v78 = vld [vmem:[%s0 + $0x218] sm:$0xff]
  %v79 = vld [vmem:[%s0 + $0x220] sm:$0xff]
  %v80 = vld [vmem:[%s0 + $0x228] sm:$0xff]
  %v81 = vld [vmem:[%s0 + $0x230] sm:$0xff]
  %v82 = vld [vmem:[%s0 + $0x238] sm:$0xff]
  %v83 = vld [vmem:[%s0 + $0x240] sm:$0xff]
  %v84 = vld [vmem:[%s0 + $0x248] sm:$0xff]
  %v85 = vld [vmem:[%s0 + $0x250] sm:$0xff]
  %v86 = vld [vmem:[%s0 + $0x258] sm:$0xff]
  %v87 = vld [vmem:[%s0 + $0x260] sm:$0xff]
  %v88 = vld [vmem:[%s0 + $0x268] sm:$0xff]
  %v89 = vld [vmem:[%s0 + $0x270] sm:$0xff]
  %v90 = vld [vmem:[%s0 + $0x278] sm:$0xff]
  %v91 = vld [vmem:[%s0 + $0x280] sm:$0xff]
  %v92 = vld [vmem:[%s0 + $0x288] sm:$0xff]
  %v93 = vld [vmem:[%s0 + $0x290] sm:$0xff]
  %v94 = vld [vmem:[%s0 + $0x298] sm:$0xff]
  %v95 = vld [vmem:[%s0 + $0x2a0] sm:$0xff]
  %v96 = vld [vmem:[%s0 + $0x2a8] sm:$0xff]
  %v97 = vld [vmem:[%s0 + $0x2b0] sm:$0xff]
  %v98 = vld [vmem:[%s0 + $0x2b8] sm:$0xff]
  %v99 = vld [vmem:[%s0 + $0x2c0] sm:$0xff]
  %v100 = vld [vmem:[%s0 + $0x2c8] sm:$0xff]
  %v101 = vld [vmem:[%s0 + $0x2d0] sm:$0xff]
  %v102 = vld [vmem:[%s0 + $0x2d8] sm:$0xff]
  %v103 = vld [vmem:[%s0 + $0x2e0] sm:$0xff]
  %v104 = vld [vmem:[%s0 + $0x2e8] sm:$0xff]
  %v105 = vld [vmem:[%s0 + $0x2f0] sm:$0xff]
  %v106 = vld [vmem:[%s0 + $0x2f8] sm:$0xff]
  %v107 = vld [vmem:[%s0 + $0x300] sm:$0xff]
  %v108 = vld [vmem:[%s0 + $0x308] sm:$0xff]
  %v109 = vld [vmem:[%s0 + $0x310] sm:$0xff]
  %v110 = vld [vmem:[%s0 + $0x318] sm:$0xff]
  %v111 = vld [vmem:[%s0 + $0x320] sm:$0xff]
  %v112 = vld [vmem:[%s0 + $0x328] sm:$0xff]
  %v113 = vld [vmem:[%s0 + $0x330] sm:$0xff]
  %v114 = vld [vmem:[%s0 + $0x338] sm:$0xff]
  %v115 = vld [vmem:[%s0 + $0x340] sm:$0xff]
  %v116 = vld [vmem:[%s0 + $0x348] sm:$0xff]
  %v117 = vld [vmem:[%s0 + $0x350] sm:$0xff]
  %v118 = vld [vmem:[%s0 + $0x358] sm:$0xff]
  %v119 = vld [vmem:[%s0 + $0x360] sm:$0xff]
  %v120 = vld [vmem:[%s0 + $0x368] sm:$0xff]
  %v121 = vld [vmem:[%s0 + $0x370] sm:$0xff]
  %v122 = vld [vmem:[%s0 + $0x378] sm:$0xff]
  %v123 = vld [vmem:[%s0 + $0x380] sm:$0xff]
  %v124 = vld [vmem:[%s0 + $0x388] sm:$0xff]
  %v125 = vld [vmem:[%s0 + $0x390] sm:$0xff]
  %v126 = vld [vmem:[%s0 + $0x398] sm:$0xff]
  %v127 = vld [vmem:[%s0 + $0x3a0] sm:$0xff]
  %v128 = vld [vmem:[%s0 + $0x3a8] sm:$0xff]
  %v129 = vld [vmem:[%s0 + $0x3b0] sm:$0xff]
  %v130 = vld [vmem:[%s0 + $0x3b8] sm:$0xff]
  %v131 = vld [vmem:[%s0 + $0x3c0] sm:$0xff]
  %v132 = vld [vmem:[%s0 + $0x3c8] sm:$0xff]
  %v133 = vld [vmem:[%s0 + $0x3d0] sm:$0xff]
  %v134 = vld [vmem:[%s0 + $0x3d8] sm:$0xff]
  %v135 = vld [vmem:[%s0 + $0x3e0] sm:$0xff]
  %v136 = vld [vmem:[%s0 + $0x3e8] sm:$0xff]
  %v137 = vld [vmem:[%s0 + $0x3f0] sm:$0xff]
  %v138 = vld [vmem:[%s0 + $0x3f8] sm:$0xff]
  %v139 = vld [vmem:[%s0 + $0x400] sm:$0xff]
  %v140 = vld [vmem:[%s0 + $0x408] sm:$0xff]
  %v141 = vld [vmem:[%s0 + $0x410] sm:$0xff]
  %v142 = vld [vmem:[%s0 + $0x418] sm:$0xff]
  %v143 = vld [vmem:[%s0 + $0x420] sm:$0xff]
  %v144 = vld [vmem:[%s0 + $0x428] sm:$0xff]
  %v145 = vld [vmem:[%s0 + $0x430] sm:$0xff]
  %v146 = vld [vmem:[%s0 + $0x438] sm:$0xff]
  %v147 = vld [vmem:[%s0 + $0x440] sm:$0xff]
  %v148 = vld [vmem:[%s0 + $0x448] sm:$0xff]
  %v149 = vld [vmem:[%s0 + $0x450] sm:$0xff]
  %v150 = vld [vmem:[%s0 + $0x458] sm:$0xff]
  %v151 = vld [vmem:[%s0 + $0x460] sm:$0xff]
  %v152 = vld [vmem:[%s0 + $0x468] sm:$0xff]
  %v153 = vld [vmem:[%s0 + $0x470] sm:$0xff]
  %v154 = vld [vmem:[%s0 + $0x478] sm:$0xff]
  %v155 = vld [vmem:[%s0 + $0x480] sm:$0xff]
  %v156 = vld [vmem:[%s0 + $0x488] sm:$0xff]
  %v157 = vld [vmem:[%s0 + $0x490] sm:$0xff]
  %v158 = vld [vmem:[%s0 + $0x498] sm:$0xff]
  %v159 = vld [vmem:[%s0 + $0x4a0] sm:$0xff]
  %v160 = vld [vmem:[%s0 + $0x4a8] sm:$0xff]
  %v161 = vld [vmem:[%s0 + $0x4b0] sm:$0xff]
  %v162 = vld [vmem:[%s0 + $0x4b8] sm:$0xff]
  %v163 = vld [vmem:[%s0 + $0x4c0] sm:$0xff]
  %v164 = vld [vmem:[%s0 + $0x4c8] sm:$0xff]
  %v165 = vld [vmem:[%s0 + $0x4d0] sm:$0xff]
  %v166 = vld [vmem:[%s0 + $0x4d8] sm:$0xff]
  %v167 = vld [vmem:[%s0 + $0x4e0] sm:$0xff]
  %v168 = vld [vmem:[%s0 + $0x4e8] sm:$0xff]
  %v169 = vld [vmem:[%s0 + $0x4f0] sm:$0xff]
  %v170 = vld [vmem:[%s0 + $0x4f8] sm:$0xff]
  %v171 = vld [vmem:[%s0 + $0x500] sm:$0xff]
  %v172 = vld [vmem:[%s0 + $0x508] sm:$0xff]
  %v173 = vld [vmem:[%s0 + $0x510] sm:$0xff]
  %v174 = vld [vmem:[%s0 + $0x518] sm:$0xff]
  %v175 = vld [vmem:[%s0 + $0x520] sm:$0xff]
  %v176 = vld [vmem:[%s0 + $0x528] sm:$0xff]
  %v177 = vld [vmem:[%s0 + $0x530] sm:$0xff]
  %v178 = vld [vmem:[%s0 + $0x538] sm:$0xff]
  %v179 = vld [vmem:[%s0 + $0x540] sm:$0xff]
  %v180 = vld [vmem:[%s0 + $0x548] sm:$0xff]
  %v181 = vld [vmem:[%s0 + $0x550] sm:$0xff]
  %v182 = vld [vmem:[%s0 + $0x558] sm:$0xff]
  %v183 = vld [vmem:[%s0 + $0x560] sm:$0xff]
  %v184 = vld [vmem:[%s0 + $0x568] sm:$0xff]
  %v185 = vld [vmem:[%s0 + $0x570] sm:$0xff]
  %v186 = vld [vmem:[%s0 + $0x578] sm:$0xff]
  %v187 = vld [vmem:[%s0 + $0x580] sm:$0xff]
  %v188 = vld [vmem:[%s0 + $0x588] sm:$0xff]
  %v189 = vld [vmem:[%s0 + $0x590] sm:$0xff]
  %v190 = vld [vmem:[%s0 + $0x598] sm:$0xff]
  %v191 = vld [vmem:[%s0 + $0x5a0] sm:$0xff]
  %v192 = vld [vmem:[%s0 + $0x5a8] sm:$0xff]
  %v193 = vld [vmem:[%s0 + $0x5b0] sm:$0xff]
  %v194 = vld [vmem:[%s0 + $0x5b8] sm:$0xff]
  %v195 = vld [vmem:[%s0 + $0x5c0] sm:$0xff]
  %v196 = vld [vmem:[%s0 + $0x5c8] sm:$0xff]
  %v197 = vld [vmem:[%s0 + $0x5d0] sm:$0xff]
  %v198 = vld [vmem:[%s0 + $0x5d8] sm:$0xff]
  %v199 = vld [vmem:[%s0 + $0x5e0] sm:$0xff]
  %v200 = vld [vmem:[%s0 + $0x5e8] sm:$0xff]
  %v201 = vld [vmem:[%s0 + $0x5f0] sm:$0xff]
  %v202 = vld [vmem:[%s0 + $0x5f8] sm:$0xff]
  %v203 = vld [vmem:[%s0 + $0x600] sm:$0xff]
  %v204 = vld [vmem:[%s0 + $0x608] sm:$0xff]
  %v205 = vld [vmem:[%s0 + $0x610] sm:$0xff]
  %v206 = vld [vmem:[%s0 + $0x618] sm:$0xff]
  %v207 = vld [vmem:[%s0 + $0x620] sm:$0xff]
  %v208 = vld [vmem:[%s0 + $0x628] sm:$0xff]
  %v209 = vld [vmem:[%s0 + $0x630] sm:$0xff]
  %v210 = vld [vmem:[%s0 + $0x638] sm:$0xff]
  %v211 = vld [vmem:[%s0 + $0x640] sm:$0xff]
  %v212 = vld [vmem:[%s0 + $0x648] sm:$0xff]
  %v213 = vld [vmem:[%s0 + $0x650] sm:$0xff]
  %v214 = vld [vmem:[%s0 + $0x658] sm:$0xff]
  %v215 = vld [vmem:[%s0 + $0x660] sm:$0xff]
  %v216 = vld [vmem:[%s0 + $0x668] sm:$0xff]
  %v217 = vld [vmem:[%s0 + $0x670] sm:$0xff]
  %v218 = vld [vmem:[%s0 + $0x678] sm:$0xff]
  %v219 = vld [vmem:[%s0 + $0x680] sm:$0xff]
  %v220 = vld [vmem:[%s0 + $0x688] sm:$0xff]
  %v221 = vld [vmem:[%s0 + $0x690] sm:$0xff]
  %v222 = vld [vmem:[%s0 + $0x698] sm:$0xff]
  %v223 = vld [vmem:[%s0 + $0x6a0] sm:$0xff]
  %v224 = vld [vmem:[%s0 + $0x6a8] sm:$0xff]
  %v225 = vld [vmem:[%s0 + $0x6b0] sm:$0xff]
  %v226 = vld [vmem:[%s0 + $0x6b8] sm:$0xff]
  %v227 = vld [vmem:[%s0 + $0x6c0] sm:$0xff]
  %v228 = vld [vmem:[%s0 + $0x6c8] sm:$0xff]
  %v229 = vld [vmem:[%s0 + $0x6d0] sm:$0xff]
  %v230 = vld [vmem:[%s0 + $0x6d8] sm:$0xff]
  %v231 = vld [vmem:[%s0 + $0x6e0] sm:$0xff]
  %v232 = vld [vmem:[%s0 + $0x6e8] sm:$0xff]
  %v233 = vld [vmem:[%s0 + $0x6f0] sm:$0xff]
  %v234 = vld [vmem:[%s0 + $0x6f8] sm:$0xff]
  %v235 = vld [vmem:[%s0 + $0x700] sm:$0xff]
  %v236 = vld [vmem:[%s0 + $0x708] sm:$0xff]
  %v237 = vld [vmem:[%s0 + $0x710] sm:$0xff]
  %v238 = vld [vmem:[%s0 + $0x718] sm:$0xff]
  %v239 = vxor.u32 %v11, 2147483648
  %v240 = vxor.u32 %v12, 2147483648
  %v241 = vxor.u32 %v13, 2147483648
  %v242 = vxor.u32 %v14, 2147483648
  %v243 = vxor.u32 %v15, 2147483648
  %v244 = vxor.u32 %v16, 2147483648
  %v245 = vxor.u32 %v17, 2147483648
  %v246 = vxor.u32 %v18, 2147483648
  %v247 = vxor.u32 %v19, 2147483648
  %v248 = vxor.u32 %v20, 2147483648
  %v249 = vxor.u32 %v21, 2147483648
  %v250 = vxor.u32 %v22, 2147483648
  %v251 = vxor.u32 %v23, 2147483648
  %v252 = vxor.u32 %v24, 2147483648
  %v253 = vxor.u32 %v25, 2147483648
  %v254 = vxor.u32 %v26, 2147483648
  %v255 = vxor.u32 %v27, 2147483648
  %v256 = vxor.u32 %v28, 2147483648
  %v257 = vxor.u32 %v29, 2147483648
  %v258 = vxor.u32 %v30, 2147483648
  %v259 = vxor.u32 %v31, 2147483648
  %v260 = vxor.u32 %v32, 2147483648
  %v261 = vxor.u32 %v33, 2147483648
  %v262 = vxor.u32 %v34, 2147483648
  %v263 = vxor.u32 %v35, 2147483648
  %v264 = vxor.u32 %v36, 2147483648
  %v265 = vxor.u32 %v37, 2147483648
  %v266 = vxor.u32 %v38, 2147483648
  %v267 = vxor.u32 %v39, 2147483648
  %v268 = vxor.u32 %v40, 2147483648
  %v269 = vxor.u32 %v41, 2147483648
  %v270 = vxor.u32 %v42, 2147483648
  %v271 = vxor.u32 %v43, 2147483648
  %v272 = vxor.u32 %v44, 2147483648
  %v273 = vxor.u32 %v45, 2147483648
  %v274 = vxor.u32 %v46, 2147483648
  %v275 = vxor.u32 %v47, 2147483648
  %v276 = vxor.u32 %v48, 2147483648
  %v277 = vxor.u32 %v49, 2147483648
  %v278 = vxor.u32 %v50, 2147483648
  %v279 = vxor.u32 %v51, 2147483648
  %v280 = vxor.u32 %v52, 2147483648
  %v281 = vxor.u32 %v53, 2147483648
  %v282 = vxor.u32 %v54, 2147483648
  %v283 = vxor.u32 %v55, 2147483648
  %v284 = vxor.u32 %v56, 2147483648
  %v285 = vxor.u32 %v57, 2147483648
  %v286 = vxor.u32 %v58, 2147483648
  %v287 = vxor.u32 %v59, 2147483648
  %v288 = vxor.u32 %v60, 2147483648
  %v289 = vxor.u32 %v61, 2147483648
  %v290 = vxor.u32 %v62, 2147483648
  %v291 = vxor.u32 %v63, 2147483648
  %v292 = vxor.u32 %v64, 2147483648
  %v293 = vxor.u32 %v65, 2147483648
  %v294 = vxor.u32 %v66, 2147483648
  %v295 = vxor.u32 %v67, 2147483648
  %v296 = vxor.u32 %v68, 2147483648
  %v297 = vxor.u32 %v69, 2147483648
  %v298 = vxor.u32 %v70, 2147483648
  %v299 = vxor.u32 %v71, 2147483648
  %v300 = vxor.u32 %v72, 2147483648
  %v301 = vxor.u32 %v73, 2147483648
  %v302 = vxor.u32 %v74, 2147483648
  %v303 = vxor.u32 %v75, 2147483648
  %v304 = vxor.u32 %v76, 2147483648
  %v305 = vxor.u32 %v77, 2147483648
  %v306 = vxor.u32 %v78, 2147483648
  %v307 = vxor.u32 %v79, 2147483648
  %v308 = vxor.u32 %v80, 2147483648
  %v309 = vxor.u32 %v81, 2147483648
  %v310 = vxor.u32 %v82, 2147483648
  %v311 = vxor.u32 %v83, 2147483648
  %v312 = vxor.u32 %v84, 2147483648
  %v313 = vxor.u32 %v85, 2147483648
  %v314 = vxor.u32 %v86, 2147483648
  %v315 = vxor.u32 %v87, 2147483648
  %v316 = vxor.u32 %v88, 2147483648
  %v317 = vxor.u32 %v89, 2147483648
  %v318 = vxor.u32 %v90, 2147483648
  %v319 = vxor.u32 %v91, 2147483648
  %v320 = vxor.u32 %v92, 2147483648
  %v321 = vxor.u32 %v93, 2147483648
  %v322 = vxor.u32 %v94, 2147483648
  %v323 = vxor.u32 %v95, 2147483648
  %v324 = vxor.u32 %v96, 2147483648
  %v325 = vxor.u32 %v97, 2147483648
  %v326 = vxor.u32 %v98, 2147483648
  %v327 = vxor.u32 %v99, 2147483648
  %v328 = vxor.u32 %v100, 2147483648
  %v329 = vxor.u32 %v101, 2147483648
  %v330 = vxor.u32 %v102, 2147483648
  %v331 = vxor.u32 %v103, 2147483648
  %v332 = vxor.u32 %v104, 2147483648
  %v333 = vxor.u32 %v105, 2147483648
  %v334 = vxor.u32 %v106, 2147483648
  %v335 = vxor.u32 %v107, 2147483648
  %v336 = vxor.u32 %v108, 2147483648
  %v337 = vxor.u32 %v109, 2147483648
  %v338 = vxor.u32 %v110, 2147483648
  %v339 = vxor.u32 %v111, 2147483648
  %v340 = vxor.u32 %v112, 2147483648
  %v341 = vxor.u32 %v113, 2147483648
  %v342 = vxor.u32 %v114, 2147483648
  %v343 = vxor.u32 %v115, 2147483648
  %v344 = vxor.u32 %v116, 2147483648
  %v345 = vxor.u32 %v117, 2147483648
  %v346 = vxor.u32 %v118, 2147483648
  %v347 = vxor.u32 %v119, 2147483648
  %v348 = vxor.u32 %v120, 2147483648
  %v349 = vxor.u32 %v121, 2147483648
  %v350 = vxor.u32 %v122, 2147483648
  %v351 = vxor.u32 %v123, 2147483648
  %v352 = vxor.u32 %v124, 2147483648
  %v353 = vxor.u32 %v125, 2147483648
  %v354 = vxor.u32 %v126, 2147483648
  %v355 = vxor.u32 %v127, 2147483648
  %v356 = vxor.u32 %v128, 2147483648
  %v357 = vxor.u32 %v129, 2147483648
  %v358 = vxor.u32 %v130, 2147483648
  %v359 = vxor.u32 %v131, 2147483648
  %v360 = vxor.u32 %v132, 2147483648
  %v361 = vxor.u32 %v133, 2147483648
  %v362 = vxor.u32 %v134, 2147483648
  %v363 = vxor.u32 %v135, 2147483648
  %v364 = vxor.u32 %v136, 2147483648
  %v365 = vxor.u32 %v137, 2147483648
  %v366 = vxor.u32 %v138, 2147483648
  %v367 = vxor.u32 %v139, 2147483648
  %v368 = vxor.u32 %v140, 2147483648
  %v369 = vxor.u32 %v141, 2147483648
  %v370 = vxor.u32 %v142, 2147483648
  %v371 = vxor.u32 %v143, 2147483648
  %v372 = vxor.u32 %v144, 2147483648
  %v373 = vxor.u32 %v145, 2147483648
  %v374 = vxor.u32 %v146, 2147483648
  %v375 = vxor.u32 %v147, 2147483648
  %v376 = vxor.u32 %v148, 2147483648
  %v377 = vxor.u32 %v149, 2147483648
  %v378 = vxor.u32 %v150, 2147483648
  %v379 = vxor.u32 %v151, 2147483648
  %v380 = vxor.u32 %v152, 2147483648
  %v381 = vxor.u32 %v153, 2147483648
  %v382 = vxor.u32 %v154, 2147483648
  %v383 = vxor.u32 %v155, 2147483648
  %v384 = vxor.u32 %v156, 2147483648
  %v385 = vxor.u32 %v157, 2147483648
  %v386 = vxor.u32 %v158, 2147483648
  %v387 = vxor.u32 %v159, 2147483648
  %v388 = vxor.u32 %v160, 2147483648
  %v389 = vxor.u32 %v161, 2147483648
  %v390 = vxor.u32 %v162, 2147483648
  %v391 = vxor.u32 %v163, 2147483648
  %v392 = vxor.u32 %v164, 2147483648
  %v393 = vxor.u32 %v165, 2147483648
  %v394 = vxor.u32 %v166, 2147483648
  %v395 = vxor.u32 %v167, 2147483648
  %v396 = vxor.u32 %v168, 2147483648
  %v397 = vxor.u32 %v169, 2147483648
  %v398 = vxor.u32 %v170, 2147483648
  %v399 = vxor.u32 %v171, 2147483648
  %v400 = vxor.u32 %v172, 2147483648
  %v401 = vxor.u32 %v173, 2147483648
  %v402 = vxor.u32 %v174, 2147483648
  %v403 = vxor.u32 %v175, 2147483648
  %v404 = vxor.u32 %v176, 2147483648
  %v405 = vxor.u32 %v177, 2147483648
  %v406 = vxor.u32 %v178, 2147483648
  %v407 = vxor.u32 %v179, 2147483648
  %v408 = vxor.u32 %v180, 2147483648
  %v409 = vxor.u32 %v181, 2147483648
  %v410 = vxor.u32 %v182, 2147483648
  %v411 = vxor.u32 %v183, 2147483648
  %v412 = vxor.u32 %v184, 2147483648
  %v413 = vxor.u32 %v185, 2147483648
  %v414 = vxor.u32 %v186, 2147483648
  %v415 = vxor.u32 %v187, 2147483648
  %v416 = vxor.u32 %v188, 2147483648
  %v417 = vxor.u32 %v189, 2147483648
  %v418 = vxor.u32 %v190, 2147483648
  %v419 = vxor.u32 %v191, 2147483648
  %v420 = vxor.u32 %v192, 2147483648
  %v421 = vxor.u32 %v193, 2147483648
  %v422 = vxor.u32 %v194, 2147483648
  %v423 = vxor.u32 %v195, 2147483648
  %v424 = vxor.u32 %v196, 2147483648
  %v425 = vxor.u32 %v197, 2147483648
  %v426 = vxor.u32 %v198, 2147483648
  %v427 = vxor.u32 %v199, 2147483648
  %v428 = vxor.u32 %v200, 2147483648
  %v429 = vxor.u32 %v201, 2147483648
  %v430 = vxor.u32 %v202, 2147483648
  %v431 = vxor.u32 %v203, 2147483648
  %v432 = vxor.u32 %v204, 2147483648
  %v433 = vxor.u32 %v205, 2147483648
  %v434 = vxor.u32 %v206, 2147483648
  %v435 = vxor.u32 %v207, 2147483648
  %v436 = vxor.u32 %v208, 2147483648
  %v437 = vxor.u32 %v209, 2147483648
  %v438 = vxor.u32 %v210, 2147483648
  %v439 = vxor.u32 %v211, 2147483648
  %v440 = vxor.u32 %v212, 2147483648
  %v441 = vxor.u32 %v213, 2147483648
  %v442 = vxor.u32 %v214, 2147483648
  %v443 = vxor.u32 %v215, 2147483648
  %v444 = vxor.u32 %v216, 2147483648
  %v445 = vxor.u32 %v217, 2147483648
  %v446 = vxor.u32 %v218, 2147483648
  %v447 = vxor.u32 %v219, 2147483648
  %v448 = vxor.u32 %v220, 2147483648
  %v449 = vxor.u32 %v221, 2147483648
  %v450 = vxor.u32 %v222, 2147483648
  %v451 = vxor.u32 %v223, 2147483648
  %v452 = vxor.u32 %v224, 2147483648
  %v453 = vxor.u32 %v225, 2147483648
  %v454 = vxor.u32 %v226, 2147483648
  %v455 = vxor.u32 %v227, 2147483648
  %v456 = vxor.u32 %v228, 2147483648
  %v457 = vxor.u32 %v229, 2147483648
  %v458 = vxor.u32 %v230, 2147483648
  %v459 = vxor.u32 %v231, 2147483648
  %v460 = vxor.u32 %v232, 2147483648
  %v461 = vxor.u32 %v233, 2147483648
  %v462 = vxor.u32 %v234, 2147483648
  %v463 = vxor.u32 %v235, 2147483648
  %v464 = vxor.u32 %v236, 2147483648
  %v465 = vxor.u32 %v237, 2147483648
  %v466 = vxor.u32 %v238, 2147483648
  %v467 = vmul.f32 %v239, 1.442695
  %v468 = vpow.pop %v467
  %v469 = vmul.f32 %v240, 1.442695
  %v470 = vpow.pop %v469
  %v471 = vmul.f32 %v241, 1.442695
  %v472 = vpow.pop %v471
  %v473 = vmul.f32 %v242, 1.442695
  %v474 = vpow.pop %v473
  %v475 = vmul.f32 %v243, 1.442695
  %v476 = vpow.pop %v475
  %v477 = vmul.f32 %v244, 1.442695
  %v478 = vpow.pop %v477
  %v479 = vmul.f32 %v245, 1.442695
  %v480 = vpow.pop %v479
  %v481 = vmul.f32 %v246, 1.442695
  %v482 = vpow.pop %v481
  %v483 = vmul.f32 %v247, 1.442695
  %v484 = vpow.pop %v483
  %v485 = vmul.f32 %v248, 1.442695
  %v486 = vpow.pop %v485
  %v487 = vmul.f32 %v249, 1.442695
  %v488 = vpow.pop %v487
  %v489 = vmul.f32 %v250, 1.442695
  %v490 = vpow.pop %v489
  %v491 = vmul.f32 %v251, 1.442695
  %v492 = vpow.pop %v491
  %v493 = vmul.f32 %v252, 1.442695
  %v494 = vpow.pop %v493
  %v495 = vmul.f32 %v253, 1.442695
  %v496 = vpow.pop %v495
  %v497 = vmul.f32 %v254, 1.442695
  %v498 = vpow.pop %v497
  %v499 = vmul.f32 %v255, 1.442695
  %v500 = vpow.pop %v499
  %v501 = vmul.f32 %v256, 1.442695
  %v502 = vpow.pop %v501
  %v503 = vmul.f32 %v257, 1.442695
  %v504 = vpow.pop %v503
  %v505 = vmul.f32 %v258, 1.442695
  %v506 = vpow.pop %v505
  %v507 = vmul.f32 %v259, 1.442695
  %v508 = vpow.pop %v507
  %v509 = vmul.f32 %v260, 1.442695
  %v510 = vpow.pop %v509
  %v511 = vmul.f32 %v261, 1.442695
  %v512 = vpow.pop %v511
  %v513 = vmul.f32 %v262, 1.442695
  %v514 = vpow.pop %v513
  %v515 = vmul.f32 %v263, 1.442695
  %v516 = vpow.pop %v515
  %v517 = vmul.f32 %v264, 1.442695
  %v518 = vpow.pop %v517
  %v519 = vmul.f32 %v265, 1.442695
  %v520 = vpow.pop %v519
  %v521 = vmul.f32 %v266, 1.442695
  %v522 = vpow.pop %v521
  %v523 = vmul.f32 %v267, 1.442695
  %v524 = vpow.pop %v523
  %v525 = vmul.f32 %v268, 1.442695
  %v526 = vpow.pop %v525
  %v527 = vmul.f32 %v269, 1.442695
  %v528 = vpow.pop %v527
  %v529 = vmul.f32 %v270, 1.442695
  %v530 = vpow.pop %v529
  %v531 = vmul.f32 %v271, 1.442695
  %v532 = vpow.pop %v531
  %v533 = vmul.f32 %v272, 1.442695
  %v534 = vpow.pop %v533
  %v535 = vmul.f32 %v273, 1.442695
  %v536 = vpow.pop %v535
  %v537 = vmul.f32 %v274, 1.442695
  %v538 = vpow.pop %v537
  %v539 = vmul.f32 %v275, 1.442695
  %v540 = vpow.pop %v539
  %v541 = vmul.f32 %v276, 1.442695
  %v542 = vpow.pop %v541
  %v543 = vmul.f32 %v277, 1.442695
  %v544 = vpow.pop %v543
  %v545 = vmul.f32 %v278, 1.442695
  %v546 = vpow.pop %v545
  %v547 = vmul.f32 %v279, 1.442695
  %v548 = vpow.pop %v547
  %v549 = vmul.f32 %v280, 1.442695
  %v550 = vpow.pop %v549
  %v551 = vmul.f32 %v281, 1.442695
  %v552 = vpow.pop %v551
  %v553 = vmul.f32 %v282, 1.442695
  %v554 = vpow.pop %v553
  %v555 = vmul.f32 %v283, 1.442695
  %v556 = vpow.pop %v555
  %v557 = vmul.f32 %v284, 1.442695
  %v558 = vpow.pop %v557
  %v559 = vmul.f32 %v285, 1.442695
  %v560 = vpow.pop %v559
  %v561 = vmul.f32 %v286, 1.442695
  %v562 = vpow.pop %v561
  %v563 = vmul.f32 %v287, 1.442695
  %v564 = vpow.pop %v563
  %v565 = vmul.f32 %v288, 1.442695
  %v566 = vpow.pop %v565
  %v567 = vmul.f32 %v289, 1.442695
  %v568 = vpow.pop %v567
  %v569 = vmul.f32 %v290, 1.442695
  %v570 = vpow.pop %v569
  %v571 = vmul.f32 %v291, 1.442695
  %v572 = vpow.pop %v571
  %v573 = vmul.f32 %v292, 1.442695
  %v574 = vpow.pop %v573
  %v575 = vmul.f32 %v293, 1.442695
  %v576 = vpow.pop %v575
  %v577 = vmul.f32 %v294, 1.442695
  %v578 = vpow.pop %v577
  %v579 = vmul.f32 %v295, 1.442695
  %v580 = vpow.pop %v579
  %v581 = vmul.f32 %v296, 1.442695
  %v582 = vpow.pop %v581
  %v583 = vmul.f32 %v297, 1.442695
  %v584 = vpow.pop %v583
  %v585 = vmul.f32 %v298, 1.442695
  %v586 = vpow.pop %v585
  %v587 = vmul.f32 %v299, 1.442695
  %v588 = vpow.pop %v587
  %v589 = vmul.f32 %v300, 1.442695
  %v590 = vpow.pop %v589
  %v591 = vmul.f32 %v301, 1.442695
  %v592 = vpow.pop %v591
  %v593 = vmul.f32 %v302, 1.442695
  %v594 = vpow.pop %v593
  %v595 = vmul.f32 %v303, 1.442695
  %v596 = vpow.pop %v595
  %v597 = vmul.f32 %v304, 1.442695
  %v598 = vpow.pop %v597
  %v599 = vmul.f32 %v305, 1.442695
  %v600 = vpow.pop %v599
  %v601 = vmul.f32 %v306, 1.442695
  %v602 = vpow.pop %v601
  %v603 = vmul.f32 %v307, 1.442695
  %v604 = vpow.pop %v603
  %v605 = vmul.f32 %v308, 1.442695
  %v606 = vpow.pop %v605
  %v607 = vmul.f32 %v309, 1.442695
  %v608 = vpow.pop %v607
  %v609 = vmul.f32 %v310, 1.442695
  %v610 = vpow.pop %v609
  %v611 = vmul.f32 %v311, 1.442695
  %v612 = vpow.pop %v611
  %v613 = vmul.f32 %v312, 1.442695
  %v614 = vpow.pop %v613
  %v615 = vmul.f32 %v313, 1.442695
  %v616 = vpow.pop %v615
  %v617 = vmul.f32 %v314, 1.442695
  %v618 = vpow.pop %v617
  %v619 = vmul.f32 %v315, 1.442695
  %v620 = vpow.pop %v619
  %v621 = vmul.f32 %v316, 1.442695
  %v622 = vpow.pop %v621
  %v623 = vmul.f32 %v317, 1.442695
  %v624 = vpow.pop %v623
  %v625 = vmul.f32 %v318, 1.442695
  %v626 = vpow.pop %v625
  %v627 = vmul.f32 %v319, 1.442695
  %v628 = vpow.pop %v627
  %v629 = vmul.f32 %v320, 1.442695
  %v630 = vpow.pop %v629
  %v631 = vmul.f32 %v321, 1.442695
  %v632 = vpow.pop %v631
  %v633 = vmul.f32 %v322, 1.442695
  %v634 = vpow.pop %v633
  %v635 = vmul.f32 %v323, 1.442695
  %v636 = vpow.pop %v635
  %v637 = vmul.f32 %v324, 1.442695
  %v638 = vpow.pop %v637
  %v639 = vmul.f32 %v325, 1.442695
  %v640 = vpow.pop %v639
  %v641 = vmul.f32 %v326, 1.442695
  %v642 = vpow.pop %v641
  %v643 = vmul.f32 %v327, 1.442695
  %v644 = vpow.pop %v643
  %v645 = vmul.f32 %v328, 1.442695
  %v646 = vpow.pop %v645
  %v647 = vmul.f32 %v329, 1.442695
  %v648 = vpow.pop %v647
  %v649 = vmul.f32 %v330, 1.442695
  %v650 = vpow.pop %v649
  %v651 = vmul.f32 %v331, 1.442695
  %v652 = vpow.pop %v651
  %v653 = vmul.f32 %v332, 1.442695
  %v654 = vpow.pop %v653
  %v655 = vmul.f32 %v333, 1.442695
  %v656 = vpow.pop %v655
  %v657 = vmul.f32 %v334, 1.442695
  %v658 = vpow.pop %v657
  %v659 = vmul.f32 %v335, 1.442695
  %v660 = vpow.pop %v659
  %v661 = vmul.f32 %v336, 1.442695
  %v662 = vpow.pop %v661
  %v663 = vmul.f32 %v337, 1.442695
  %v664 = vpow.pop %v663
  %v665 = vmul.f32 %v338, 1.442695
  %v666 = vpow.pop %v665
  %v667 = vmul.f32 %v339, 1.442695
  %v668 = vpow.pop %v667
  %v669 = vmul.f32 %v340, 1.442695
  %v670 = vpow.pop %v669
  %v671 = vmul.f32 %v341, 1.442695
  %v672 = vpow.pop %v671
  %v673 = vmul.f32 %v342, 1.442695
  %v674 = vpow.pop %v673
  %v675 = vmul.f32 %v343, 1.442695
  %v676 = vpow.pop %v675
  %v677 = vmul.f32 %v344, 1.442695
  %v678 = vpow.pop %v677
  %v679 = vmul.f32 %v345, 1.442695
  %v680 = vpow.pop %v679
  %v681 = vmul.f32 %v346, 1.442695
  %v682 = vpow.pop %v681
  %v683 = vmul.f32 %v347, 1.442695
  %v684 = vpow.pop %v683
  %v685 = vmul.f32 %v348, 1.442695
  %v686 = vpow.pop %v685
  %v687 = vmul.f32 %v349, 1.442695
  %v688 = vpow.pop %v687
  %v689 = vmul.f32 %v350, 1.442695
  %v690 = vpow.pop %v689
  %v691 = vmul.f32 %v351, 1.442695
  %v692 = vpow.pop %v691
  %v693 = vmul.f32 %v352, 1.442695
  %v694 = vpow.pop %v693
  %v695 = vmul.f32 %v353, 1.442695
  %v696 = vpow.pop %v695
  %v697 = vmul.f32 %v354, 1.442695
  %v698 = vpow.pop %v697
  %v699 = vmul.f32 %v355, 1.442695
  %v700 = vpow.pop %v699
  %v701 = vmul.f32 %v356, 1.442695
  %v702 = vpow.pop %v701
  %v703 = vmul.f32 %v357, 1.442695
  %v704 = vpow.pop %v703
  %v705 = vmul.f32 %v358, 1.442695
  %v706 = vpow.pop %v705
  %v707 = vmul.f32 %v359, 1.442695
  %v708 = vpow.pop %v707
  %v709 = vmul.f32 %v360, 1.442695
  %v710 = vpow.pop %v709
  %v711 = vmul.f32 %v361, 1.442695
  %v712 = vpow.pop %v711
  %v713 = vmul.f32 %v362, 1.442695
  %v714 = vpow.pop %v713
  %v715 = vmul.f32 %v363, 1.442695
  %v716 = vpow.pop %v715
  %v717 = vmul.f32 %v364, 1.442695
  %v718 = vpow.pop %v717
  %v719 = vmul.f32 %v365, 1.442695
  %v720 = vpow.pop %v719
  %v721 = vmul.f32 %v366, 1.442695
  %v722 = vpow.pop %v721
  %v723 = vmul.f32 %v367, 1.442695
  %v724 = vpow.pop %v723
  %v725 = vmul.f32 %v368, 1.442695
  %v726 = vpow.pop %v725
  %v727 = vmul.f32 %v369, 1.442695
  %v728 = vpow.pop %v727
  %v729 = vmul.f32 %v370, 1.442695
  %v730 = vpow.pop %v729
  %v731 = vmul.f32 %v371, 1.442695
  %v732 = vpow.pop %v731
  %v733 = vmul.f32 %v372, 1.442695
  %v734 = vpow.pop %v733
  %v735 = vmul.f32 %v373, 1.442695
  %v736 = vpow.pop %v735
  %v737 = vmul.f32 %v374, 1.442695
  %v738 = vpow.pop %v737
  %v739 = vmul.f32 %v375, 1.442695
  %v740 = vpow.pop %v739
  %v741 = vmul.f32 %v376, 1.442695
  %v742 = vpow.pop %v741
  %v743 = vmul.f32 %v377, 1.442695
  %v744 = vpow.pop %v743
  %v745 = vmul.f32 %v378, 1.442695
  %v746 = vpow.pop %v745
  %v747 = vmul.f32 %v379, 1.442695
  %v748 = vpow.pop %v747
  %v749 = vmul.f32 %v380, 1.442695
  %v750 = vpow.pop %v749
  %v751 = vmul.f32 %v381, 1.442695
  %v752 = vpow.pop %v751
  %v753 = vmul.f32 %v382, 1.442695
  %v754 = vpow.pop %v753
  %v755 = vmul.f32 %v383, 1.442695
  %v756 = vpow.pop %v755
  %v757 = vmul.f32 %v384, 1.442695
  %v758 = vpow.pop %v757
  %v759 = vmul.f32 %v385, 1.442695
  %v760 = vpow.pop %v759
  %v761 = vmul.f32 %v386, 1.442695
  %v762 = vpow.pop %v761
  %v763 = vmul.f32 %v387, 1.442695
  %v764 = vpow.pop %v763
  %v765 = vmul.f32 %v388, 1.442695
  %v766 = vpow.pop %v765
  %v767 = vmul.f32 %v389, 1.442695
  %v768 = vpow.pop %v767
  %v769 = vmul.f32 %v390, 1.442695
  %v770 = vpow.pop %v769
  %v771 = vmul.f32 %v391, 1.442695
  %v772 = vpow.pop %v771
  %v773 = vmul.f32 %v392, 1.442695
  %v774 = vpow.pop %v773
  %v775 = vmul.f32 %v393, 1.442695
  %v776 = vpow.pop %v775
  %v777 = vmul.f32 %v394, 1.442695
  %v778 = vpow.pop %v777
  %v779 = vmul.f32 %v395, 1.442695
  %v780 = vpow.pop %v779
  %v781 = vmul.f32 %v396, 1.442695
  %v782 = vpow.pop %v781
  %v783 = vmul.f32 %v397, 1.442695
  %v784 = vpow.pop %v783
  %v785 = vmul.f32 %v398, 1.442695
  %v786 = vpow.pop %v785
  %v787 = vmul.f32 %v399, 1.442695
  %v788 = vpow.pop %v787
  %v789 = vmul.f32 %v400, 1.442695
  %v790 = vpow.pop %v789
  %v791 = vmul.f32 %v401, 1.442695
  %v792 = vpow.pop %v791
  %v793 = vmul.f32 %v402, 1.442695
  %v794 = vpow.pop %v793
  %v795 = vmul.f32 %v403, 1.442695
  %v796 = vpow.pop %v795
  %v797 = vmul.f32 %v404, 1.442695
  %v798 = vpow.pop %v797
  %v799 = vmul.f32 %v405, 1.442695
  %v800 = vpow.pop %v799
  %v801 = vmul.f32 %v406, 1.442695
  %v802 = vpow.pop %v801
  %v803 = vmul.f32 %v407, 1.442695
  %v804 = vpow.pop %v803
  %v805 = vmul.f32 %v408, 1.442695
  %v806 = vpow.pop %v805
  %v807 = vmul.f32 %v409, 1.442695
  %v808 = vpow.pop %v807
  %v809 = vmul.f32 %v410, 1.442695
  %v810 = vpow.pop %v809
  %v811 = vmul.f32 %v411, 1.442695
  %v812 = vpow.pop %v811
  %v813 = vmul.f32 %v412, 1.442695
  %v814 = vpow.pop %v813
  %v815 = vmul.f32 %v413, 1.442695
  %v816 = vpow.pop %v815
  %v817 = vmul.f32 %v414, 1.442695
  %v818 = vpow.pop %v817
  %v819 = vmul.f32 %v415, 1.442695
  %v820 = vpow.pop %v819
  %v821 = vmul.f32 %v416, 1.442695
  %v822 = vpow.pop %v821
  %v823 = vmul.f32 %v417, 1.442695
  %v824 = vpow.pop %v823
  %v825 = vmul.f32 %v418, 1.442695
  %v826 = vpow.pop %v825
  %v827 = vmul.f32 %v419, 1.442695
  %v828 = vpow.pop %v827
  %v829 = vmul.f32 %v420, 1.442695
  %v830 = vpow.pop %v829
  %v831 = vmul.f32 %v421, 1.442695
  %v832 = vpow.pop %v831
  %v833 = vmul.f32 %v422, 1.442695
  %v834 = vpow.pop %v833
  %v835 = vmul.f32 %v423, 1.442695
  %v836 = vpow.pop %v835
  %v837 = vmul.f32 %v424, 1.442695
  %v838 = vpow.pop %v837
  %v839 = vmul.f32 %v425, 1.442695
  %v840 = vpow.pop %v839
  %v841 = vmul.f32 %v426, 1.442695
  %v842 = vpow.pop %v841
  %v843 = vmul.f32 %v427, 1.442695
  %v844 = vpow.pop %v843
  %v845 = vmul.f32 %v428, 1.442695
  %v846 = vpow.pop %v845
  %v847 = vmul.f32 %v429, 1.442695
  %v848 = vpow.pop %v847
  %v849 = vmul.f32 %v430, 1.442695
  %v850 = vpow.pop %v849
  %v851 = vmul.f32 %v431, 1.442695
  %v852 = vpow.pop %v851
  %v853 = vmul.f32 %v432, 1.442695
  %v854 = vpow.pop %v853
  %v855 = vmul.f32 %v433, 1.442695
  %v856 = vpow.pop %v855
  %v857 = vmul.f32 %v434, 1.442695
  %v858 = vpow.pop %v857
  %v859 = vmul.f32 %v435, 1.442695
  %v860 = vpow.pop %v859
  %v861 = vmul.f32 %v436, 1.442695
  %v862 = vpow.pop %v861
  %v863 = vmul.f32 %v437, 1.442695
  %v864 = vpow.pop %v863
  %v865 = vmul.f32 %v438, 1.442695
  %v866 = vpow.pop %v865
  %v867 = vmul.f32 %v439, 1.442695
  %v868 = vpow.pop %v867
  %v869 = vmul.f32 %v440, 1.442695
  %v870 = vpow.pop %v869
  %v871 = vmul.f32 %v441, 1.442695
  %v872 = vpow.pop %v871
  %v873 = vmul.f32 %v442, 1.442695
  %v874 = vpow.pop %v873
  %v875 = vmul.f32 %v443, 1.442695
  %v876 = vpow.pop %v875
  %v877 = vmul.f32 %v444, 1.442695
  %v878 = vpow.pop %v877
  %v879 = vmul.f32 %v445, 1.442695
  %v880 = vpow.pop %v879
  %v881 = vmul.f32 %v446, 1.442695
  %v882 = vpow.pop %v881
  %v883 = vmul.f32 %v447, 1.442695
  %v884 = vpow.pop %v883
  %v885 = vmul.f32 %v448, 1.442695
  %v886 = vpow.pop %v885
  %v887 = vmul.f32 %v449, 1.442695
  %v888 = vpow.pop %v887
  %v889 = vmul.f32 %v450, 1.442695
  %v890 = vpow.pop %v889
  %v891 = vmul.f32 %v451, 1.442695
  %v892 = vpow.pop %v891
  %v893 = vmul.f32 %v452, 1.442695
  %v894 = vpow.pop %v893
  %v895 = vmul.f32 %v453, 1.442695
  %v896 = vpow.pop %v895
  %v897 = vmul.f32 %v454, 1.442695
  %v898 = vpow.pop %v897
  %v899 = vmul.f32 %v455, 1.442695
  %v900 = vpow.pop %v899
  %v901 = vmul.f32 %v456, 1.442695
  %v902 = vpow.pop %v901
  %v903 = vmul.f32 %v457, 1.442695
  %v904 = vpow.pop %v903
  %v905 = vmul.f32 %v458, 1.442695
  %v906 = vpow.pop %v905
  %v907 = vmul.f32 %v459, 1.442695
  %v908 = vpow.pop %v907
  %v909 = vmul.f32 %v460, 1.442695
  %v910 = vpow.pop %v909
  %v911 = vmul.f32 %v461, 1.442695
  %v912 = vpow.pop %v911
  %v913 = vmul.f32 %v462, 1.442695
  %v914 = vpow.pop %v913
  %v915 = vmul.f32 %v463, 1.442695
  %v916 = vpow.pop %v915
  %v917 = vmul.f32 %v464, 1.442695
  %v918 = vpow.pop %v917
  %v919 = vmul.f32 %v465, 1.442695
  %v920 = vpow.pop %v919
  %v921 = vmul.f32 %v466, 1.442695
  %v922 = vpow.pop %v921
  %v923 = vadd.f32 %v468, 1.0
  %v924 = vadd.f32 %v470, 1.0
  %v925 = vadd.f32 %v472, 1.0
  %v926 = vadd.f32 %v474, 1.0
  %v927 = vadd.f32 %v476, 1.0
  %v928 = vadd.f32 %v478, 1.0
  %v929 = vadd.f32 %v480, 1.0
  %v930 = vadd.f32 %v482, 1.0
  %v931 = vadd.f32 %v484, 1.0
  %v932 = vadd.f32 %v486, 1.0
  %v933 = vadd.f32 %v488, 1.0
  %v934 = vadd.f32 %v490, 1.0
  %v935 = vadd.f32 %v492, 1.0
  %v936 = vadd.f32 %v494, 1.0
  %v937 = vadd.f32 %v496, 1.0
  %v938 = vadd.f32 %v498, 1.0
  %v939 = vadd.f32 %v500, 1.0
  %v940 = vadd.f32 %v502, 1.0
  %v941 = vadd.f32 %v504, 1.0
  %v942 = vadd.f32 %v506, 1.0
  %v943 = vadd.f32 %v508, 1.0
  %v944 = vadd.f32 %v510, 1.0
  %v945 = vadd.f32 %v512, 1.0
  %v946 = vadd.f32 %v514, 1.0
  %v947 = vadd.f32 %v516, 1.0
  %v948 = vadd.f32 %v518, 1.0
  %v949 = vadd.f32 %v520, 1.0
  %v950 = vadd.f32 %v522, 1.0
  %v951 = vadd.f32 %v524, 1.0
  %v952 = vadd.f32 %v526, 1.0
  %v953 = vadd.f32 %v528, 1.0
  %v954 = vadd.f32 %v530, 1.0
  %v955 = vadd.f32 %v532, 1.0
  %v956 = vadd.f32 %v534, 1.0
  %v957 = vadd.f32 %v536, 1.0
  %v958 = vadd.f32 %v538, 1.0
  %v959 = vadd.f32 %v540, 1.0
  %v960 = vadd.f32 %v542, 1.0
  %v961 = vadd.f32 %v544, 1.0
  %v962 = vadd.f32 %v546, 1.0
  %v963 = vadd.f32 %v548, 1.0
  %v964 = vadd.f32 %v550, 1.0
  %v965 = vadd.f32 %v552, 1.0
  %v966 = vadd.f32 %v554, 1.0
  %v967 = vadd.f32 %v556, 1.0
  %v968 = vadd.f32 %v558, 1.0
  %v969 = vadd.f32 %v560, 1.0
  %v970 = vadd.f32 %v562, 1.0
  %v971 = vadd.f32 %v564, 1.0
  %v972 = vadd.f32 %v566, 1.0
  %v973 = vadd.f32 %v568, 1.0
  %v974 = vadd.f32 %v570, 1.0
  %v975 = vadd.f32 %v572, 1.0
  %v976 = vadd.f32 %v574, 1.0
  %v977 = vadd.f32 %v576, 1.0
  %v978 = vadd.f32 %v578, 1.0
  %v979 = vadd.f32 %v580, 1.0
  %v980 = vadd.f32 %v582, 1.0
  %v981 = vadd.f32 %v584, 1.0
  %v982 = vadd.f32 %v586, 1.0
  %v983 = vadd.f32 %v588, 1.0
  %v984 = vadd.f32 %v590, 1.0
  %v985 = vadd.f32 %v592, 1.0
  %v986 = vadd.f32 %v594, 1.0
  %v987 = vadd.f32 %v596, 1.0
  %v988 = vadd.f32 %v598, 1.0
  %v989 = vadd.f32 %v600, 1.0
  %v990 = vadd.f32 %v602, 1.0
  %v991 = vadd.f32 %v604, 1.0
  %v992 = vadd.f32 %v606, 1.0
  %v993 = vadd.f32 %v608, 1.0
  %v994 = vadd.f32 %v610, 1.0
  %v995 = vadd.f32 %v612, 1.0
  %v996 = vadd.f32 %v614, 1.0
  %v997 = vadd.f32 %v616, 1.0
  %v998 = vadd.f32 %v618, 1.0
  %v999 = vadd.f32 %v620, 1.0
  %v1000 = vadd.f32 %v622, 1.0
  %v1001 = vadd.f32 %v624, 1.0
  %v1002 = vadd.f32 %v626, 1.0
  %v1003 = vadd.f32 %v628, 1.0
  %v1004 = vadd.f32 %v630, 1.0
  %v1005 = vadd.f32 %v632, 1.0
  %v1006 = vadd.f32 %v634, 1.0
  %v1007 = vadd.f32 %v636, 1.0
  %v1008 = vadd.f32 %v638, 1.0
  %v1009 = vadd.f32 %v640, 1.0
  %v1010 = vadd.f32 %v642, 1.0
  %v1011 = vadd.f32 %v644, 1.0
  %v1012 = vadd.f32 %v646, 1.0
  %v1013 = vadd.f32 %v648, 1.0
  %v1014 = vadd.f32 %v650, 1.0
  %v1015 = vadd.f32 %v652, 1.0
  %v1016 = vadd.f32 %v654, 1.0
  %v1017 = vadd.f32 %v656, 1.0
  %v1018 = vadd.f32 %v658, 1.0
  %v1019 = vadd.f32 %v660, 1.0
  %v1020 = vadd.f32 %v662, 1.0
  %v1021 = vadd.f32 %v664, 1.0
  %v1022 = vadd.f32 %v666, 1.0
  %v1023 = vadd.f32 %v668, 1.0
  %v1024 = vadd.f32 %v670, 1.0
  %v1025 = vadd.f32 %v672, 1.0
  %v1026 = vadd.f32 %v674, 1.0
  %v1027 = vadd.f32 %v676, 1.0
  %v1028 = vadd.f32 %v678, 1.0
  %v1029 = vadd.f32 %v680, 1.0
  %v1030 = vadd.f32 %v682, 1.0
  %v1031 = vadd.f32 %v684, 1.0
  %v1032 = vadd.f32 %v686, 1.0
  %v1033 = vadd.f32 %v688, 1.0
  %v1034 = vadd.f32 %v690, 1.0
  %v1035 = vadd.f32 %v692, 1.0
  %v1036 = vadd.f32 %v694, 1.0
  %v1037 = vadd.f32 %v696, 1.0
  %v1038 = vadd.f32 %v698, 1.0
  %v1039 = vadd.f32 %v700, 1.0
  %v1040 = vadd.f32 %v702, 1.0
  %v1041 = vadd.f32 %v704, 1.0
  %v1042 = vadd.f32 %v706, 1.0
  %v1043 = vadd.f32 %v708, 1.0
  %v1044 = vadd.f32 %v710, 1.0
  %v1045 = vadd.f32 %v712, 1.0
  %v1046 = vadd.f32 %v714, 1.0
  %v1047 = vadd.f32 %v716, 1.0
  %v1048 = vadd.f32 %v718, 1.0
  %v1049 = vadd.f32 %v720, 1.0
  %v1050 = vadd.f32 %v722, 1.0
  %v1051 = vadd.f32 %v724, 1.0
  %v1052 = vadd.f32 %v726, 1.0
  %v1053 = vadd.f32 %v728, 1.0
  %v1054 = vadd.f32 %v730, 1.0
  %v1055 = vadd.f32 %v732, 1.0
  %v1056 = vadd.f32 %v734, 1.0
  %v1057 = vadd.f32 %v736, 1.0
  %v1058 = vadd.f32 %v738, 1.0
  %v1059 = vadd.f32 %v740, 1.0
  %v1060 = vadd.f32 %v742, 1.0
  %v1061 = vadd.f32 %v744, 1.0
  %v1062 = vadd.f32 %v746, 1.0
  %v1063 = vadd.f32 %v748, 1.0
  %v1064 = vadd.f32 %v750, 1.0
  %v1065 = vadd.f32 %v752, 1.0
  %v1066 = vadd.f32 %v754, 1.0
  %v1067 = vadd.f32 %v756, 1.0
  %v1068 = vadd.f32 %v758, 1.0
  %v1069 = vadd.f32 %v760, 1.0
  %v1070 = vadd.f32 %v762, 1.0
  %v1071 = vadd.f32 %v764, 1.0
  %v1072 = vadd.f32 %v766, 1.0
  %v1073 = vadd.f32 %v768, 1.0
  %v1074 = vadd.f32 %v770, 1.0
  %v1075 = vadd.f32 %v772, 1.0
  %v1076 = vadd.f32 %v774, 1.0
  %v1077 = vadd.f32 %v776, 1.0
  %v1078 = vadd.f32 %v778, 1.0
  %v1079 = vadd.f32 %v780, 1.0
  %v1080 = vadd.f32 %v782, 1.0
  %v1081 = vadd.f32 %v784, 1.0
  %v1082 = vadd.f32 %v786, 1.0
  %v1083 = vadd.f32 %v788, 1.0
  %v1084 = vadd.f32 %v790, 1.0
  %v1085 = vadd.f32 %v792, 1.0
  %v1086 = vadd.f32 %v794, 1.0
  %v1087 = vadd.f32 %v796, 1.0
  %v1088 = vadd.f32 %v798, 1.0
  %v1089 = vadd.f32 %v800, 1.0
  %v1090 = vadd.f32 %v802, 1.0
  %v1091 = vadd.f32 %v804, 1.0
  %v1092 = vadd.f32 %v806, 1.0
  %v1093 = vadd.f32 %v808, 1.0
  %v1094 = vadd.f32 %v810, 1.0
  %v1095 = vadd.f32 %v812, 1.0
  %v1096 = vadd.f32 %v814, 1.0
  %v1097 = vadd.f32 %v816, 1.0
  %v1098 = vadd.f32 %v818, 1.0
  %v1099 = vadd.f32 %v820, 1.0
  %v1100 = vadd.f32 %v822, 1.0
  %v1101 = vadd.f32 %v824, 1.0
  %v1102 = vadd.f32 %v826, 1.0
  %v1103 = vadd.f32 %v828, 1.0
  %v1104 = vadd.f32 %v830, 1.0
  %v1105 = vadd.f32 %v832, 1.0
  %v1106 = vadd.f32 %v834, 1.0
  %v1107 = vadd.f32 %v836, 1.0
  %v1108 = vadd.f32 %v838, 1.0
  %v1109 = vadd.f32 %v840, 1.0
  %v1110 = vadd.f32 %v842, 1.0
  %v1111 = vadd.f32 %v844, 1.0
  %v1112 = vadd.f32 %v846, 1.0
  %v1113 = vadd.f32 %v848, 1.0
  %v1114 = vadd.f32 %v850, 1.0
  %v1115 = vadd.f32 %v852, 1.0
  %v1116 = vadd.f32 %v854, 1.0
  %v1117 = vadd.f32 %v856, 1.0
  %v1118 = vadd.f32 %v858, 1.0
  %v1119 = vadd.f32 %v860, 1.0
  %v1120 = vadd.f32 %v862, 1.0
  %v1121 = vadd.f32 %v864, 1.0
  %v1122 = vadd.f32 %v866, 1.0
  %v1123 = vadd.f32 %v868, 1.0
  %v1124 = vadd.f32 %v870, 1.0
  %v1125 = vadd.f32 %v872, 1.0
  %v1126 = vadd.f32 %v874, 1.0
  %v1127 = vadd.f32 %v876, 1.0
  %v1128 = vadd.f32 %v878, 1.0
  %v1129 = vadd.f32 %v880, 1.0
  %v1130 = vadd.f32 %v882, 1.0
  %v1131 = vadd.f32 %v884, 1.0
  %v1132 = vadd.f32 %v886, 1.0
  %v1133 = vadd.f32 %v888, 1.0
  %v1134 = vadd.f32 %v890, 1.0
  %v1135 = vadd.f32 %v892, 1.0
  %v1136 = vadd.f32 %v894, 1.0
  %v1137 = vadd.f32 %v896, 1.0
  %v1138 = vadd.f32 %v898, 1.0
  %v1139 = vadd.f32 %v900, 1.0
  %v1140 = vadd.f32 %v902, 1.0
  %v1141 = vadd.f32 %v904, 1.0
  %v1142 = vadd.f32 %v906, 1.0
  %v1143 = vadd.f32 %v908, 1.0
  %v1144 = vadd.f32 %v910, 1.0
  %v1145 = vadd.f32 %v912, 1.0
  %v1146 = vadd.f32 %v914, 1.0
  %v1147 = vadd.f32 %v916, 1.0
  %v1148 = vadd.f32 %v918, 1.0
  %v1149 = vadd.f32 %v920, 1.0
  %v1150 = vadd.f32 %v922, 1.0
  %v1151 = vrcp.pop %v923
  %v1152 = vmul.f32 1.0, %v1151
  %v1153 = vrcp.pop %v924
  %v1154 = vmul.f32 1.0, %v1153
  %v1155 = vrcp.pop %v925
  %v1156 = vmul.f32 1.0, %v1155
  %v1157 = vrcp.pop %v926
  %v1158 = vmul.f32 1.0, %v1157
  %v1159 = vrcp.pop %v927
  %v1160 = vmul.f32 1.0, %v1159
  %v1161 = vrcp.pop %v928
  %v1162 = vmul.f32 1.0, %v1161
  %v1163 = vrcp.pop %v929
  %v1164 = vmul.f32 1.0, %v1163
  %v1165 = vrcp.pop %v930
  %v1166 = vmul.f32 1.0, %v1165
  %v1167 = vrcp.pop %v931
  %v1168 = vmul.f32 1.0, %v1167
  %v1169 = vrcp.pop %v932
  %v1170 = vmul.f32 1.0, %v1169
  %v1171 = vrcp.pop %v933
  %v1172 = vmul.f32 1.0, %v1171
  %v1173 = vrcp.pop %v934
  %v1174 = vmul.f32 1.0, %v1173
  %v1175 = vrcp.pop %v935
  %v1176 = vmul.f32 1.0, %v1175
  %v1177 = vrcp.pop %v936
  %v1178 = vmul.f32 1.0, %v1177
  %v1179 = vrcp.pop %v937
  %v1180 = vmul.f32 1.0, %v1179
  %v1181 = vrcp.pop %v938
  %v1182 = vmul.f32 1.0, %v1181
  %v1183 = vrcp.pop %v939
  %v1184 = vmul.f32 1.0, %v1183
  %v1185 = vrcp.pop %v940
  %v1186 = vmul.f32 1.0, %v1185
  %v1187 = vrcp.pop %v941
  %v1188 = vmul.f32 1.0, %v1187
  %v1189 = vrcp.pop %v942
  %v1190 = vmul.f32 1.0, %v1189
  %v1191 = vrcp.pop %v943
  %v1192 = vmul.f32 1.0, %v1191
  %v1193 = vrcp.pop %v944
  %v1194 = vmul.f32 1.0, %v1193
  %v1195 = vrcp.pop %v945
  %v1196 = vmul.f32 1.0, %v1195
  %v1197 = vrcp.pop %v946
  %v1198 = vmul.f32 1.0, %v1197
  %v1199 = vrcp.pop %v947
  %v1200 = vmul.f32 1.0, %v1199
  %v1201 = vrcp.pop %v948
  %v1202 = vmul.f32 1.0, %v1201
  %v1203 = vrcp.pop %v949
  %v1204 = vmul.f32 1.0, %v1203
  %v1205 = vrcp.pop %v950
  %v1206 = vmul.f32 1.0, %v1205
  %v1207 = vrcp.pop %v951
  %v1208 = vmul.f32 1.0, %v1207
  %v1209 = vrcp.pop %v952
  %v1210 = vmul.f32 1.0, %v1209
  %v1211 = vrcp.pop %v953
  %v1212 = vmul.f32 1.0, %v1211
  %v1213 = vrcp.pop %v954
  %v1214 = vmul.f32 1.0, %v1213
  %v1215 = vrcp.pop %v955
  %v1216 = vmul.f32 1.0, %v1215
  %v1217 = vrcp.pop %v956
  %v1218 = vmul.f32 1.0, %v1217
  %v1219 = vrcp.pop %v957
  %v1220 = vmul.f32 1.0, %v1219
  %v1221 = vrcp.pop %v958
  %v1222 = vmul.f32 1.0, %v1221
  %v1223 = vrcp.pop %v959
  %v1224 = vmul.f32 1.0, %v1223
  %v1225 = vrcp.pop %v960
  %v1226 = vmul.f32 1.0, %v1225
  %v1227 = vrcp.pop %v961
  %v1228 = vmul.f32 1.0, %v1227
  %v1229 = vrcp.pop %v962
  %v1230 = vmul.f32 1.0, %v1229
  %v1231 = vrcp.pop %v963
  %v1232 = vmul.f32 1.0, %v1231
  %v1233 = vrcp.pop %v964
  %v1234 = vmul.f32 1.0, %v1233
  %v1235 = vrcp.pop %v965
  %v1236 = vmul.f32 1.0, %v1235
  %v1237 = vrcp.pop %v966
  %v1238 = vmul.f32 1.0, %v1237
  %v1239 = vrcp.pop %v967
  %v1240 = vmul.f32 1.0, %v1239
  %v1241 = vrcp.pop %v968
  %v1242 = vmul.f32 1.0, %v1241
  %v1243 = vrcp.pop %v969
  %v1244 = vmul.f32 1.0, %v1243
  %v1245 = vrcp.pop %v970
  %v1246 = vmul.f32 1.0, %v1245
  %v1247 = vrcp.pop %v971
  %v1248 = vmul.f32 1.0, %v1247
  %v1249 = vrcp.pop %v972
  %v1250 = vmul.f32 1.0, %v1249
  %v1251 = vrcp.pop %v973
  %v1252 = vmul.f32 1.0, %v1251
  %v1253 = vrcp.pop %v974
  %v1254 = vmul.f32 1.0, %v1253
  %v1255 = vrcp.pop %v975
  %v1256 = vmul.f32 1.0, %v1255
  %v1257 = vrcp.pop %v976
  %v1258 = vmul.f32 1.0, %v1257
  %v1259 = vrcp.pop %v977
  %v1260 = vmul.f32 1.0, %v1259
  %v1261 = vrcp.pop %v978
  %v1262 = vmul.f32 1.0, %v1261
  %v1263 = vrcp.pop %v979
  %v1264 = vmul.f32 1.0, %v1263
  %v1265 = vrcp.pop %v980
  %v1266 = vmul.f32 1.0, %v1265
  %v1267 = vrcp.pop %v981
  %v1268 = vmul.f32 1.0, %v1267
  %v1269 = vrcp.pop %v982
  %v1270 = vmul.f32 1.0, %v1269
  %v1271 = vrcp.pop %v983
  %v1272 = vmul.f32 1.0, %v1271
  %v1273 = vrcp.pop %v984
  %v1274 = vmul.f32 1.0, %v1273
  %v1275 = vrcp.pop %v985
  %v1276 = vmul.f32 1.0, %v1275
  %v1277 = vrcp.pop %v986
  %v1278 = vmul.f32 1.0, %v1277
  %v1279 = vrcp.pop %v987
  %v1280 = vmul.f32 1.0, %v1279
  %v1281 = vrcp.pop %v988
  %v1282 = vmul.f32 1.0, %v1281
  %v1283 = vrcp.pop %v989
  %v1284 = vmul.f32 1.0, %v1283
  %v1285 = vrcp.pop %v990
  %v1286 = vmul.f32 1.0, %v1285
  %v1287 = vrcp.pop %v991
  %v1288 = vmul.f32 1.0, %v1287
  %v1289 = vrcp.pop %v992
  %v1290 = vmul.f32 1.0, %v1289
  %v1291 = vrcp.pop %v993
  %v1292 = vmul.f32 1.0, %v1291
  %v1293 = vrcp.pop %v994
  %v1294 = vmul.f32 1.0, %v1293
  %v1295 = vrcp.pop %v995
  %v1296 = vmul.f32 1.0, %v1295
  %v1297 = vrcp.pop %v996
  %v1298 = vmul.f32 1.0, %v1297
  %v1299 = vrcp.pop %v997
  %v1300 = vmul.f32 1.0, %v1299
  %v1301 = vrcp.pop %v998
  %v1302 = vmul.f32 1.0, %v1301
  %v1303 = vrcp.pop %v999
  %v1304 = vmul.f32 1.0, %v1303
  %v1305 = vrcp.pop %v1000
  %v1306 = vmul.f32 1.0, %v1305
  %v1307 = vrcp.pop %v1001
  %v1308 = vmul.f32 1.0, %v1307
  %v1309 = vrcp.pop %v1002
  %v1310 = vmul.f32 1.0, %v1309
  %v1311 = vrcp.pop %v1003
  %v1312 = vmul.f32 1.0, %v1311
  %v1313 = vrcp.pop %v1004
  %v1314 = vmul.f32 1.0, %v1313
  %v1315 = vrcp.pop %v1005
  %v1316 = vmul.f32 1.0, %v1315
  %v1317 = vrcp.pop %v1006
  %v1318 = vmul.f32 1.0, %v1317
  %v1319 = vrcp.pop %v1007
  %v1320 = vmul.f32 1.0, %v1319
  %v1321 = vrcp.pop %v1008
  %v1322 = vmul.f32 1.0, %v1321
  %v1323 = vrcp.pop %v1009
  %v1324 = vmul.f32 1.0, %v1323
  %v1325 = vrcp.pop %v1010
  %v1326 = vmul.f32 1.0, %v1325
  %v1327 = vrcp.pop %v1011
  %v1328 = vmul.f32 1.0, %v1327
  %v1329 = vrcp.pop %v1012
  %v1330 = vmul.f32 1.0, %v1329
  %v1331 = vrcp.pop %v1013
  %v1332 = vmul.f32 1.0, %v1331
  %v1333 = vrcp.pop %v1014
  %v1334 = vmul.f32 1.0, %v1333
  %v1335 = vrcp.pop %v1015
  %v1336 = vmul.f32 1.0, %v1335
  %v1337 = vrcp.pop %v1016
  %v1338 = vmul.f32 1.0, %v1337
  %v1339 = vrcp.pop %v1017
  %v1340 = vmul.f32 1.0, %v1339
  %v1341 = vrcp.pop %v1018
  %v1342 = vmul.f32 1.0, %v1341
  %v1343 = vrcp.pop %v1019
  %v1344 = vmul.f32 1.0, %v1343
  %v1345 = vrcp.pop %v1020
  %v1346 = vmul.f32 1.0, %v1345
  %v1347 = vrcp.pop %v1021
  %v1348 = vmul.f32 1.0, %v1347
  %v1349 = vrcp.pop %v1022
  %v1350 = vmul.f32 1.0, %v1349
  %v1351 = vrcp.pop %v1023
  %v1352 = vmul.f32 1.0, %v1351
  %v1353 = vrcp.pop %v1024
  %v1354 = vmul.f32 1.0, %v1353
  %v1355 = vrcp.pop %v1025
  %v1356 = vmul.f32 1.0, %v1355
  %v1357 = vrcp.pop %v1026
  %v1358 = vmul.f32 1.0, %v1357
  %v1359 = vrcp.pop %v1027
  %v1360 = vmul.f32 1.0, %v1359
  %v1361 = vrcp.pop %v1028
  %v1362 = vmul.f32 1.0, %v1361
  %v1363 = vrcp.pop %v1029
  %v1364 = vmul.f32 1.0, %v1363
  %v1365 = vrcp.pop %v1030
  %v1366 = vmul.f32 1.0, %v1365
  %v1367 = vrcp.pop %v1031
  %v1368 = vmul.f32 1.0, %v1367
  %v1369 = vrcp.pop %v1032
  %v1370 = vmul.f32 1.0, %v1369
  %v1371 = vrcp.pop %v1033
  %v1372 = vmul.f32 1.0, %v1371
  %v1373 = vrcp.pop %v1034
  %v1374 = vmul.f32 1.0, %v1373
  %v1375 = vrcp.pop %v1035
  %v1376 = vmul.f32 1.0, %v1375
  %v1377 = vrcp.pop %v1036
  %v1378 = vmul.f32 1.0, %v1377
  %v1379 = vrcp.pop %v1037
  %v1380 = vmul.f32 1.0, %v1379
  %v1381 = vrcp.pop %v1038
  %v1382 = vmul.f32 1.0, %v1381
  %v1383 = vrcp.pop %v1039
  %v1384 = vmul.f32 1.0, %v1383
  %v1385 = vrcp.pop %v1040
  %v1386 = vmul.f32 1.0, %v1385
  %v1387 = vrcp.pop %v1041
  %v1388 = vmul.f32 1.0, %v1387
  %v1389 = vrcp.pop %v1042
  %v1390 = vmul.f32 1.0, %v1389
  %v1391 = vrcp.pop %v1043
  %v1392 = vmul.f32 1.0, %v1391
  %v1393 = vrcp.pop %v1044
  %v1394 = vmul.f32 1.0, %v1393
  %v1395 = vrcp.pop %v1045
  %v1396 = vmul.f32 1.0, %v1395
  %v1397 = vrcp.pop %v1046
  %v1398 = vmul.f32 1.0, %v1397
  %v1399 = vrcp.pop %v1047
  %v1400 = vmul.f32 1.0, %v1399
  %v1401 = vrcp.pop %v1048
  %v1402 = vmul.f32 1.0, %v1401
  %v1403 = vrcp.pop %v1049
  %v1404 = vmul.f32 1.0, %v1403
  %v1405 = vrcp.pop %v1050
  %v1406 = vmul.f32 1.0, %v1405
  %v1407 = vrcp.pop %v1051
  %v1408 = vmul.f32 1.0, %v1407
  %v1409 = vrcp.pop %v1052
  %v1410 = vmul.f32 1.0, %v1409
  %v1411 = vrcp.pop %v1053
  %v1412 = vmul.f32 1.0, %v1411
  %v1413 = vrcp.pop %v1054
  %v1414 = vmul.f32 1.0, %v1413
  %v1415 = vrcp.pop %v1055
  %v1416 = vmul.f32 1.0, %v1415
  %v1417 = vrcp.pop %v1056
  %v1418 = vmul.f32 1.0, %v1417
  %v1419 = vrcp.pop %v1057
  %v1420 = vmul.f32 1.0, %v1419
  %v1421 = vrcp.pop %v1058
  %v1422 = vmul.f32 1.0, %v1421
  %v1423 = vrcp.pop %v1059
  %v1424 = vmul.f32 1.0, %v1423
  %v1425 = vrcp.pop %v1060
  %v1426 = vmul.f32 1.0, %v1425
  %v1427 = vrcp.pop %v1061
  %v1428 = vmul.f32 1.0, %v1427
  %v1429 = vrcp.pop %v1062
  %v1430 = vmul.f32 1.0, %v1429
  %v1431 = vrcp.pop %v1063
  %v1432 = vmul.f32 1.0, %v1431
  %v1433 = vrcp.pop %v1064
  %v1434 = vmul.f32 1.0, %v1433
  %v1435 = vrcp.pop %v1065
  %v1436 = vmul.f32 1.0, %v1435
  %v1437 = vrcp.pop %v1066
  %v1438 = vmul.f32 1.0, %v1437
  %v1439 = vrcp.pop %v1067
  %v1440 = vmul.f32 1.0, %v1439
  %v1441 = vrcp.pop %v1068
  %v1442 = vmul.f32 1.0, %v1441
  %v1443 = vrcp.pop %v1069
  %v1444 = vmul.f32 1.0, %v1443
  %v1445 = vrcp.pop %v1070
  %v1446 = vmul.f32 1.0, %v1445
  %v1447 = vrcp.pop %v1071
  %v1448 = vmul.f32 1.0, %v1447
  %v1449 = vrcp.pop %v1072
  %v1450 = vmul.f32 1.0, %v1449
  %v1451 = vrcp.pop %v1073
  %v1452 = vmul.f32 1.0, %v1451
  %v1453 = vrcp.pop %v1074
  %v1454 = vmul.f32 1.0, %v1453
  %v1455 = vrcp.pop %v1075
  %v1456 = vmul.f32 1.0, %v1455
  %v1457 = vrcp.pop %v1076
  %v1458 = vmul.f32 1.0, %v1457
  %v1459 = vrcp.pop %v1077
  %v1460 = vmul.f32 1.0, %v1459
  %v1461 = vrcp.pop %v1078
  %v1462 = vmul.f32 1.0, %v1461
  %v1463 = vrcp.pop %v1079
  %v1464 = vmul.f32 1.0, %v1463
  %v1465 = vrcp.pop %v1080
  %v1466 = vmul.f32 1.0, %v1465
  %v1467 = vrcp.pop %v1081
  %v1468 = vmul.f32 1.0, %v1467
  %v1469 = vrcp.pop %v1082
  %v1470 = vmul.f32 1.0, %v1469
  %v1471 = vrcp.pop %v1083
  %v1472 = vmul.f32 1.0, %v1471
  %v1473 = vrcp.pop %v1084
  %v1474 = vmul.f32 1.0, %v1473
  %v1475 = vrcp.pop %v1085
  %v1476 = vmul.f32 1.0, %v1475
  %v1477 = vrcp.pop %v1086
  %v1478 = vmul.f32 1.0, %v1477
  %v1479 = vrcp.pop %v1087
  %v1480 = vmul.f32 1.0, %v1479
  %v1481 = vrcp.pop %v1088
  %v1482 = vmul.f32 1.0, %v1481
  %v1483 = vrcp.pop %v1089
  %v1484 = vmul.f32 1.0, %v1483
  %v1485 = vrcp.pop %v1090
  %v1486 = vmul.f32 1.0, %v1485
  %v1487 = vrcp.pop %v1091
  %v1488 = vmul.f32 1.0, %v1487
  %v1489 = vrcp.pop %v1092
  %v1490 = vmul.f32 1.0, %v1489
  %v1491 = vrcp.pop %v1093
  %v1492 = vmul.f32 1.0, %v1491
  %v1493 = vrcp.pop %v1094
  %v1494 = vmul.f32 1.0, %v1493
  %v1495 = vrcp.pop %v1095
  %v1496 = vmul.f32 1.0, %v1495
  %v1497 = vrcp.pop %v1096
  %v1498 = vmul.f32 1.0, %v1497
  %v1499 = vrcp.pop %v1097
  %v1500 = vmul.f32 1.0, %v1499
  %v1501 = vrcp.pop %v1098
  %v1502 = vmul.f32 1.0, %v1501
  %v1503 = vrcp.pop %v1099
  %v1504 = vmul.f32 1.0, %v1503
  %v1505 = vrcp.pop %v1100
  %v1506 = vmul.f32 1.0, %v1505
  %v1507 = vrcp.pop %v1101
  %v1508 = vmul.f32 1.0, %v1507
  %v1509 = vrcp.pop %v1102
  %v1510 = vmul.f32 1.0, %v1509
  %v1511 = vrcp.pop %v1103
  %v1512 = vmul.f32 1.0, %v1511
  %v1513 = vrcp.pop %v1104
  %v1514 = vmul.f32 1.0, %v1513
  %v1515 = vrcp.pop %v1105
  %v1516 = vmul.f32 1.0, %v1515
  %v1517 = vrcp.pop %v1106
  %v1518 = vmul.f32 1.0, %v1517
  %v1519 = vrcp.pop %v1107
  %v1520 = vmul.f32 1.0, %v1519
  %v1521 = vrcp.pop %v1108
  %v1522 = vmul.f32 1.0, %v1521
  %v1523 = vrcp.pop %v1109
  %v1524 = vmul.f32 1.0, %v1523
  %v1525 = vrcp.pop %v1110
  %v1526 = vmul.f32 1.0, %v1525
  %v1527 = vrcp.pop %v1111
  %v1528 = vmul.f32 1.0, %v1527
  %v1529 = vrcp.pop %v1112
  %v1530 = vmul.f32 1.0, %v1529
  %v1531 = vrcp.pop %v1113
  %v1532 = vmul.f32 1.0, %v1531
  %v1533 = vrcp.pop %v1114
  %v1534 = vmul.f32 1.0, %v1533
  %v1535 = vrcp.pop %v1115
  %v1536 = vmul.f32 1.0, %v1535
  %v1537 = vrcp.pop %v1116
  %v1538 = vmul.f32 1.0, %v1537
  %v1539 = vrcp.pop %v1117
  %v1540 = vmul.f32 1.0, %v1539
  %v1541 = vrcp.pop %v1118
  %v1542 = vmul.f32 1.0, %v1541
  %v1543 = vrcp.pop %v1119
  %v1544 = vmul.f32 1.0, %v1543
  %v1545 = vrcp.pop %v1120
  %v1546 = vmul.f32 1.0, %v1545
  %v1547 = vrcp.pop %v1121
  %v1548 = vmul.f32 1.0, %v1547
  %v1549 = vrcp.pop %v1122
  %v1550 = vmul.f32 1.0, %v1549
  %v1551 = vrcp.pop %v1123
  %v1552 = vmul.f32 1.0, %v1551
  %v1553 = vrcp.pop %v1124
  %v1554 = vmul.f32 1.0, %v1553
  %v1555 = vrcp.pop %v1125
  %v1556 = vmul.f32 1.0, %v1555
  %v1557 = vrcp.pop %v1126
  %v1558 = vmul.f32 1.0, %v1557
  %v1559 = vrcp.pop %v1127
  %v1560 = vmul.f32 1.0, %v1559
  %v1561 = vrcp.pop %v1128
  %v1562 = vmul.f32 1.0, %v1561
  %v1563 = vrcp.pop %v1129
  %v1564 = vmul.f32 1.0, %v1563
  %v1565 = vrcp.pop %v1130
  %v1566 = vmul.f32 1.0, %v1565
  %v1567 = vrcp.pop %v1131
  %v1568 = vmul.f32 1.0, %v1567
  %v1569 = vrcp.pop %v1132
  %v1570 = vmul.f32 1.0, %v1569
  %v1571 = vrcp.pop %v1133
  %v1572 = vmul.f32 1.0, %v1571
  %v1573 = vrcp.pop %v1134
  %v1574 = vmul.f32 1.0, %v1573
  %v1575 = vrcp.pop %v1135
  %v1576 = vmul.f32 1.0, %v1575
  %v1577 = vrcp.pop %v1136
  %v1578 = vmul.f32 1.0, %v1577
  %v1579 = vrcp.pop %v1137
  %v1580 = vmul.f32 1.0, %v1579
  %v1581 = vrcp.pop %v1138
  %v1582 = vmul.f32 1.0, %v1581
  %v1583 = vrcp.pop %v1139
  %v1584 = vmul.f32 1.0, %v1583
  %v1585 = vrcp.pop %v1140
  %v1586 = vmul.f32 1.0, %v1585
  %v1587 = vrcp.pop %v1141
  %v1588 = vmul.f32 1.0, %v1587
  %v1589 = vrcp.pop %v1142
  %v1590 = vmul.f32 1.0, %v1589
  %v1591 = vrcp.pop %v1143
  %v1592 = vmul.f32 1.0, %v1591
  %v1593 = vrcp.pop %v1144
  %v1594 = vmul.f32 1.0, %v1593
  %v1595 = vrcp.pop %v1145
  %v1596 = vmul.f32 1.0, %v1595
  %v1597 = vrcp.pop %v1146
  %v1598 = vmul.f32 1.0, %v1597
  %v1599 = vrcp.pop %v1147
  %v1600 = vmul.f32 1.0, %v1599
  %v1601 = vrcp.pop %v1148
  %v1602 = vmul.f32 1.0, %v1601
  %v1603 = vrcp.pop %v1149
  %v1604 = vmul.f32 1.0, %v1603
  %v1605 = vrcp.pop %v1150
  %v1606 = vmul.f32 1.0, %v1605
  %v1607 = vld [vmem:[%s1] sm:$0xff]
  %v1608 = vld [vmem:[%s1 + $0x8] sm:$0xff]
  %v1609 = vld [vmem:[%s1 + $0x10] sm:$0xff]
  %v1610 = vld [vmem:[%s1 + $0x18] sm:$0xff]
  %v1611 = vld [vmem:[%s1 + $0x20] sm:$0xff]
  %v1612 = vld [vmem:[%s1 + $0x28] sm:$0xff]
  %v1613 = vld [vmem:[%s1 + $0x30] sm:$0xff]
  %v1614 = vld [vmem:[%s1 + $0x38] sm:$0xff]
  %v1615 = vld [vmem:[%s1 + $0x40] sm:$0xff]
  %v1616 = vld [vmem:[%s1 + $0x48] sm:$0xff]
  %v1617 = vld [vmem:[%s1 + $0x50] sm:$0xff]
  %v1618 = vld [vmem:[%s1 + $0x58] sm:$0xff]
  %v1619 = vld [vmem:[%s1 + $0x60] sm:$0xff]
  %v1620 = vld [vmem:[%s1 + $0x68] sm:$0xff]
  %v1621 = vld [vmem:[%s1 + $0x70] sm:$0xff]
  %v1622 = vld [vmem:[%s1 + $0x78] sm:$0xff]
  %v1623 = vld [vmem:[%s1 + $0x80] sm:$0xff]
  %v1624 = vld [vmem:[%s1 + $0x88] sm:$0xff]
  %v1625 = vld [vmem:[%s1 + $0x90] sm:$0xff]
  %v1626 = vld [vmem:[%s1 + $0x98] sm:$0xff]
  %v1627 = vld [vmem:[%s1 + $0xa0] sm:$0xff]
  %v1628 = vld [vmem:[%s1 + $0xa8] sm:$0xff]
  %v1629 = vld [vmem:[%s1 + $0xb0] sm:$0xff]
  %v1630 = vld [vmem:[%s1 + $0xb8] sm:$0xff]
  %v1631 = vld [vmem:[%s1 + $0xc0] sm:$0xff]
  %v1632 = vld [vmem:[%s1 + $0xc8] sm:$0xff]
  %v1633 = vld [vmem:[%s1 + $0xd0] sm:$0xff]
  %v1634 = vld [vmem:[%s1 + $0xd8] sm:$0xff]
  %v1635 = vld [vmem:[%s1 + $0xe0] sm:$0xff]
  %v1636 = vld [vmem:[%s1 + $0xe8] sm:$0xff]
  %v1637 = vld [vmem:[%s1 + $0xf0] sm:$0xff]
  %v1638 = vld [vmem:[%s1 + $0xf8] sm:$0xff]
  %v1639 = vld [vmem:[%s1 + $0x100] sm:$0xff]
  %v1640 = vld [vmem:[%s1 + $0x108] sm:$0xff]
  %v1641 = vld [vmem:[%s1 + $0x110] sm:$0xff]
  %v1642 = vld [vmem:[%s1 + $0x118] sm:$0xff]
  %v1643 = vld [vmem:[%s1 + $0x120] sm:$0xff]
  %v1644 = vld [vmem:[%s1 + $0x128] sm:$0xff]
  %v1645 = vld [vmem:[%s1 + $0x130] sm:$0xff]
  %v1646 = vld [vmem:[%s1 + $0x138] sm:$0xff]
  %v1647 = vld [vmem:[%s1 + $0x140] sm:$0xff]
  %v1648 = vld [vmem:[%s1 + $0x148] sm:$0xff]
  %v1649 = vld [vmem:[%s1 + $0x150] sm:$0xff]
  %v1650 = vld [vmem:[%s1 + $0x158] sm:$0xff]
  %v1651 = vld [vmem:[%s1 + $0x160] sm:$0xff]
  %v1652 = vld [vmem:[%s1 + $0x168] sm:$0xff]
  %v1653 = vld [vmem:[%s1 + $0x170] sm:$0xff]
  %v1654 = vld [vmem:[%s1 + $0x178] sm:$0xff]
  %v1655 = vld [vmem:[%s1 + $0x180] sm:$0xff]
  %v1656 = vld [vmem:[%s1 + $0x188] sm:$0xff]
  %v1657 = vld [vmem:[%s1 + $0x190] sm:$0xff]
  %v1658 = vld [vmem:[%s1 + $0x198] sm:$0xff]
  %v1659 = vld [vmem:[%s1 + $0x1a0] sm:$0xff]
  %v1660 = vld [vmem:[%s1 + $0x1a8] sm:$0xff]
  %v1661 = vld [vmem:[%s1 + $0x1b0] sm:$0xff]
  %v1662 = vld [vmem:[%s1 + $0x1b8] sm:$0xff]
  %v1663 = vld [vmem:[%s1 + $0x1c0] sm:$0xff]
  %v1664 = vld [vmem:[%s1 + $0x1c8] sm:$0xff]
  %v1665 = vld [vmem:[%s1 + $0x1d0] sm:$0xff]
  %v1666 = vld [vmem:[%s1 + $0x1d8] sm:$0xff]
  %v1667 = vld [vmem:[%s1 + $0x1e0] sm:$0xff]
  %v1668 = vld [vmem:[%s1 + $0x1e8] sm:$0xff]
  %v1669 = vld [vmem:[%s1 + $0x1f0] sm:$0xff]
  %v1670 = vld [vmem:[%s1 + $0x1f8] sm:$0xff]
  %v1671 = vld [vmem:[%s1 + $0x200] sm:$0xff]
  %v1672 = vld [vmem:[%s1 + $0x208] sm:$0xff]
  %v1673 = vld [vmem:[%s1 + $0x210] sm:$0xff]
  %v1674 = vld [vmem:[%s1 + $0x218] sm:$0xff]
  %v1675 = vld [vmem:[%s1 + $0x220] sm:$0xff]
  %v1676 = vld [vmem:[%s1 + $0x228] sm:$0xff]
  %v1677 = vld [vmem:[%s1 + $0x230] sm:$0xff]
  %v1678 = vld [vmem:[%s1 + $0x238] sm:$0xff]
  %v1679 = vld [vmem:[%s1 + $0x240] sm:$0xff]
  %v1680 = vld [vmem:[%s1 + $0x248] sm:$0xff]
  %v1681 = vld [vmem:[%s1 + $0x250] sm:$0xff]
  %v1682 = vld [vmem:[%s1 + $0x258] sm:$0xff]
  %v1683 = vld [vmem:[%s1 + $0x260] sm:$0xff]
  %v1684 = vld [vmem:[%s1 + $0x268] sm:$0xff]
  %v1685 = vld [vmem:[%s1 + $0x270] sm:$0xff]
  %v1686 = vld [vmem:[%s1 + $0x278] sm:$0xff]
  %v1687 = vld [vmem:[%s1 + $0x280] sm:$0xff]
  %v1688 = vld [vmem:[%s1 + $0x288] sm:$0xff]
  %v1689 = vld [vmem:[%s1 + $0x290] sm:$0xff]
  %v1690 = vld [vmem:[%s1 + $0x298] sm:$0xff]
  %v1691 = vld [vmem:[%s1 + $0x2a0] sm:$0xff]
  %v1692 = vld [vmem:[%s1 + $0x2a8] sm:$0xff]
  %v1693 = vld [vmem:[%s1 + $0x2b0] sm:$0xff]
  %v1694 = vld [vmem:[%s1 + $0x2b8] sm:$0xff]
  %v1695 = vld [vmem:[%s1 + $0x2c0] sm:$0xff]
  %v1696 = vld [vmem:[%s1 + $0x2c8] sm:$0xff]
  %v1697 = vld [vmem:[%s1 + $0x2d0] sm:$0xff]
  %v1698 = vld [vmem:[%s1 + $0x2d8] sm:$0xff]
  %v1699 = vld [vmem:[%s1 + $0x2e0] sm:$0xff]
  %v1700 = vld [vmem:[%s1 + $0x2e8] sm:$0xff]
  %v1701 = vld [vmem:[%s1 + $0x2f0] sm:$0xff]
  %v1702 = vld [vmem:[%s1 + $0x2f8] sm:$0xff]
  %v1703 = vld [vmem:[%s1 + $0x300] sm:$0xff]
  %v1704 = vld [vmem:[%s1 + $0x308] sm:$0xff]
  %v1705 = vld [vmem:[%s1 + $0x310] sm:$0xff]
  %v1706 = vld [vmem:[%s1 + $0x318] sm:$0xff]
  %v1707 = vld [vmem:[%s1 + $0x320] sm:$0xff]
  %v1708 = vld [vmem:[%s1 + $0x328] sm:$0xff]
  %v1709 = vld [vmem:[%s1 + $0x330] sm:$0xff]
  %v1710 = vld [vmem:[%s1 + $0x338] sm:$0xff]
  %v1711 = vld [vmem:[%s1 + $0x340] sm:$0xff]
  %v1712 = vld [vmem:[%s1 + $0x348] sm:$0xff]
  %v1713 = vld [vmem:[%s1 + $0x350] sm:$0xff]
  %v1714 = vld [vmem:[%s1 + $0x358] sm:$0xff]
  %v1715 = vld [vmem:[%s1 + $0x360] sm:$0xff]
  %v1716 = vld [vmem:[%s1 + $0x368] sm:$0xff]
  %v1717 = vld [vmem:[%s1 + $0x370] sm:$0xff]
  %v1718 = vld [vmem:[%s1 + $0x378] sm:$0xff]
  %v1719 = vld [vmem:[%s1 + $0x380] sm:$0xff]
  %v1720 = vld [vmem:[%s1 + $0x388] sm:$0xff]
  %v1721 = vld [vmem:[%s1 + $0x390] sm:$0xff]
  %v1722 = vld [vmem:[%s1 + $0x398] sm:$0xff]
  %v1723 = vld [vmem:[%s1 + $0x3a0] sm:$0xff]
  %v1724 = vld [vmem:[%s1 + $0x3a8] sm:$0xff]
  %v1725 = vld [vmem:[%s1 + $0x3b0] sm:$0xff]
  %v1726 = vld [vmem:[%s1 + $0x3b8] sm:$0xff]
  %v1727 = vld [vmem:[%s1 + $0x3c0] sm:$0xff]
  %v1728 = vld [vmem:[%s1 + $0x3c8] sm:$0xff]
  %v1729 = vld [vmem:[%s1 + $0x3d0] sm:$0xff]
  %v1730 = vld [vmem:[%s1 + $0x3d8] sm:$0xff]
  %v1731 = vld [vmem:[%s1 + $0x3e0] sm:$0xff]
  %v1732 = vld [vmem:[%s1 + $0x3e8] sm:$0xff]
  %v1733 = vld [vmem:[%s1 + $0x3f0] sm:$0xff]
  %v1734 = vld [vmem:[%s1 + $0x3f8] sm:$0xff]
  %v1735 = vld [vmem:[%s1 + $0x400] sm:$0xff]
  %v1736 = vld [vmem:[%s1 + $0x408] sm:$0xff]
  %v1737 = vld [vmem:[%s1 + $0x410] sm:$0xff]
  %v1738 = vld [vmem:[%s1 + $0x418] sm:$0xff]
  %v1739 = vld [vmem:[%s1 + $0x420] sm:$0xff]
  %v1740 = vld [vmem:[%s1 + $0x428] sm:$0xff]
  %v1741 = vld [vmem:[%s1 + $0x430] sm:$0xff]
  %v1742 = vld [vmem:[%s1 + $0x438] sm:$0xff]
  %v1743 = vld [vmem:[%s1 + $0x440] sm:$0xff]
  %v1744 = vld [vmem:[%s1 + $0x448] sm:$0xff]
  %v1745 = vld [vmem:[%s1 + $0x450] sm:$0xff]
  %v1746 = vld [vmem:[%s1 + $0x458] sm:$0xff]
  %v1747 = vld [vmem:[%s1 + $0x460] sm:$0xff]
  %v1748 = vld [vmem:[%s1 + $0x468] sm:$0xff]
  %v1749 = vld [vmem:[%s1 + $0x470] sm:$0xff]
  %v1750 = vld [vmem:[%s1 + $0x478] sm:$0xff]
  %v1751 = vld [vmem:[%s1 + $0x480] sm:$0xff]
  %v1752 = vld [vmem:[%s1 + $0x488] sm:$0xff]
  %v1753 = vld [vmem:[%s1 + $0x490] sm:$0xff]
  %v1754 = vld [vmem:[%s1 + $0x498] sm:$0xff]
  %v1755 = vld [vmem:[%s1 + $0x4a0] sm:$0xff]
  %v1756 = vld [vmem:[%s1 + $0x4a8] sm:$0xff]
  %v1757 = vld [vmem:[%s1 + $0x4b0] sm:$0xff]
  %v1758 = vld [vmem:[%s1 + $0x4b8] sm:$0xff]
  %v1759 = vld [vmem:[%s1 + $0x4c0] sm:$0xff]
  %v1760 = vld [vmem:[%s1 + $0x4c8] sm:$0xff]
  %v1761 = vld [vmem:[%s1 + $0x4d0] sm:$0xff]
  %v1762 = vld [vmem:[%s1 + $0x4d8] sm:$0xff]
  %v1763 = vld [vmem:[%s1 + $0x4e0] sm:$0xff]
  %v1764 = vld [vmem:[%s1 + $0x4e8] sm:$0xff]
  %v1765 = vld [vmem:[%s1 + $0x4f0] sm:$0xff]
  %v1766 = vld [vmem:[%s1 + $0x4f8] sm:$0xff]
  %v1767 = vld [vmem:[%s1 + $0x500] sm:$0xff]
  %v1768 = vld [vmem:[%s1 + $0x508] sm:$0xff]
  %v1769 = vld [vmem:[%s1 + $0x510] sm:$0xff]
  %v1770 = vld [vmem:[%s1 + $0x518] sm:$0xff]
  %v1771 = vld [vmem:[%s1 + $0x520] sm:$0xff]
  %v1772 = vld [vmem:[%s1 + $0x528] sm:$0xff]
  %v1773 = vld [vmem:[%s1 + $0x530] sm:$0xff]
  %v1774 = vld [vmem:[%s1 + $0x538] sm:$0xff]
  %v1775 = vld [vmem:[%s1 + $0x540] sm:$0xff]
  %v1776 = vld [vmem:[%s1 + $0x548] sm:$0xff]
  %v1777 = vld [vmem:[%s1 + $0x550] sm:$0xff]
  %v1778 = vld [vmem:[%s1 + $0x558] sm:$0xff]
  %v1779 = vld [vmem:[%s1 + $0x560] sm:$0xff]
  %v1780 = vld [vmem:[%s1 + $0x568] sm:$0xff]
  %v1781 = vld [vmem:[%s1 + $0x570] sm:$0xff]
  %v1782 = vld [vmem:[%s1 + $0x578] sm:$0xff]
  %v1783 = vld [vmem:[%s1 + $0x580] sm:$0xff]
  %v1784 = vld [vmem:[%s1 + $0x588] sm:$0xff]
  %v1785 = vld [vmem:[%s1 + $0x590] sm:$0xff]
  %v1786 = vld [vmem:[%s1 + $0x598] sm:$0xff]
  %v1787 = vld [vmem:[%s1 + $0x5a0] sm:$0xff]
  %v1788 = vld [vmem:[%s1 + $0x5a8] sm:$0xff]
  %v1789 = vld [vmem:[%s1 + $0x5b0] sm:$0xff]
  %v1790 = vld [vmem:[%s1 + $0x5b8] sm:$0xff]
  %v1791 = vld [vmem:[%s1 + $0x5c0] sm:$0xff]
  %v1792 = vld [vmem:[%s1 + $0x5c8] sm:$0xff]
  %v1793 = vld [vmem:[%s1 + $0x5d0] sm:$0xff]
  %v1794 = vld [vmem:[%s1 + $0x5d8] sm:$0xff]
  %v1795 = vld [vmem:[%s1 + $0x5e0] sm:$0xff]
  %v1796 = vld [vmem:[%s1 + $0x5e8] sm:$0xff]
  %v1797 = vld [vmem:[%s1 + $0x5f0] sm:$0xff]
  %v1798 = vld [vmem:[%s1 + $0x5f8] sm:$0xff]
  %v1799 = vld [vmem:[%s1 + $0x600] sm:$0xff]
  %v1800 = vld [vmem:[%s1 + $0x608] sm:$0xff]
  %v1801 = vld [vmem:[%s1 + $0x610] sm:$0xff]
  %v1802 = vld [vmem:[%s1 + $0x618] sm:$0xff]
  %v1803 = vld [vmem:[%s1 + $0x620] sm:$0xff]
  %v1804 = vld [vmem:[%s1 + $0x628] sm:$0xff]
  %v1805 = vld [vmem:[%s1 + $0x630] sm:$0xff]
  %v1806 = vld [vmem:[%s1 + $0x638] sm:$0xff]
  %v1807 = vld [vmem:[%s1 + $0x640] sm:$0xff]
  %v1808 = vld [vmem:[%s1 + $0x648] sm:$0xff]
  %v1809 = vld [vmem:[%s1 + $0x650] sm:$0xff]
  %v1810 = vld [vmem:[%s1 + $0x658] sm:$0xff]
  %v1811 = vld [vmem:[%s1 + $0x660] sm:$0xff]
  %v1812 = vld [vmem:[%s1 + $0x668] sm:$0xff]
  %v1813 = vld [vmem:[%s1 + $0x670] sm:$0xff]
  %v1814 = vld [vmem:[%s1 + $0x678] sm:$0xff]
  %v1815 = vld [vmem:[%s1 + $0x680] sm:$0xff]
  %v1816 = vld [vmem:[%s1 + $0x688] sm:$0xff]
  %v1817 = vld [vmem:[%s1 + $0x690] sm:$0xff]
  %v1818 = vld [vmem:[%s1 + $0x698] sm:$0xff]
  %v1819 = vld [vmem:[%s1 + $0x6a0] sm:$0xff]
  %v1820 = vld [vmem:[%s1 + $0x6a8] sm:$0xff]
  %v1821 = vld [vmem:[%s1 + $0x6b0] sm:$0xff]
  %v1822 = vld [vmem:[%s1 + $0x6b8] sm:$0xff]
  %v1823 = vld [vmem:[%s1 + $0x6c0] sm:$0xff]
  %v1824 = vld [vmem:[%s1 + $0x6c8] sm:$0xff]
  %v1825 = vld [vmem:[%s1 + $0x6d0] sm:$0xff]
  %v1826 = vld [vmem:[%s1 + $0x6d8] sm:$0xff]
  %v1827 = vld [vmem:[%s1 + $0x6e0] sm:$0xff]
  %v1828 = vld [vmem:[%s1 + $0x6e8] sm:$0xff]
  %v1829 = vld [vmem:[%s1 + $0x6f0] sm:$0xff]
  %v1830 = vld [vmem:[%s1 + $0x6f8] sm:$0xff]
  %v1831 = vld [vmem:[%s1 + $0x700] sm:$0xff]
  %v1832 = vld [vmem:[%s1 + $0x708] sm:$0xff]
  %v1833 = vld [vmem:[%s1 + $0x710] sm:$0xff]
  %v1834 = vld [vmem:[%s1 + $0x718] sm:$0xff]
  %1836 = vset.pattern.permute.xlu0 0
  %1837 = vperm.xlu0 %1836, %v1152
  %v1838 = vpop.permute.xlu0 %1837
  %1841 = vset.pattern.permute.xlu0 0
  %1842 = vperm.xlu0 %1841, %v1154
  %v1843 = vpop.permute.xlu0 %1842
  %1846 = vset.pattern.permute.xlu0 0
  %1847 = vperm.xlu0 %1846, %v1156
  %v1848 = vpop.permute.xlu0 %1847
  %1851 = vset.pattern.permute.xlu0 0
  %1852 = vperm.xlu0 %1851, %v1158
  %v1853 = vpop.permute.xlu0 %1852
  %1856 = vset.pattern.permute.xlu0 0
  %1857 = vperm.xlu0 %1856, %v1160
  %v1858 = vpop.permute.xlu0 %1857
  %1861 = vset.pattern.permute.xlu0 0
  %1862 = vperm.xlu0 %1861, %v1162
  %v1863 = vpop.permute.xlu0 %1862
  %1866 = vset.pattern.permute.xlu0 0
  %1867 = vperm.xlu0 %1866, %v1164
  %v1868 = vpop.permute.xlu0 %1867
  %1871 = vset.pattern.permute.xlu0 0
  %1872 = vperm.xlu0 %1871, %v1166
  %v1873 = vpop.permute.xlu0 %1872
  %1876 = vset.pattern.permute.xlu0 0
  %1877 = vperm.xlu0 %1876, %v1168
  %v1878 = vpop.permute.xlu0 %1877
  %1881 = vset.pattern.permute.xlu0 0
  %1882 = vperm.xlu0 %1881, %v1170
  %v1883 = vpop.permute.xlu0 %1882
  %1886 = vset.pattern.permute.xlu0 0
  %1887 = vperm.xlu0 %1886, %v1172
  %v1888 = vpop.permute.xlu0 %1887
  %1891 = vset.pattern.permute.xlu0 0
  %1892 = vperm.xlu0 %1891, %v1174
  %v1893 = vpop.permute.xlu0 %1892
  %1896 = vset.pattern.permute.xlu0 0
  %1897 = vperm.xlu0 %1896, %v1176
  %v1898 = vpop.permute.xlu0 %1897
  %1901 = vset.pattern.permute.xlu0 0
  %1902 = vperm.xlu0 %1901, %v1178
  %v1903 = vpop.permute.xlu0 %1902
  %1906 = vset.pattern.permute.xlu0 0
  %1907 = vperm.xlu0 %1906, %v1180
  %v1908 = vpop.permute.xlu0 %1907
  %1911 = vset.pattern.permute.xlu0 0
  %1912 = vperm.xlu0 %1911, %v1182
  %v1913 = vpop.permute.xlu0 %1912
  %1916 = vset.pattern.permute.xlu0 0
  %1917 = vperm.xlu0 %1916, %v1184
  %v1918 = vpop.permute.xlu0 %1917
  %1921 = vset.pattern.permute.xlu0 0
  %1922 = vperm.xlu0 %1921, %v1186
  %v1923 = vpop.permute.xlu0 %1922
  %1926 = vset.pattern.permute.xlu0 0
  %1927 = vperm.xlu0 %1926, %v1188
  %v1928 = vpop.permute.xlu0 %1927
  %1931 = vset.pattern.permute.xlu0 0
  %1932 = vperm.xlu0 %1931, %v1190
  %v1933 = vpop.permute.xlu0 %1932
  %1936 = vset.pattern.permute.xlu0 0
  %1937 = vperm.xlu0 %1936, %v1192
  %v1938 = vpop.permute.xlu0 %1937
  %1941 = vset.pattern.permute.xlu0 0
  %1942 = vperm.xlu0 %1941, %v1194
  %v1943 = vpop.permute.xlu0 %1942
  %1946 = vset.pattern.permute.xlu0 0
  %1947 = vperm.xlu0 %1946, %v1196
  %v1948 = vpop.permute.xlu0 %1947
  %1951 = vset.pattern.permute.xlu0 0
  %1952 = vperm.xlu0 %1951, %v1198
  %v1953 = vpop.permute.xlu0 %1952
  %1956 = vset.pattern.permute.xlu0 0
  %1957 = vperm.xlu0 %1956, %v1200
  %v1958 = vpop.permute.xlu0 %1957
  %1961 = vset.pattern.permute.xlu0 0
  %1962 = vperm.xlu0 %1961, %v1202
  %v1963 = vpop.permute.xlu0 %1962
  %1966 = vset.pattern.permute.xlu0 0
  %1967 = vperm.xlu0 %1966, %v1204
  %v1968 = vpop.permute.xlu0 %1967
  %1971 = vset.pattern.permute.xlu0 0
  %1972 = vperm.xlu0 %1971, %v1206
  %v1973 = vpop.permute.xlu0 %1972
  %1976 = vset.pattern.permute.xlu0 0
  %1977 = vperm.xlu0 %1976, %v1208
  %v1978 = vpop.permute.xlu0 %1977
  %1981 = vset.pattern.permute.xlu0 0
  %1982 = vperm.xlu0 %1981, %v1210
  %v1983 = vpop.permute.xlu0 %1982
  %1986 = vset.pattern.permute.xlu0 0
  %1987 = vperm.xlu0 %1986, %v1212
  %v1988 = vpop.permute.xlu0 %1987
  %1991 = vset.pattern.permute.xlu0 0
  %1992 = vperm.xlu0 %1991, %v1214
  %v1993 = vpop.permute.xlu0 %1992
  %1996 = vset.pattern.permute.xlu0 0
  %1997 = vperm.xlu0 %1996, %v1216
  %v1998 = vpop.permute.xlu0 %1997
  %2001 = vset.pattern.permute.xlu0 0
  %2002 = vperm.xlu0 %2001, %v1218
  %v2003 = vpop.permute.xlu0 %2002
  %2006 = vset.pattern.permute.xlu0 0
  %2007 = vperm.xlu0 %2006, %v1220
  %v2008 = vpop.permute.xlu0 %2007
  %2011 = vset.pattern.permute.xlu0 0
  %2012 = vperm.xlu0 %2011, %v1222
  %v2013 = vpop.permute.xlu0 %2012
  %2016 = vset.pattern.permute.xlu0 0
  %2017 = vperm.xlu0 %2016, %v1224
  %v2018 = vpop.permute.xlu0 %2017
  %2021 = vset.pattern.permute.xlu0 0
  %2022 = vperm.xlu0 %2021, %v1226
  %v2023 = vpop.permute.xlu0 %2022
  %2026 = vset.pattern.permute.xlu0 0
  %2027 = vperm.xlu0 %2026, %v1228
  %v2028 = vpop.permute.xlu0 %2027
  %2031 = vset.pattern.permute.xlu0 0
  %2032 = vperm.xlu0 %2031, %v1230
  %v2033 = vpop.permute.xlu0 %2032
  %2036 = vset.pattern.permute.xlu0 0
  %2037 = vperm.xlu0 %2036, %v1232
  %v2038 = vpop.permute.xlu0 %2037
  %2041 = vset.pattern.permute.xlu0 0
  %2042 = vperm.xlu0 %2041, %v1234
  %v2043 = vpop.permute.xlu0 %2042
  %2046 = vset.pattern.permute.xlu0 0
  %2047 = vperm.xlu0 %2046, %v1236
  %v2048 = vpop.permute.xlu0 %2047
  %2051 = vset.pattern.permute.xlu0 0
  %2052 = vperm.xlu0 %2051, %v1238
  %v2053 = vpop.permute.xlu0 %2052
  %2056 = vset.pattern.permute.xlu0 0
  %2057 = vperm.xlu0 %2056, %v1240
  %v2058 = vpop.permute.xlu0 %2057
  %2061 = vset.pattern.permute.xlu0 0
  %2062 = vperm.xlu0 %2061, %v1242
  %v2063 = vpop.permute.xlu0 %2062
  %2066 = vset.pattern.permute.xlu0 0
  %2067 = vperm.xlu0 %2066, %v1244
  %v2068 = vpop.permute.xlu0 %2067
  %2071 = vset.pattern.permute.xlu0 0
  %2072 = vperm.xlu0 %2071, %v1246
  %v2073 = vpop.permute.xlu0 %2072
  %2076 = vset.pattern.permute.xlu0 0
  %2077 = vperm.xlu0 %2076, %v1248
  %v2078 = vpop.permute.xlu0 %2077
  %2081 = vset.pattern.permute.xlu0 0
  %2082 = vperm.xlu0 %2081, %v1250
  %v2083 = vpop.permute.xlu0 %2082
  %2086 = vset.pattern.permute.xlu0 0
  %2087 = vperm.xlu0 %2086, %v1252
  %v2088 = vpop.permute.xlu0 %2087
  %2091 = vset.pattern.permute.xlu0 0
  %2092 = vperm.xlu0 %2091, %v1254
  %v2093 = vpop.permute.xlu0 %2092
  %2096 = vset.pattern.permute.xlu0 0
  %2097 = vperm.xlu0 %2096, %v1256
  %v2098 = vpop.permute.xlu0 %2097
  %2101 = vset.pattern.permute.xlu0 0
  %2102 = vperm.xlu0 %2101, %v1258
  %v2103 = vpop.permute.xlu0 %2102
  %2106 = vset.pattern.permute.xlu0 0
  %2107 = vperm.xlu0 %2106, %v1260
  %v2108 = vpop.permute.xlu0 %2107
  %2111 = vset.pattern.permute.xlu0 0
  %2112 = vperm.xlu0 %2111, %v1262
  %v2113 = vpop.permute.xlu0 %2112
  %2116 = vset.pattern.permute.xlu0 0
  %2117 = vperm.xlu0 %2116, %v1264
  %v2118 = vpop.permute.xlu0 %2117
  %2121 = vset.pattern.permute.xlu0 0
  %2122 = vperm.xlu0 %2121, %v1266
  %v2123 = vpop.permute.xlu0 %2122
  %2126 = vset.pattern.permute.xlu0 0
  %2127 = vperm.xlu0 %2126, %v1268
  %v2128 = vpop.permute.xlu0 %2127
  %2131 = vset.pattern.permute.xlu0 0
  %2132 = vperm.xlu0 %2131, %v1270
  %v2133 = vpop.permute.xlu0 %2132
  %2136 = vset.pattern.permute.xlu0 0
  %2137 = vperm.xlu0 %2136, %v1272
  %v2138 = vpop.permute.xlu0 %2137
  %2141 = vset.pattern.permute.xlu0 0
  %2142 = vperm.xlu0 %2141, %v1274
  %v2143 = vpop.permute.xlu0 %2142
  %2146 = vset.pattern.permute.xlu0 0
  %2147 = vperm.xlu0 %2146, %v1276
  %v2148 = vpop.permute.xlu0 %2147
  %2151 = vset.pattern.permute.xlu0 0
  %2152 = vperm.xlu0 %2151, %v1278
  %v2153 = vpop.permute.xlu0 %2152
  %2156 = vset.pattern.permute.xlu0 0
  %2157 = vperm.xlu0 %2156, %v1280
  %v2158 = vpop.permute.xlu0 %2157
  %2161 = vset.pattern.permute.xlu0 0
  %2162 = vperm.xlu0 %2161, %v1282
  %v2163 = vpop.permute.xlu0 %2162
  %2166 = vset.pattern.permute.xlu0 0
  %2167 = vperm.xlu0 %2166, %v1284
  %v2168 = vpop.permute.xlu0 %2167
  %2171 = vset.pattern.permute.xlu0 0
  %2172 = vperm.xlu0 %2171, %v1286
  %v2173 = vpop.permute.xlu0 %2172
  %2176 = vset.pattern.permute.xlu0 0
  %2177 = vperm.xlu0 %2176, %v1288
  %v2178 = vpop.permute.xlu0 %2177
  %2181 = vset.pattern.permute.xlu0 0
  %2182 = vperm.xlu0 %2181, %v1290
  %v2183 = vpop.permute.xlu0 %2182
  %2186 = vset.pattern.permute.xlu0 0
  %2187 = vperm.xlu0 %2186, %v1292
  %v2188 = vpop.permute.xlu0 %2187
  %2191 = vset.pattern.permute.xlu0 0
  %2192 = vperm.xlu0 %2191, %v1294
  %v2193 = vpop.permute.xlu0 %2192
  %2196 = vset.pattern.permute.xlu0 0
  %2197 = vperm.xlu0 %2196, %v1296
  %v2198 = vpop.permute.xlu0 %2197
  %2201 = vset.pattern.permute.xlu0 0
  %2202 = vperm.xlu0 %2201, %v1298
  %v2203 = vpop.permute.xlu0 %2202
  %2206 = vset.pattern.permute.xlu0 0
  %2207 = vperm.xlu0 %2206, %v1300
  %v2208 = vpop.permute.xlu0 %2207
  %2211 = vset.pattern.permute.xlu0 0
  %2212 = vperm.xlu0 %2211, %v1302
  %v2213 = vpop.permute.xlu0 %2212
  %2216 = vset.pattern.permute.xlu0 0
  %2217 = vperm.xlu0 %2216, %v1304
  %v2218 = vpop.permute.xlu0 %2217
  %2221 = vset.pattern.permute.xlu0 0
  %2222 = vperm.xlu0 %2221, %v1306
  %v2223 = vpop.permute.xlu0 %2222
  %2226 = vset.pattern.permute.xlu0 0
  %2227 = vperm.xlu0 %2226, %v1308
  %v2228 = vpop.permute.xlu0 %2227
  %2231 = vset.pattern.permute.xlu0 0
  %2232 = vperm.xlu0 %2231, %v1310
  %v2233 = vpop.permute.xlu0 %2232
  %2236 = vset.pattern.permute.xlu0 0
  %2237 = vperm.xlu0 %2236, %v1312
  %v2238 = vpop.permute.xlu0 %2237
  %2241 = vset.pattern.permute.xlu0 0
  %2242 = vperm.xlu0 %2241, %v1314
  %v2243 = vpop.permute.xlu0 %2242
  %2246 = vset.pattern.permute.xlu0 0
  %2247 = vperm.xlu0 %2246, %v1316
  %v2248 = vpop.permute.xlu0 %2247
  %2251 = vset.pattern.permute.xlu0 0
  %2252 = vperm.xlu0 %2251, %v1318
  %v2253 = vpop.permute.xlu0 %2252
  %2256 = vset.pattern.permute.xlu0 0
  %2257 = vperm.xlu0 %2256, %v1320
  %v2258 = vpop.permute.xlu0 %2257
  %2261 = vset.pattern.permute.xlu0 0
  %2262 = vperm.xlu0 %2261, %v1322
  %v2263 = vpop.permute.xlu0 %2262
  %2266 = vset.pattern.permute.xlu0 0
  %2267 = vperm.xlu0 %2266, %v1324
  %v2268 = vpop.permute.xlu0 %2267
  %2271 = vset.pattern.permute.xlu0 0
  %2272 = vperm.xlu0 %2271, %v1326
  %v2273 = vpop.permute.xlu0 %2272
  %2276 = vset.pattern.permute.xlu0 0
  %2277 = vperm.xlu0 %2276, %v1328
  %v2278 = vpop.permute.xlu0 %2277
  %2281 = vset.pattern.permute.xlu0 0
  %2282 = vperm.xlu0 %2281, %v1330
  %v2283 = vpop.permute.xlu0 %2282
  %2286 = vset.pattern.permute.xlu0 0
  %2287 = vperm.xlu0 %2286, %v1332
  %v2288 = vpop.permute.xlu0 %2287
  %2291 = vset.pattern.permute.xlu0 0
  %2292 = vperm.xlu0 %2291, %v1334
  %v2293 = vpop.permute.xlu0 %2292
  %2296 = vset.pattern.permute.xlu0 0
  %2297 = vperm.xlu0 %2296, %v1336
  %v2298 = vpop.permute.xlu0 %2297
  %2301 = vset.pattern.permute.xlu0 0
  %2302 = vperm.xlu0 %2301, %v1338
  %v2303 = vpop.permute.xlu0 %2302
  %2306 = vset.pattern.permute.xlu0 0
  %2307 = vperm.xlu0 %2306, %v1340
  %v2308 = vpop.permute.xlu0 %2307
  %2311 = vset.pattern.permute.xlu0 0
  %2312 = vperm.xlu0 %2311, %v1342
  %v2313 = vpop.permute.xlu0 %2312
  %2316 = vset.pattern.permute.xlu0 0
  %2317 = vperm.xlu0 %2316, %v1344
  %v2318 = vpop.permute.xlu0 %2317
  %2321 = vset.pattern.permute.xlu0 0
  %2322 = vperm.xlu0 %2321, %v1346
  %v2323 = vpop.permute.xlu0 %2322
  %2326 = vset.pattern.permute.xlu0 0
  %2327 = vperm.xlu0 %2326, %v1348
  %v2328 = vpop.permute.xlu0 %2327
  %2331 = vset.pattern.permute.xlu0 0
  %2332 = vperm.xlu0 %2331, %v1350
  %v2333 = vpop.permute.xlu0 %2332
  %2336 = vset.pattern.permute.xlu0 0
  %2337 = vperm.xlu0 %2336, %v1352
  %v2338 = vpop.permute.xlu0 %2337
  %2341 = vset.pattern.permute.xlu0 0
  %2342 = vperm.xlu0 %2341, %v1354
  %v2343 = vpop.permute.xlu0 %2342
  %2346 = vset.pattern.permute.xlu0 0
  %2347 = vperm.xlu0 %2346, %v1356
  %v2348 = vpop.permute.xlu0 %2347
  %2351 = vset.pattern.permute.xlu0 0
  %2352 = vperm.xlu0 %2351, %v1358
  %v2353 = vpop.permute.xlu0 %2352
  %2356 = vset.pattern.permute.xlu0 0
  %2357 = vperm.xlu0 %2356, %v1360
  %v2358 = vpop.permute.xlu0 %2357
  %2361 = vset.pattern.permute.xlu0 0
  %2362 = vperm.xlu0 %2361, %v1362
  %v2363 = vpop.permute.xlu0 %2362
  %2366 = vset.pattern.permute.xlu0 0
  %2367 = vperm.xlu0 %2366, %v1364
  %v2368 = vpop.permute.xlu0 %2367
  %2371 = vset.pattern.permute.xlu0 0
  %2372 = vperm.xlu0 %2371, %v1366
  %v2373 = vpop.permute.xlu0 %2372
  %2376 = vset.pattern.permute.xlu0 0
  %2377 = vperm.xlu0 %2376, %v1368
  %v2378 = vpop.permute.xlu0 %2377
  %2381 = vset.pattern.permute.xlu0 0
  %2382 = vperm.xlu0 %2381, %v1370
  %v2383 = vpop.permute.xlu0 %2382
  %2386 = vset.pattern.permute.xlu0 0
  %2387 = vperm.xlu0 %2386, %v1372
  %v2388 = vpop.permute.xlu0 %2387
  %2391 = vset.pattern.permute.xlu0 0
  %2392 = vperm.xlu0 %2391, %v1374
  %v2393 = vpop.permute.xlu0 %2392
  %2396 = vset.pattern.permute.xlu0 0
  %2397 = vperm.xlu0 %2396, %v1376
  %v2398 = vpop.permute.xlu0 %2397
  %2401 = vset.pattern.permute.xlu0 0
  %2402 = vperm.xlu0 %2401, %v1378
  %v2403 = vpop.permute.xlu0 %2402
  %2406 = vset.pattern.permute.xlu0 0
  %2407 = vperm.xlu0 %2406, %v1380
  %v2408 = vpop.permute.xlu0 %2407
  %2411 = vset.pattern.permute.xlu0 0
  %2412 = vperm.xlu0 %2411, %v1382
  %v2413 = vpop.permute.xlu0 %2412
  %2416 = vset.pattern.permute.xlu0 0
  %2417 = vperm.xlu0 %2416, %v1384
  %v2418 = vpop.permute.xlu0 %2417
  %2421 = vset.pattern.permute.xlu0 0
  %2422 = vperm.xlu0 %2421, %v1386
  %v2423 = vpop.permute.xlu0 %2422
  %2426 = vset.pattern.permute.xlu0 0
  %2427 = vperm.xlu0 %2426, %v1388
  %v2428 = vpop.permute.xlu0 %2427
  %2431 = vset.pattern.permute.xlu0 0
  %2432 = vperm.xlu0 %2431, %v1390
  %v2433 = vpop.permute.xlu0 %2432
  %2436 = vset.pattern.permute.xlu0 0
  %2437 = vperm.xlu0 %2436, %v1392
  %v2438 = vpop.permute.xlu0 %2437
  %2441 = vset.pattern.permute.xlu0 0
  %2442 = vperm.xlu0 %2441, %v1394
  %v2443 = vpop.permute.xlu0 %2442
  %2446 = vset.pattern.permute.xlu0 0
  %2447 = vperm.xlu0 %2446, %v1396
  %v2448 = vpop.permute.xlu0 %2447
  %2451 = vset.pattern.permute.xlu0 0
  %2452 = vperm.xlu0 %2451, %v1398
  %v2453 = vpop.permute.xlu0 %2452
  %2456 = vset.pattern.permute.xlu0 0
  %2457 = vperm.xlu0 %2456, %v1400
  %v2458 = vpop.permute.xlu0 %2457
  %2461 = vset.pattern.permute.xlu0 0
  %2462 = vperm.xlu0 %2461, %v1402
  %v2463 = vpop.permute.xlu0 %2462
  %2466 = vset.pattern.permute.xlu0 0
  %2467 = vperm.xlu0 %2466, %v1404
  %v2468 = vpop.permute.xlu0 %2467
  %2471 = vset.pattern.permute.xlu0 0
  %2472 = vperm.xlu0 %2471, %v1406
  %v2473 = vpop.permute.xlu0 %2472
  %2476 = vset.pattern.permute.xlu0 0
  %2477 = vperm.xlu0 %2476, %v1408
  %v2478 = vpop.permute.xlu0 %2477
  %2481 = vset.pattern.permute.xlu0 0
  %2482 = vperm.xlu0 %2481, %v1410
  %v2483 = vpop.permute.xlu0 %2482
  %2486 = vset.pattern.permute.xlu0 0
  %2487 = vperm.xlu0 %2486, %v1412
  %v2488 = vpop.permute.xlu0 %2487
  %2491 = vset.pattern.permute.xlu0 0
  %2492 = vperm.xlu0 %2491, %v1414
  %v2493 = vpop.permute.xlu0 %2492
  %2496 = vset.pattern.permute.xlu0 0
  %2497 = vperm.xlu0 %2496, %v1416
  %v2498 = vpop.permute.xlu0 %2497
  %2501 = vset.pattern.permute.xlu0 0
  %2502 = vperm.xlu0 %2501, %v1418
  %v2503 = vpop.permute.xlu0 %2502
  %2506 = vset.pattern.permute.xlu0 0
  %2507 = vperm.xlu0 %2506, %v1420
  %v2508 = vpop.permute.xlu0 %2507
  %2511 = vset.pattern.permute.xlu0 0
  %2512 = vperm.xlu0 %2511, %v1422
  %v2513 = vpop.permute.xlu0 %2512
  %2516 = vset.pattern.permute.xlu0 0
  %2517 = vperm.xlu0 %2516, %v1424
  %v2518 = vpop.permute.xlu0 %2517
  %2521 = vset.pattern.permute.xlu0 0
  %2522 = vperm.xlu0 %2521, %v1426
  %v2523 = vpop.permute.xlu0 %2522
  %2526 = vset.pattern.permute.xlu0 0
  %2527 = vperm.xlu0 %2526, %v1428
  %v2528 = vpop.permute.xlu0 %2527
  %2531 = vset.pattern.permute.xlu0 0
  %2532 = vperm.xlu0 %2531, %v1430
  %v2533 = vpop.permute.xlu0 %2532
  %2536 = vset.pattern.permute.xlu0 0
  %2537 = vperm.xlu0 %2536, %v1432
  %v2538 = vpop.permute.xlu0 %2537
  %2541 = vset.pattern.permute.xlu0 0
  %2542 = vperm.xlu0 %2541, %v1434
  %v2543 = vpop.permute.xlu0 %2542
  %2546 = vset.pattern.permute.xlu0 0
  %2547 = vperm.xlu0 %2546, %v1436
  %v2548 = vpop.permute.xlu0 %2547
  %2551 = vset.pattern.permute.xlu0 0
  %2552 = vperm.xlu0 %2551, %v1438
  %v2553 = vpop.permute.xlu0 %2552
  %2556 = vset.pattern.permute.xlu0 0
  %2557 = vperm.xlu0 %2556, %v1440
  %v2558 = vpop.permute.xlu0 %2557
  %2561 = vset.pattern.permute.xlu0 0
  %2562 = vperm.xlu0 %2561, %v1442
  %v2563 = vpop.permute.xlu0 %2562
  %2566 = vset.pattern.permute.xlu0 0
  %2567 = vperm.xlu0 %2566, %v1444
  %v2568 = vpop.permute.xlu0 %2567
  %2571 = vset.pattern.permute.xlu0 0
  %2572 = vperm.xlu0 %2571, %v1446
  %v2573 = vpop.permute.xlu0 %2572
  %2576 = vset.pattern.permute.xlu0 0
  %2577 = vperm.xlu0 %2576, %v1448
  %v2578 = vpop.permute.xlu0 %2577
  %2581 = vset.pattern.permute.xlu0 0
  %2582 = vperm.xlu0 %2581, %v1450
  %v2583 = vpop.permute.xlu0 %2582
  %2586 = vset.pattern.permute.xlu0 0
  %2587 = vperm.xlu0 %2586, %v1452
  %v2588 = vpop.permute.xlu0 %2587
  %2591 = vset.pattern.permute.xlu0 0
  %2592 = vperm.xlu0 %2591, %v1454
  %v2593 = vpop.permute.xlu0 %2592
  %2596 = vset.pattern.permute.xlu0 0
  %2597 = vperm.xlu0 %2596, %v1456
  %v2598 = vpop.permute.xlu0 %2597
  %2601 = vset.pattern.permute.xlu0 0
  %2602 = vperm.xlu0 %2601, %v1458
  %v2603 = vpop.permute.xlu0 %2602
  %2606 = vset.pattern.permute.xlu0 0
  %2607 = vperm.xlu0 %2606, %v1460
  %v2608 = vpop.permute.xlu0 %2607
  %2611 = vset.pattern.permute.xlu0 0
  %2612 = vperm.xlu0 %2611, %v1462
  %v2613 = vpop.permute.xlu0 %2612
  %2616 = vset.pattern.permute.xlu0 0
  %2617 = vperm.xlu0 %2616, %v1464
  %v2618 = vpop.permute.xlu0 %2617
  %2621 = vset.pattern.permute.xlu0 0
  %2622 = vperm.xlu0 %2621, %v1466
  %v2623 = vpop.permute.xlu0 %2622
  %2626 = vset.pattern.permute.xlu0 0
  %2627 = vperm.xlu0 %2626, %v1468
  %v2628 = vpop.permute.xlu0 %2627
  %2631 = vset.pattern.permute.xlu0 0
  %2632 = vperm.xlu0 %2631, %v1470
  %v2633 = vpop.permute.xlu0 %2632
  %2636 = vset.pattern.permute.xlu0 0
  %2637 = vperm.xlu0 %2636, %v1472
  %v2638 = vpop.permute.xlu0 %2637
  %2641 = vset.pattern.permute.xlu0 0
  %2642 = vperm.xlu0 %2641, %v1474
  %v2643 = vpop.permute.xlu0 %2642
  %2646 = vset.pattern.permute.xlu0 0
  %2647 = vperm.xlu0 %2646, %v1476
  %v2648 = vpop.permute.xlu0 %2647
  %2651 = vset.pattern.permute.xlu0 0
  %2652 = vperm.xlu0 %2651, %v1478
  %v2653 = vpop.permute.xlu0 %2652
  %2656 = vset.pattern.permute.xlu0 0
  %2657 = vperm.xlu0 %2656, %v1480
  %v2658 = vpop.permute.xlu0 %2657
  %2661 = vset.pattern.permute.xlu0 0
  %2662 = vperm.xlu0 %2661, %v1482
  %v2663 = vpop.permute.xlu0 %2662
  %2666 = vset.pattern.permute.xlu0 0
  %2667 = vperm.xlu0 %2666, %v1484
  %v2668 = vpop.permute.xlu0 %2667
  %2671 = vset.pattern.permute.xlu0 0
  %2672 = vperm.xlu0 %2671, %v1486
  %v2673 = vpop.permute.xlu0 %2672
  %2676 = vset.pattern.permute.xlu0 0
  %2677 = vperm.xlu0 %2676, %v1488
  %v2678 = vpop.permute.xlu0 %2677
  %2681 = vset.pattern.permute.xlu0 0
  %2682 = vperm.xlu0 %2681, %v1490
  %v2683 = vpop.permute.xlu0 %2682
  %2686 = vset.pattern.permute.xlu0 0
  %2687 = vperm.xlu0 %2686, %v1492
  %v2688 = vpop.permute.xlu0 %2687
  %2691 = vset.pattern.permute.xlu0 0
  %2692 = vperm.xlu0 %2691, %v1494
  %v2693 = vpop.permute.xlu0 %2692
  %2696 = vset.pattern.permute.xlu0 0
  %2697 = vperm.xlu0 %2696, %v1496
  %v2698 = vpop.permute.xlu0 %2697
  %2701 = vset.pattern.permute.xlu0 0
  %2702 = vperm.xlu0 %2701, %v1498
  %v2703 = vpop.permute.xlu0 %2702
  %2706 = vset.pattern.permute.xlu0 0
  %2707 = vperm.xlu0 %2706, %v1500
  %v2708 = vpop.permute.xlu0 %2707
  %2711 = vset.pattern.permute.xlu0 0
  %2712 = vperm.xlu0 %2711, %v1502
  %v2713 = vpop.permute.xlu0 %2712
  %2716 = vset.pattern.permute.xlu0 0
  %2717 = vperm.xlu0 %2716, %v1504
  %v2718 = vpop.permute.xlu0 %2717
  %2721 = vset.pattern.permute.xlu0 0
  %2722 = vperm.xlu0 %2721, %v1506
  %v2723 = vpop.permute.xlu0 %2722
  %2726 = vset.pattern.permute.xlu0 0
  %2727 = vperm.xlu0 %2726, %v1508
  %v2728 = vpop.permute.xlu0 %2727
  %2731 = vset.pattern.permute.xlu0 0
  %2732 = vperm.xlu0 %2731, %v1510
  %v2733 = vpop.permute.xlu0 %2732
  %2736 = vset.pattern.permute.xlu0 0
  %2737 = vperm.xlu0 %2736, %v1512
  %v2738 = vpop.permute.xlu0 %2737
  %2741 = vset.pattern.permute.xlu0 0
  %2742 = vperm.xlu0 %2741, %v1514
  %v2743 = vpop.permute.xlu0 %2742
  %2746 = vset.pattern.permute.xlu0 0
  %2747 = vperm.xlu0 %2746, %v1516
  %v2748 = vpop.permute.xlu0 %2747
  %2751 = vset.pattern.permute.xlu0 0
  %2752 = vperm.xlu0 %2751, %v1518
  %v2753 = vpop.permute.xlu0 %2752
  %2756 = vset.pattern.permute.xlu0 0
  %2757 = vperm.xlu0 %2756, %v1520
  %v2758 = vpop.permute.xlu0 %2757
  %2761 = vset.pattern.permute.xlu0 0
  %2762 = vperm.xlu0 %2761, %v1522
  %v2763 = vpop.permute.xlu0 %2762
  %2766 = vset.pattern.permute.xlu0 0
  %2767 = vperm.xlu0 %2766, %v1524
  %v2768 = vpop.permute.xlu0 %2767
  %2771 = vset.pattern.permute.xlu0 0
  %2772 = vperm.xlu0 %2771, %v1526
  %v2773 = vpop.permute.xlu0 %2772
  %2776 = vset.pattern.permute.xlu0 0
  %2777 = vperm.xlu0 %2776, %v1528
  %v2778 = vpop.permute.xlu0 %2777
  %2781 = vset.pattern.permute.xlu0 0
  %2782 = vperm.xlu0 %2781, %v1530
  %v2783 = vpop.permute.xlu0 %2782
  %2786 = vset.pattern.permute.xlu0 0
  %2787 = vperm.xlu0 %2786, %v1532
  %v2788 = vpop.permute.xlu0 %2787
  %2791 = vset.pattern.permute.xlu0 0
  %2792 = vperm.xlu0 %2791, %v1534
  %v2793 = vpop.permute.xlu0 %2792
  %2796 = vset.pattern.permute.xlu0 0
  %2797 = vperm.xlu0 %2796, %v1536
  %v2798 = vpop.permute.xlu0 %2797
  %2801 = vset.pattern.permute.xlu0 0
  %2802 = vperm.xlu0 %2801, %v1538
  %v2803 = vpop.permute.xlu0 %2802
  %2806 = vset.pattern.permute.xlu0 0
  %2807 = vperm.xlu0 %2806, %v1540
  %v2808 = vpop.permute.xlu0 %2807
  %2811 = vset.pattern.permute.xlu0 0
  %2812 = vperm.xlu0 %2811, %v1542
  %v2813 = vpop.permute.xlu0 %2812
  %2816 = vset.pattern.permute.xlu0 0
  %2817 = vperm.xlu0 %2816, %v1544
  %v2818 = vpop.permute.xlu0 %2817
  %2821 = vset.pattern.permute.xlu0 0
  %2822 = vperm.xlu0 %2821, %v1546
  %v2823 = vpop.permute.xlu0 %2822
  %2826 = vset.pattern.permute.xlu0 0
  %2827 = vperm.xlu0 %2826, %v1548
  %v2828 = vpop.permute.xlu0 %2827
  %2831 = vset.pattern.permute.xlu0 0
  %2832 = vperm.xlu0 %2831, %v1550
  %v2833 = vpop.permute.xlu0 %2832
  %2836 = vset.pattern.permute.xlu0 0
  %2837 = vperm.xlu0 %2836, %v1552
  %v2838 = vpop.permute.xlu0 %2837
  %2841 = vset.pattern.permute.xlu0 0
  %2842 = vperm.xlu0 %2841, %v1554
  %v2843 = vpop.permute.xlu0 %2842
  %2846 = vset.pattern.permute.xlu0 0
  %2847 = vperm.xlu0 %2846, %v1556
  %v2848 = vpop.permute.xlu0 %2847
  %2851 = vset.pattern.permute.xlu0 0
  %2852 = vperm.xlu0 %2851, %v1558
  %v2853 = vpop.permute.xlu0 %2852
  %2856 = vset.pattern.permute.xlu0 0
  %2857 = vperm.xlu0 %2856, %v1560
  %v2858 = vpop.permute.xlu0 %2857
  %2861 = vset.pattern.permute.xlu0 0
  %2862 = vperm.xlu0 %2861, %v1562
  %v2863 = vpop.permute.xlu0 %2862
  %2866 = vset.pattern.permute.xlu0 0
  %2867 = vperm.xlu0 %2866, %v1564
  %v2868 = vpop.permute.xlu0 %2867
  %2871 = vset.pattern.permute.xlu0 0
  %2872 = vperm.xlu0 %2871, %v1566
  %v2873 = vpop.permute.xlu0 %2872
  %2876 = vset.pattern.permute.xlu0 0
  %2877 = vperm.xlu0 %2876, %v1568
  %v2878 = vpop.permute.xlu0 %2877
  %2881 = vset.pattern.permute.xlu0 0
  %2882 = vperm.xlu0 %2881, %v1570
  %v2883 = vpop.permute.xlu0 %2882
  %2886 = vset.pattern.permute.xlu0 0
  %2887 = vperm.xlu0 %2886, %v1572
  %v2888 = vpop.permute.xlu0 %2887
  %2891 = vset.pattern.permute.xlu0 0
  %2892 = vperm.xlu0 %2891, %v1574
  %v2893 = vpop.permute.xlu0 %2892
  %2896 = vset.pattern.permute.xlu0 0
  %2897 = vperm.xlu0 %2896, %v1576
  %v2898 = vpop.permute.xlu0 %2897
  %2901 = vset.pattern.permute.xlu0 0
  %2902 = vperm.xlu0 %2901, %v1578
  %v2903 = vpop.permute.xlu0 %2902
  %2906 = vset.pattern.permute.xlu0 0
  %2907 = vperm.xlu0 %2906, %v1580
  %v2908 = vpop.permute.xlu0 %2907
  %2911 = vset.pattern.permute.xlu0 0
  %2912 = vperm.xlu0 %2911, %v1582
  %v2913 = vpop.permute.xlu0 %2912
  %2916 = vset.pattern.permute.xlu0 0
  %2917 = vperm.xlu0 %2916, %v1584
  %v2918 = vpop.permute.xlu0 %2917
  %2921 = vset.pattern.permute.xlu0 0
  %2922 = vperm.xlu0 %2921, %v1586
  %v2923 = vpop.permute.xlu0 %2922
  %2926 = vset.pattern.permute.xlu0 0
  %2927 = vperm.xlu0 %2926, %v1588
  %v2928 = vpop.permute.xlu0 %2927
  %2931 = vset.pattern.permute.xlu0 0
  %2932 = vperm.xlu0 %2931, %v1590
  %v2933 = vpop.permute.xlu0 %2932
  %2936 = vset.pattern.permute.xlu0 0
  %2937 = vperm.xlu0 %2936, %v1592
  %v2938 = vpop.permute.xlu0 %2937
  %2941 = vset.pattern.permute.xlu0 0
  %2942 = vperm.xlu0 %2941, %v1594
  %v2943 = vpop.permute.xlu0 %2942
  %2946 = vset.pattern.permute.xlu0 0
  %2947 = vperm.xlu0 %2946, %v1596
  %v2948 = vpop.permute.xlu0 %2947
  %2951 = vset.pattern.permute.xlu0 0
  %2952 = vperm.xlu0 %2951, %v1598
  %v2953 = vpop.permute.xlu0 %2952
  %2956 = vset.pattern.permute.xlu0 0
  %2957 = vperm.xlu0 %2956, %v1600
  %v2958 = vpop.permute.xlu0 %2957
  %2961 = vset.pattern.permute.xlu0 0
  %2962 = vperm.xlu0 %2961, %v1602
  %v2963 = vpop.permute.xlu0 %2962
  %2966 = vset.pattern.permute.xlu0 0
  %2967 = vperm.xlu0 %2966, %v1604
  %v2968 = vpop.permute.xlu0 %2967
  %2971 = vset.pattern.permute.xlu0 0
  %2972 = vperm.xlu0 %2971, %v1606
  %v2973 = vpop.permute.xlu0 %2972
  %v2975 = vmul.f32 %v1838, %v1607
  %v2976 = vmul.f32 %v1843, %v1608
  %v2977 = vmul.f32 %v1848, %v1609
  %v2978 = vmul.f32 %v1853, %v1610
  %v2979 = vmul.f32 %v1858, %v1611
  %v2980 = vmul.f32 %v1863, %v1612
  %v2981 = vmul.f32 %v1868, %v1613
  %v2982 = vmul.f32 %v1873, %v1614
  %v2983 = vmul.f32 %v1878, %v1615
  %v2984 = vmul.f32 %v1883, %v1616
  %v2985 = vmul.f32 %v1888, %v1617
  %v2986 = vmul.f32 %v1893, %v1618
  %v2987 = vmul.f32 %v1898, %v1619
  %v2988 = vmul.f32 %v1903, %v1620
  %v2989 = vmul.f32 %v1908, %v1621
  %v2990 = vmul.f32 %v1913, %v1622
  %v2991 = vmul.f32 %v1918, %v1623
  %v2992 = vmul.f32 %v1923, %v1624
  %v2993 = vmul.f32 %v1928, %v1625
  %v2994 = vmul.f32 %v1933, %v1626
  %v2995 = vmul.f32 %v1938, %v1627
  %v2996 = vmul.f32 %v1943, %v1628
  %v2997 = vmul.f32 %v1948, %v1629
  %v2998 = vmul.f32 %v1953, %v1630
  %v2999 = vmul.f32 %v1958, %v1631
  %v3000 = vmul.f32 %v1963, %v1632
  %v3001 = vmul.f32 %v1968, %v1633
  %v3002 = vmul.f32 %v1973, %v1634
  %v3003 = vmul.f32 %v1978, %v1635
  %v3004 = vmul.f32 %v1983, %v1636
  %v3005 = vmul.f32 %v1988, %v1637
  %v3006 = vmul.f32 %v1993, %v1638
  %v3007 = vmul.f32 %v1998, %v1639
  %v3008 = vmul.f32 %v2003, %v1640
  %v3009 = vmul.f32 %v2008, %v1641
  %v3010 = vmul.f32 %v2013, %v1642
  %v3011 = vmul.f32 %v2018, %v1643
  %v3012 = vmul.f32 %v2023, %v1644
  %v3013 = vmul.f32 %v2028, %v1645
  %v3014 = vmul.f32 %v2033, %v1646
  %v3015 = vmul.f32 %v2038, %v1647
  %v3016 = vmul.f32 %v2043, %v1648
  %v3017 = vmul.f32 %v2048, %v1649
  %v3018 = vmul.f32 %v2053, %v1650
  %v3019 = vmul.f32 %v2058, %v1651
  %v3020 = vmul.f32 %v2063, %v1652
  %v3021 = vmul.f32 %v2068, %v1653
  %v3022 = vmul.f32 %v2073, %v1654
  %v3023 = vmul.f32 %v2078, %v1655
  %v3024 = vmul.f32 %v2083, %v1656
  %v3025 = vmul.f32 %v2088, %v1657
  %v3026 = vmul.f32 %v2093, %v1658
  %v3027 = vmul.f32 %v2098, %v1659
  %v3028 = vmul.f32 %v2103, %v1660
  %v3029 = vmul.f32 %v2108, %v1661
  %v3030 = vmul.f32 %v2113, %v1662
  %v3031 = vmul.f32 %v2118, %v1663
  %v3032 = vmul.f32 %v2123, %v1664
  %v3033 = vmul.f32 %v2128, %v1665
  %v3034 = vmul.f32 %v2133, %v1666
  %v3035 = vmul.f32 %v2138, %v1667
  %v3036 = vmul.f32 %v2143, %v1668
  %v3037 = vmul.f32 %v2148, %v1669
  %v3038 = vmul.f32 %v2153, %v1670
  %v3039 = vmul.f32 %v2158, %v1671
  %v3040 = vmul.f32 %v2163, %v1672
  %v3041 = vmul.f32 %v2168, %v1673
  %v3042 = vmul.f32 %v2173, %v1674
  %v3043 = vmul.f32 %v2178, %v1675
  %v3044 = vmul.f32 %v2183, %v1676
  %v3045 = vmul.f32 %v2188, %v1677
  %v3046 = vmul.f32 %v2193, %v1678
  %v3047 = vmul.f32 %v2198, %v1679
  %v3048 = vmul.f32 %v2203, %v1680
  %v3049 = vmul.f32 %v2208, %v1681
  %v3050 = vmul.f32 %v2213, %v1682
  %v3051 = vmul.f32 %v2218, %v1683
  %v3052 = vmul.f32 %v2223, %v1684
  %v3053 = vmul.f32 %v2228, %v1685
  %v3054 = vmul.f32 %v2233, %v1686
  %v3055 = vmul.f32 %v2238, %v1687
  %v3056 = vmul.f32 %v2243, %v1688
  %v3057 = vmul.f32 %v2248, %v1689
  %v3058 = vmul.f32 %v2253, %v1690
  %v3059 = vmul.f32 %v2258, %v1691
  %v3060 = vmul.f32 %v2263, %v1692
  %v3061 = vmul.f32 %v2268, %v1693
  %v3062 = vmul.f32 %v2273, %v1694
  %v3063 = vmul.f32 %v2278, %v1695
  %v3064 = vmul.f32 %v2283, %v1696
  %v3065 = vmul.f32 %v2288, %v1697
  %v3066 = vmul.f32 %v2293, %v1698
  %v3067 = vmul.f32 %v2298, %v1699
  %v3068 = vmul.f32 %v2303, %v1700
  %v3069 = vmul.f32 %v2308, %v1701
  %v3070 = vmul.f32 %v2313, %v1702
  %v3071 = vmul.f32 %v2318, %v1703
  %v3072 = vmul.f32 %v2323, %v1704
  %v3073 = vmul.f32 %v2328, %v1705
  %v3074 = vmul.f32 %v2333, %v1706
  %v3075 = vmul.f32 %v2338, %v1707
  %v3076 = vmul.f32 %v2343, %v1708
  %v3077 = vmul.f32 %v2348, %v1709
  %v3078 = vmul.f32 %v2353, %v1710
  %v3079 = vmul.f32 %v2358, %v1711
  %v3080 = vmul.f32 %v2363, %v1712
  %v3081 = vmul.f32 %v2368, %v1713
  %v3082 = vmul.f32 %v2373, %v1714
  %v3083 = vmul.f32 %v2378, %v1715
  %v3084 = vmul.f32 %v2383, %v1716
  %v3085 = vmul.f32 %v2388, %v1717
  %v3086 = vmul.f32 %v2393, %v1718
  %v3087 = vmul.f32 %v2398, %v1719
  %v3088 = vmul.f32 %v2403, %v1720
  %v3089 = vmul.f32 %v2408, %v1721
  %v3090 = vmul.f32 %v2413, %v1722
  %v3091 = vmul.f32 %v2418, %v1723
  %v3092 = vmul.f32 %v2423, %v1724
  %v3093 = vmul.f32 %v2428, %v1725
  %v3094 = vmul.f32 %v2433, %v1726
  %v3095 = vmul.f32 %v2438, %v1727
  %v3096 = vmul.f32 %v2443, %v1728
  %v3097 = vmul.f32 %v2448, %v1729
  %v3098 = vmul.f32 %v2453, %v1730
  %v3099 = vmul.f32 %v2458, %v1731
  %v3100 = vmul.f32 %v2463, %v1732
  %v3101 = vmul.f32 %v2468, %v1733
  %v3102 = vmul.f32 %v2473, %v1734
  %v3103 = vmul.f32 %v2478, %v1735
  %v3104 = vmul.f32 %v2483, %v1736
  %v3105 = vmul.f32 %v2488, %v1737
  %v3106 = vmul.f32 %v2493, %v1738
  %v3107 = vmul.f32 %v2498, %v1739
  %v3108 = vmul.f32 %v2503, %v1740
  %v3109 = vmul.f32 %v2508, %v1741
  %v3110 = vmul.f32 %v2513, %v1742
  %v3111 = vmul.f32 %v2518, %v1743
  %v3112 = vmul.f32 %v2523, %v1744
  %v3113 = vmul.f32 %v2528, %v1745
  %v3114 = vmul.f32 %v2533, %v1746
  %v3115 = vmul.f32 %v2538, %v1747
  %v3116 = vmul.f32 %v2543, %v1748
  %v3117 = vmul.f32 %v2548, %v1749
  %v3118 = vmul.f32 %v2553, %v1750
  %v3119 = vmul.f32 %v2558, %v1751
  %v3120 = vmul.f32 %v2563, %v1752
  %v3121 = vmul.f32 %v2568, %v1753
  %v3122 = vmul.f32 %v2573, %v1754
  %v3123 = vmul.f32 %v2578, %v1755
  %v3124 = vmul.f32 %v2583, %v1756
  %v3125 = vmul.f32 %v2588, %v1757
  %v3126 = vmul.f32 %v2593, %v1758
  %v3127 = vmul.f32 %v2598, %v1759
  %v3128 = vmul.f32 %v2603, %v1760
  %v3129 = vmul.f32 %v2608, %v1761
  %v3130 = vmul.f32 %v2613, %v1762
  %v3131 = vmul.f32 %v2618, %v1763
  %v3132 = vmul.f32 %v2623, %v1764
  %v3133 = vmul.f32 %v2628, %v1765
  %v3134 = vmul.f32 %v2633, %v1766
  %v3135 = vmul.f32 %v2638, %v1767
  %v3136 = vmul.f32 %v2643, %v1768
  %v3137 = vmul.f32 %v2648, %v1769
  %v3138 = vmul.f32 %v2653, %v1770
  %v3139 = vmul.f32 %v2658, %v1771
  %v3140 = vmul.f32 %v2663, %v1772
  %v3141 = vmul.f32 %v2668, %v1773
  %v3142 = vmul.f32 %v2673, %v1774
  %v3143 = vmul.f32 %v2678, %v1775
  %v3144 = vmul.f32 %v2683, %v1776
  %v3145 = vmul.f32 %v2688, %v1777
  %v3146 = vmul.f32 %v2693, %v1778
  %v3147 = vmul.f32 %v2698, %v1779
  %v3148 = vmul.f32 %v2703, %v1780
  %v3149 = vmul.f32 %v2708, %v1781
  %v3150 = vmul.f32 %v2713, %v1782
  %v3151 = vmul.f32 %v2718, %v1783
  %v3152 = vmul.f32 %v2723, %v1784
  %v3153 = vmul.f32 %v2728, %v1785
  %v3154 = vmul.f32 %v2733, %v1786
  %v3155 = vmul.f32 %v2738, %v1787
  %v3156 = vmul.f32 %v2743, %v1788
  %v3157 = vmul.f32 %v2748, %v1789
  %v3158 = vmul.f32 %v2753, %v1790
  %v3159 = vmul.f32 %v2758, %v1791
  %v3160 = vmul.f32 %v2763, %v1792
  %v3161 = vmul.f32 %v2768, %v1793
  %v3162 = vmul.f32 %v2773, %v1794
  %v3163 = vmul.f32 %v2778, %v1795
  %v3164 = vmul.f32 %v2783, %v1796
  %v3165 = vmul.f32 %v2788, %v1797
  %v3166 = vmul.f32 %v2793, %v1798
  %v3167 = vmul.f32 %v2798, %v1799
  %v3168 = vmul.f32 %v2803, %v1800
  %v3169 = vmul.f32 %v2808, %v1801
  %v3170 = vmul.f32 %v2813, %v1802
  %v3171 = vmul.f32 %v2818, %v1803
  %v3172 = vmul.f32 %v2823, %v1804
  %v3173 = vmul.f32 %v2828, %v1805
  %v3174 = vmul.f32 %v2833, %v1806
  %v3175 = vmul.f32 %v2838, %v1807
  %v3176 = vmul.f32 %v2843, %v1808
  %v3177 = vmul.f32 %v2848, %v1809
  %v3178 = vmul.f32 %v2853, %v1810
  %v3179 = vmul.f32 %v2858, %v1811
  %v3180 = vmul.f32 %v2863, %v1812
  %v3181 = vmul.f32 %v2868, %v1813
  %v3182 = vmul.f32 %v2873, %v1814
  %v3183 = vmul.f32 %v2878, %v1815
  %v3184 = vmul.f32 %v2883, %v1816
  %v3185 = vmul.f32 %v2888, %v1817
  %v3186 = vmul.f32 %v2893, %v1818
  %v3187 = vmul.f32 %v2898, %v1819
  %v3188 = vmul.f32 %v2903, %v1820
  %v3189 = vmul.f32 %v2908, %v1821
  %v3190 = vmul.f32 %v2913, %v1822
  %v3191 = vmul.f32 %v2918, %v1823
  %v3192 = vmul.f32 %v2923, %v1824
  %v3193 = vmul.f32 %v2928, %v1825
  %v3194 = vmul.f32 %v2933, %v1826
  %v3195 = vmul.f32 %v2938, %v1827
  %v3196 = vmul.f32 %v2943, %v1828
  %v3197 = vmul.f32 %v2948, %v1829
  %v3198 = vmul.f32 %v2953, %v1830
  %v3199 = vmul.f32 %v2958, %v1831
  %v3200 = vmul.f32 %v2963, %v1832
  %v3201 = vmul.f32 %v2968, %v1833
  %v3202 = vmul.f32 %v2973, %v1834
  %vm3203 = vcmask 400384
  %3204 = vst.msk [vmem:[%s2] sm:$0xff] %vm3203, %v2975
  %3205 = vst.msk [vmem:[%s2 + $0x8] sm:$0xff] %vm3203, %v2976
  %3206 = vst.msk [vmem:[%s2 + $0x10] sm:$0xff] %vm3203, %v2977
  %3207 = vst.msk [vmem:[%s2 + $0x18] sm:$0xff] %vm3203, %v2978
  %3208 = vst.msk [vmem:[%s2 + $0x20] sm:$0xff] %vm3203, %v2979
  %3209 = vst.msk [vmem:[%s2 + $0x28] sm:$0xff] %vm3203, %v2980
  %3210 = vst.msk [vmem:[%s2 + $0x30] sm:$0xff] %vm3203, %v2981
  %3211 = vst.msk [vmem:[%s2 + $0x38] sm:$0xff] %vm3203, %v2982
  %3212 = vst.msk [vmem:[%s2 + $0x40] sm:$0xff] %vm3203, %v2983
  %3213 = vst.msk [vmem:[%s2 + $0x48] sm:$0xff] %vm3203, %v2984
  %3214 = vst.msk [vmem:[%s2 + $0x50] sm:$0xff] %vm3203, %v2985
  %3215 = vst.msk [vmem:[%s2 + $0x58] sm:$0xff] %vm3203, %v2986
  %3216 = vst.msk [vmem:[%s2 + $0x60] sm:$0xff] %vm3203, %v2987
  %3217 = vst.msk [vmem:[%s2 + $0x68] sm:$0xff] %vm3203, %v2988
  %3218 = vst.msk [vmem:[%s2 + $0x70] sm:$0xff] %vm3203, %v2989
  %3219 = vst.msk [vmem:[%s2 + $0x78] sm:$0xff] %vm3203, %v2990
  %3220 = vst.msk [vmem:[%s2 + $0x80] sm:$0xff] %vm3203, %v2991
  %3221 = vst.msk [vmem:[%s2 + $0x88] sm:$0xff] %vm3203, %v2992
  %3222 = vst.msk [vmem:[%s2 + $0x90] sm:$0xff] %vm3203, %v2993
  %3223 = vst.msk [vmem:[%s2 + $0x98] sm:$0xff] %vm3203, %v2994
  %3224 = vst.msk [vmem:[%s2 + $0xa0] sm:$0xff] %vm3203, %v2995
  %3225 = vst.msk [vmem:[%s2 + $0xa8] sm:$0xff] %vm3203, %v2996
  %3226 = vst.msk [vmem:[%s2 + $0xb0] sm:$0xff] %vm3203, %v2997
  %3227 = vst.msk [vmem:[%s2 + $0xb8] sm:$0xff] %vm3203, %v2998
  %3228 = vst.msk [vmem:[%s2 + $0xc0] sm:$0xff] %vm3203, %v2999
  %3229 = vst.msk [vmem:[%s2 + $0xc8] sm:$0xff] %vm3203, %v3000
  %3230 = vst.msk [vmem:[%s2 + $0xd0] sm:$0xff] %vm3203, %v3001
  %3231 = vst.msk [vmem:[%s2 + $0xd8] sm:$0xff] %vm3203, %v3002
  %3232 = vst.msk [vmem:[%s2 + $0xe0] sm:$0xff] %vm3203, %v3003
  %3233 = vst.msk [vmem:[%s2 + $0xe8] sm:$0xff] %vm3203, %v3004
  %3234 = vst.msk [vmem:[%s2 + $0xf0] sm:$0xff] %vm3203, %v3005
  %3235 = vst.msk [vmem:[%s2 + $0xf8] sm:$0xff] %vm3203, %v3006
  %3236 = vst.msk [vmem:[%s2 + $0x100] sm:$0xff] %vm3203, %v3007
  %3237 = vst.msk [vmem:[%s2 + $0x108] sm:$0xff] %vm3203, %v3008
  %3238 = vst.msk [vmem:[%s2 + $0x110] sm:$0xff] %vm3203, %v3009
  %3239 = vst.msk [vmem:[%s2 + $0x118] sm:$0xff] %vm3203, %v3010
  %3240 = vst.msk [vmem:[%s2 + $0x120] sm:$0xff] %vm3203, %v3011
  %3241 = vst.msk [vmem:[%s2 + $0x128] sm:$0xff] %vm3203, %v3012
  %3242 = vst.msk [vmem:[%s2 + $0x130] sm:$0xff] %vm3203, %v3013
  %3243 = vst.msk [vmem:[%s2 + $0x138] sm:$0xff] %vm3203, %v3014
  %3244 = vst.msk [vmem:[%s2 + $0x140] sm:$0xff] %vm3203, %v3015
  %3245 = vst.msk [vmem:[%s2 + $0x148] sm:$0xff] %vm3203, %v3016
  %3246 = vst.msk [vmem:[%s2 + $0x150] sm:$0xff] %vm3203, %v3017
  %3247 = vst.msk [vmem:[%s2 + $0x158] sm:$0xff] %vm3203, %v3018
  %3248 = vst.msk [vmem:[%s2 + $0x160] sm:$0xff] %vm3203, %v3019
  %3249 = vst.msk [vmem:[%s2 + $0x168] sm:$0xff] %vm3203, %v3020
  %3250 = vst.msk [vmem:[%s2 + $0x170] sm:$0xff] %vm3203, %v3021
  %3251 = vst.msk [vmem:[%s2 + $0x178] sm:$0xff] %vm3203, %v3022
  %3252 = vst.msk [vmem:[%s2 + $0x180] sm:$0xff] %vm3203, %v3023
  %3253 = vst.msk [vmem:[%s2 + $0x188] sm:$0xff] %vm3203, %v3024
  %3254 = vst.msk [vmem:[%s2 + $0x190] sm:$0xff] %vm3203, %v3025
  %3255 = vst.msk [vmem:[%s2 + $0x198] sm:$0xff] %vm3203, %v3026
  %3256 = vst.msk [vmem:[%s2 + $0x1a0] sm:$0xff] %vm3203, %v3027
  %3257 = vst.msk [vmem:[%s2 + $0x1a8] sm:$0xff] %vm3203, %v3028
  %3258 = vst.msk [vmem:[%s2 + $0x1b0] sm:$0xff] %vm3203, %v3029
  %3259 = vst.msk [vmem:[%s2 + $0x1b8] sm:$0xff] %vm3203, %v3030
  %3260 = vst.msk [vmem:[%s2 + $0x1c0] sm:$0xff] %vm3203, %v3031
  %3261 = vst.msk [vmem:[%s2 + $0x1c8] sm:$0xff] %vm3203, %v3032
  %3262 = vst.msk [vmem:[%s2 + $0x1d0] sm:$0xff] %vm3203, %v3033
  %3263 = vst.msk [vmem:[%s2 + $0x1d8] sm:$0xff] %vm3203, %v3034
  %3264 = vst.msk [vmem:[%s2 + $0x1e0] sm:$0xff] %vm3203, %v3035
  %3265 = vst.msk [vmem:[%s2 + $0x1e8] sm:$0xff] %vm3203, %v3036
  %3266 = vst.msk [vmem:[%s2 + $0x1f0] sm:$0xff] %vm3203, %v3037
  %3267 = vst.msk [vmem:[%s2 + $0x1f8] sm:$0xff] %vm3203, %v3038
  %3268 = vst.msk [vmem:[%s2 + $0x200] sm:$0xff] %vm3203, %v3039
  %3269 = vst.msk [vmem:[%s2 + $0x208] sm:$0xff] %vm3203, %v3040
  %3270 = vst.msk [vmem:[%s2 + $0x210] sm:$0xff] %vm3203, %v3041
  %3271 = vst.msk [vmem:[%s2 + $0x218] sm:$0xff] %vm3203, %v3042
  %3272 = vst.msk [vmem:[%s2 + $0x220] sm:$0xff] %vm3203, %v3043
  %3273 = vst.msk [vmem:[%s2 + $0x228] sm:$0xff] %vm3203, %v3044
  %3274 = vst.msk [vmem:[%s2 + $0x230] sm:$0xff] %vm3203, %v3045
  %3275 = vst.msk [vmem:[%s2 + $0x238] sm:$0xff] %vm3203, %v3046
  %3276 = vst.msk [vmem:[%s2 + $0x240] sm:$0xff] %vm3203, %v3047
  %3277 = vst.msk [vmem:[%s2 + $0x248] sm:$0xff] %vm3203, %v3048
  %3278 = vst.msk [vmem:[%s2 + $0x250] sm:$0xff] %vm3203, %v3049
  %3279 = vst.msk [vmem:[%s2 + $0x258] sm:$0xff] %vm3203, %v3050
  %3280 = vst.msk [vmem:[%s2 + $0x260] sm:$0xff] %vm3203, %v3051
  %3281 = vst.msk [vmem:[%s2 + $0x268] sm:$0xff] %vm3203, %v3052
  %3282 = vst.msk [vmem:[%s2 + $0x270] sm:$0xff] %vm3203, %v3053
  %3283 = vst.msk [vmem:[%s2 + $0x278] sm:$0xff] %vm3203, %v3054
  %3284 = vst.msk [vmem:[%s2 + $0x280] sm:$0xff] %vm3203, %v3055
  %3285 = vst.msk [vmem:[%s2 + $0x288] sm:$0xff] %vm3203, %v3056
  %3286 = vst.msk [vmem:[%s2 + $0x290] sm:$0xff] %vm3203, %v3057
  %3287 = vst.msk [vmem:[%s2 + $0x298] sm:$0xff] %vm3203, %v3058
  %3288 = vst.msk [vmem:[%s2 + $0x2a0] sm:$0xff] %vm3203, %v3059
  %3289 = vst.msk [vmem:[%s2 + $0x2a8] sm:$0xff] %vm3203, %v3060
  %3290 = vst.msk [vmem:[%s2 + $0x2b0] sm:$0xff] %vm3203, %v3061
  %3291 = vst.msk [vmem:[%s2 + $0x2b8] sm:$0xff] %vm3203, %v3062
  %3292 = vst.msk [vmem:[%s2 + $0x2c0] sm:$0xff] %vm3203, %v3063
  %3293 = vst.msk [vmem:[%s2 + $0x2c8] sm:$0xff] %vm3203, %v3064
  %3294 = vst.msk [vmem:[%s2 + $0x2d0] sm:$0xff] %vm3203, %v3065
  %3295 = vst.msk [vmem:[%s2 + $0x2d8] sm:$0xff] %vm3203, %v3066
  %3296 = vst.msk [vmem:[%s2 + $0x2e0] sm:$0xff] %vm3203, %v3067
  %3297 = vst.msk [vmem:[%s2 + $0x2e8] sm:$0xff] %vm3203, %v3068
  %3298 = vst.msk [vmem:[%s2 + $0x2f0] sm:$0xff] %vm3203, %v3069
  %3299 = vst.msk [vmem:[%s2 + $0x2f8] sm:$0xff] %vm3203, %v3070
  %3300 = vst.msk [vmem:[%s2 + $0x300] sm:$0xff] %vm3203, %v3071
  %3301 = vst.msk [vmem:[%s2 + $0x308] sm:$0xff] %vm3203, %v3072
  %3302 = vst.msk [vmem:[%s2 + $0x310] sm:$0xff] %vm3203, %v3073
  %3303 = vst.msk [vmem:[%s2 + $0x318] sm:$0xff] %vm3203, %v3074
  %3304 = vst.msk [vmem:[%s2 + $0x320] sm:$0xff] %vm3203, %v3075
  %3305 = vst.msk [vmem:[%s2 + $0x328] sm:$0xff] %vm3203, %v3076
  %3306 = vst.msk [vmem:[%s2 + $0x330] sm:$0xff] %vm3203, %v3077
  %3307 = vst.msk [vmem:[%s2 + $0x338] sm:$0xff] %vm3203, %v3078
  %3308 = vst.msk [vmem:[%s2 + $0x340] sm:$0xff] %vm3203, %v3079
  %3309 = vst.msk [vmem:[%s2 + $0x348] sm:$0xff] %vm3203, %v3080
  %3310 = vst.msk [vmem:[%s2 + $0x350] sm:$0xff] %vm3203, %v3081
  %3311 = vst.msk [vmem:[%s2 + $0x358] sm:$0xff] %vm3203, %v3082
  %3312 = vst.msk [vmem:[%s2 + $0x360] sm:$0xff] %vm3203, %v3083
  %3313 = vst.msk [vmem:[%s2 + $0x368] sm:$0xff] %vm3203, %v3084
  %3314 = vst.msk [vmem:[%s2 + $0x370] sm:$0xff] %vm3203, %v3085
  %3315 = vst.msk [vmem:[%s2 + $0x378] sm:$0xff] %vm3203, %v3086
  %3316 = vst.msk [vmem:[%s2 + $0x380] sm:$0xff] %vm3203, %v3087
  %3317 = vst.msk [vmem:[%s2 + $0x388] sm:$0xff] %vm3203, %v3088
  %3318 = vst.msk [vmem:[%s2 + $0x390] sm:$0xff] %vm3203, %v3089
  %3319 = vst.msk [vmem:[%s2 + $0x398] sm:$0xff] %vm3203, %v3090
  %3320 = vst.msk [vmem:[%s2 + $0x3a0] sm:$0xff] %vm3203, %v3091
  %3321 = vst.msk [vmem:[%s2 + $0x3a8] sm:$0xff] %vm3203, %v3092
  %3322 = vst.msk [vmem:[%s2 + $0x3b0] sm:$0xff] %vm3203, %v3093
  %3323 = vst.msk [vmem:[%s2 + $0x3b8] sm:$0xff] %vm3203, %v3094
  %3324 = vst.msk [vmem:[%s2 + $0x3c0] sm:$0xff] %vm3203, %v3095
  %3325 = vst.msk [vmem:[%s2 + $0x3c8] sm:$0xff] %vm3203, %v3096
  %3326 = vst.msk [vmem:[%s2 + $0x3d0] sm:$0xff] %vm3203, %v3097
  %3327 = vst.msk [vmem:[%s2 + $0x3d8] sm:$0xff] %vm3203, %v3098
  %3328 = vst.msk [vmem:[%s2 + $0x3e0] sm:$0xff] %vm3203, %v3099
  %3329 = vst.msk [vmem:[%s2 + $0x3e8] sm:$0xff] %vm3203, %v3100
  %3330 = vst.msk [vmem:[%s2 + $0x3f0] sm:$0xff] %vm3203, %v3101
  %3331 = vst.msk [vmem:[%s2 + $0x3f8] sm:$0xff] %vm3203, %v3102
  %3332 = vst.msk [vmem:[%s2 + $0x400] sm:$0xff] %vm3203, %v3103
  %3333 = vst.msk [vmem:[%s2 + $0x408] sm:$0xff] %vm3203, %v3104
  %3334 = vst.msk [vmem:[%s2 + $0x410] sm:$0xff] %vm3203, %v3105
  %3335 = vst.msk [vmem:[%s2 + $0x418] sm:$0xff] %vm3203, %v3106
  %3336 = vst.msk [vmem:[%s2 + $0x420] sm:$0xff] %vm3203, %v3107
  %3337 = vst.msk [vmem:[%s2 + $0x428] sm:$0xff] %vm3203, %v3108
  %3338 = vst.msk [vmem:[%s2 + $0x430] sm:$0xff] %vm3203, %v3109
  %3339 = vst.msk [vmem:[%s2 + $0x438] sm:$0xff] %vm3203, %v3110
  %3340 = vst.msk [vmem:[%s2 + $0x440] sm:$0xff] %vm3203, %v3111
  %3341 = vst.msk [vmem:[%s2 + $0x448] sm:$0xff] %vm3203, %v3112
  %3342 = vst.msk [vmem:[%s2 + $0x450] sm:$0xff] %vm3203, %v3113
  %3343 = vst.msk [vmem:[%s2 + $0x458] sm:$0xff] %vm3203, %v3114
  %3344 = vst.msk [vmem:[%s2 + $0x460] sm:$0xff] %vm3203, %v3115
  %3345 = vst.msk [vmem:[%s2 + $0x468] sm:$0xff] %vm3203, %v3116
  %3346 = vst.msk [vmem:[%s2 + $0x470] sm:$0xff] %vm3203, %v3117
  %3347 = vst.msk [vmem:[%s2 + $0x478] sm:$0xff] %vm3203, %v3118
  %3348 = vst.msk [vmem:[%s2 + $0x480] sm:$0xff] %vm3203, %v3119
  %3349 = vst.msk [vmem:[%s2 + $0x488] sm:$0xff] %vm3203, %v3120
  %3350 = vst.msk [vmem:[%s2 + $0x490] sm:$0xff] %vm3203, %v3121
  %3351 = vst.msk [vmem:[%s2 + $0x498] sm:$0xff] %vm3203, %v3122
  %3352 = vst.msk [vmem:[%s2 + $0x4a0] sm:$0xff] %vm3203, %v3123
  %3353 = vst.msk [vmem:[%s2 + $0x4a8] sm:$0xff] %vm3203, %v3124
  %3354 = vst.msk [vmem:[%s2 + $0x4b0] sm:$0xff] %vm3203, %v3125
  %3355 = vst.msk [vmem:[%s2 + $0x4b8] sm:$0xff] %vm3203, %v3126
  %3356 = vst.msk [vmem:[%s2 + $0x4c0] sm:$0xff] %vm3203, %v3127
  %3357 = vst.msk [vmem:[%s2 + $0x4c8] sm:$0xff] %vm3203, %v3128
  %3358 = vst.msk [vmem:[%s2 + $0x4d0] sm:$0xff] %vm3203, %v3129
  %3359 = vst.msk [vmem:[%s2 + $0x4d8] sm:$0xff] %vm3203, %v3130
  %3360 = vst.msk [vmem:[%s2 + $0x4e0] sm:$0xff] %vm3203, %v3131
  %3361 = vst.msk [vmem:[%s2 + $0x4e8] sm:$0xff] %vm3203, %v3132
  %3362 = vst.msk [vmem:[%s2 + $0x4f0] sm:$0xff] %vm3203, %v3133
  %3363 = vst.msk [vmem:[%s2 + $0x4f8] sm:$0xff] %vm3203, %v3134
  %3364 = vst.msk [vmem:[%s2 + $0x500] sm:$0xff] %vm3203, %v3135
  %3365 = vst.msk [vmem:[%s2 + $0x508] sm:$0xff] %vm3203, %v3136
  %3366 = vst.msk [vmem:[%s2 + $0x510] sm:$0xff] %vm3203, %v3137
  %3367 = vst.msk [vmem:[%s2 + $0x518] sm:$0xff] %vm3203, %v3138
  %3368 = vst.msk [vmem:[%s2 + $0x520] sm:$0xff] %vm3203, %v3139
  %3369 = vst.msk [vmem:[%s2 + $0x528] sm:$0xff] %vm3203, %v3140
  %3370 = vst.msk [vmem:[%s2 + $0x530] sm:$0xff] %vm3203, %v3141
  %3371 = vst.msk [vmem:[%s2 + $0x538] sm:$0xff] %vm3203, %v3142
  %3372 = vst.msk [vmem:[%s2 + $0x540] sm:$0xff] %vm3203, %v3143
  %3373 = vst.msk [vmem:[%s2 + $0x548] sm:$0xff] %vm3203, %v3144
  %3374 = vst.msk [vmem:[%s2 + $0x550] sm:$0xff] %vm3203, %v3145
  %3375 = vst.msk [vmem:[%s2 + $0x558] sm:$0xff] %vm3203, %v3146
  %3376 = vst.msk [vmem:[%s2 + $0x560] sm:$0xff] %vm3203, %v3147
  %3377 = vst.msk [vmem:[%s2 + $0x568] sm:$0xff] %vm3203, %v3148
  %3378 = vst.msk [vmem:[%s2 + $0x570] sm:$0xff] %vm3203, %v3149
  %3379 = vst.msk [vmem:[%s2 + $0x578] sm:$0xff] %vm3203, %v3150
  %3380 = vst.msk [vmem:[%s2 + $0x580] sm:$0xff] %vm3203, %v3151
  %3381 = vst.msk [vmem:[%s2 + $0x588] sm:$0xff] %vm3203, %v3152
  %3382 = vst.msk [vmem:[%s2 + $0x590] sm:$0xff] %vm3203, %v3153
  %3383 = vst.msk [vmem:[%s2 + $0x598] sm:$0xff] %vm3203, %v3154
  %3384 = vst.msk [vmem:[%s2 + $0x5a0] sm:$0xff] %vm3203, %v3155
  %3385 = vst.msk [vmem:[%s2 + $0x5a8] sm:$0xff] %vm3203, %v3156
  %3386 = vst.msk [vmem:[%s2 + $0x5b0] sm:$0xff] %vm3203, %v3157
  %3387 = vst.msk [vmem:[%s2 + $0x5b8] sm:$0xff] %vm3203, %v3158
  %3388 = vst.msk [vmem:[%s2 + $0x5c0] sm:$0xff] %vm3203, %v3159
  %3389 = vst.msk [vmem:[%s2 + $0x5c8] sm:$0xff] %vm3203, %v3160
  %3390 = vst.msk [vmem:[%s2 + $0x5d0] sm:$0xff] %vm3203, %v3161
  %3391 = vst.msk [vmem:[%s2 + $0x5d8] sm:$0xff] %vm3203, %v3162
  %3392 = vst.msk [vmem:[%s2 + $0x5e0] sm:$0xff] %vm3203, %v3163
  %3393 = vst.msk [vmem:[%s2 + $0x5e8] sm:$0xff] %vm3203, %v3164
  %3394 = vst.msk [vmem:[%s2 + $0x5f0] sm:$0xff] %vm3203, %v3165
  %3395 = vst.msk [vmem:[%s2 + $0x5f8] sm:$0xff] %vm3203, %v3166
  %3396 = vst.msk [vmem:[%s2 + $0x600] sm:$0xff] %vm3203, %v3167
  %3397 = vst.msk [vmem:[%s2 + $0x608] sm:$0xff] %vm3203, %v3168
  %3398 = vst.msk [vmem:[%s2 + $0x610] sm:$0xff] %vm3203, %v3169
  %3399 = vst.msk [vmem:[%s2 + $0x618] sm:$0xff] %vm3203, %v3170
  %3400 = vst.msk [vmem:[%s2 + $0x620] sm:$0xff] %vm3203, %v3171
  %3401 = vst.msk [vmem:[%s2 + $0x628] sm:$0xff] %vm3203, %v3172
  %3402 = vst.msk [vmem:[%s2 + $0x630] sm:$0xff] %vm3203, %v3173
  %3403 = vst.msk [vmem:[%s2 + $0x638] sm:$0xff] %vm3203, %v3174
  %3404 = vst.msk [vmem:[%s2 + $0x640] sm:$0xff] %vm3203, %v3175
  %3405 = vst.msk [vmem:[%s2 + $0x648] sm:$0xff] %vm3203, %v3176
  %3406 = vst.msk [vmem:[%s2 + $0x650] sm:$0xff] %vm3203, %v3177
  %3407 = vst.msk [vmem:[%s2 + $0x658] sm:$0xff] %vm3203, %v3178
  %3408 = vst.msk [vmem:[%s2 + $0x660] sm:$0xff] %vm3203, %v3179
  %3409 = vst.msk [vmem:[%s2 + $0x668] sm:$0xff] %vm3203, %v3180
  %3410 = vst.msk [vmem:[%s2 + $0x670] sm:$0xff] %vm3203, %v3181
  %3411 = vst.msk [vmem:[%s2 + $0x678] sm:$0xff] %vm3203, %v3182
  %3412 = vst.msk [vmem:[%s2 + $0x680] sm:$0xff] %vm3203, %v3183
  %3413 = vst.msk [vmem:[%s2 + $0x688] sm:$0xff] %vm3203, %v3184
  %3414 = vst.msk [vmem:[%s2 + $0x690] sm:$0xff] %vm3203, %v3185
  %3415 = vst.msk [vmem:[%s2 + $0x698] sm:$0xff] %vm3203, %v3186
  %3416 = vst.msk [vmem:[%s2 + $0x6a0] sm:$0xff] %vm3203, %v3187
  %3417 = vst.msk [vmem:[%s2 + $0x6a8] sm:$0xff] %vm3203, %v3188
  %3418 = vst.msk [vmem:[%s2 + $0x6b0] sm:$0xff] %vm3203, %v3189
  %3419 = vst.msk [vmem:[%s2 + $0x6b8] sm:$0xff] %vm3203, %v3190
  %3420 = vst.msk [vmem:[%s2 + $0x6c0] sm:$0xff] %vm3203, %v3191
  %3421 = vst.msk [vmem:[%s2 + $0x6c8] sm:$0xff] %vm3203, %v3192
  %3422 = vst.msk [vmem:[%s2 + $0x6d0] sm:$0xff] %vm3203, %v3193
  %3423 = vst.msk [vmem:[%s2 + $0x6d8] sm:$0xff] %vm3203, %v3194
  %3424 = vst.msk [vmem:[%s2 + $0x6e0] sm:$0xff] %vm3203, %v3195
  %3425 = vst.msk [vmem:[%s2 + $0x6e8] sm:$0xff] %vm3203, %v3196
  %3426 = vst.msk [vmem:[%s2 + $0x6f0] sm:$0xff] %vm3203, %v3197
  %3427 = vst.msk [vmem:[%s2 + $0x6f8] sm:$0xff] %vm3203, %v3198
  %3428 = vst.msk [vmem:[%s2 + $0x700] sm:$0xff] %vm3203, %v3199
  %3429 = vst.msk [vmem:[%s2 + $0x708] sm:$0xff] %vm3203, %v3200
  %3430 = vst.msk [vmem:[%s2 + $0x710] sm:$0xff] %vm3203, %v3201
  %3431 = vst.msk [vmem:[%s2 + $0x718] sm:$0xff] %vm3203, %v3202
  // Predicated region
  $region10: #{tpu_custom_call.1} parent=0 // pred_check
    _
  $region11: #{tpu_custom_call.1} parent=0 // pred_check_branch
    %3433 = sbr.rel (0) target = $region13
  $region12: #{tpu_custom_call.1} parent=0 // pred_region
    _
  $region13: #{tpu_custom_call.1} parent=0 // pred_fallthru
    _
  // Predicated region
  $region14: #{tpu_custom_call.1} parent=0 // pred_check
    _
  $region15: #{tpu_custom_call.1} parent=0 // pred_check_branch
    %3435 = sbr.rel (0) target = $region17
  $region16: #{tpu_custom_call.1} parent=0 // pred_region
    _
  $region17: #{tpu_custom_call.1} parent=0 // pred_fallthru
    _

</llo_original>
